<compile_context>
chip_gen: v5e
topology: v5e:2x2
jax: 0.10.0
libtpu: 0.0.40
codegen_flags: <defaults>
</compile_context>

<pallas_src>
import functools
import math

import jax
import jax.numpy as jnp
from jax.experimental import pallas as pl
from jax.experimental.pallas import tpu as pltpu


# ---------------------------------------------------------------------------
# Fused per-(batch, layer) kernel.  grid = (B, L).
# ---------------------------------------------------------------------------

def _fused_layer_kernel(*refs, num_heads, use_txt, eps=1e-5):
    it = iter(refs)
    vid_ref = next(it)                          # (S, D)   f32, constant over l
    vmask_ref = next(it)                        # (1, S)   f32
    if use_txt:
        txt_ref = next(it)                      # (St, D)  f32
        tmask_ref = next(it)                    # (1, St)  f32
    w_qkv = next(it); b_qkv = next(it)          # (D, 3D) bf16, (1, 3D) f32
    w_os = next(it); b_os = next(it)            # (D, D)  bf16, (1, D)  f32
    g_ln1 = next(it); b_ln1 = next(it)          # (1, D)  f32
    if use_txt:
        w_qc = next(it); b_qc = next(it)        # (D, D)  bf16, (1, D)  f32
        w_kvc = next(it); b_kvc = next(it)      # (D, 2D) bf16, (1, 2D) f32
        w_oc = next(it); b_oc = next(it)        # (D, D)  bf16, (1, D)  f32
        g_ln2 = next(it); b_ln2 = next(it)      # (1, D)  f32
    w_f1 = next(it); b_f1 = next(it)            # (D, F)  bf16, (1, F)  f32
    w_f2 = next(it); b_f2 = next(it)            # (F, D)  bf16, (1, D)  f32
    g_ln3 = next(it); b_ln3 = next(it)          # (1, D)  f32
    nk1_w = next(it); nk1_b = next(it)          # (D, D)  bf16, (1, D)  f32
    nk2_w = next(it); nk2_b = next(it)          # (D, CD) bf16, (1, CD) f32
    enc_ref = next(it)                          # out (S, D)
    cpt_ref = next(it)                          # out (1, CD)
    x_ref = next(it)                            # scratch (S, D) f32, persists over l

    l = pl.program_id(1)
    num_l = pl.num_programs(1)

    @pl.when(l == 0)
    def _():
        x_ref[...] = vid_ref[...]

    x = x_ref[...]                              # (S, D) f32
    sq, d = x.shape
    dh = d // num_heads

    def bf(v):
        return v.astype(jnp.bfloat16)

    def layer_norm(h, g, b):
        mu = jnp.mean(h, axis=-1, keepdims=True)
        var = jnp.mean(jnp.square(h - mu), axis=-1, keepdims=True)
        return (h - mu) * jax.lax.rsqrt(var + eps) * g[...] + b[...]

    def mha(q_all, k_all, v_all, bias_full, w_o_ref, b_o_ref):
        # Per-head attention; per-head contexts are concatenated lane-wise so
        # the output projection is ONE (S,D)x(D,D) MXU matmul instead of
        # num_heads tiny-K matmuls + VALU adds.
        ctx_parts = []
        for hd in range(num_heads):
            lo, hi = hd * dh, (hd + 1) * dh
            q = bf(q_all[:, lo:hi])             # scale already folded into Wq
            k = bf(k_all[:, lo:hi])
            v = bf(v_all[:, lo:hi])
            s = jax.lax.dot_general(q, k, (((1,), (1,)), ((), ())),
                                    preferred_element_type=jnp.float32)
            s = s + bias_full                   # additive mask bias (hoisted)
            s = s - jnp.max(s, axis=-1, keepdims=True)
            p = jnp.exp(s)
            denom = jnp.sum(p, axis=-1, keepdims=True)
            p = p * pl.reciprocal(denom, approx=True)          # EUP slot
            ctx_parts.append(jnp.dot(bf(p), v,
                                     preferred_element_type=jnp.float32))
        ctx = jnp.concatenate(ctx_parts, axis=-1)              # (S, D) f32
        return jnp.dot(bf(ctx), w_o_ref[...],
                       preferred_element_type=jnp.float32) + b_o_ref[...]

    # Mask -> additive bias, broadcast ONCE per grid step, reused by every head.
    # TODO(synk): a fully-masked key sequence yields uniform attention here
    # (PyTorch's MultiheadAttention yields NaN); the per-key prob zeroing was
    # dropped per perf review since real masks always have >=1 valid key.
    vbias = jnp.broadcast_to(jnp.where(vmask_ref[...] > 0, 0.0, -1e30), (sq, sq))

    # --- self attention (fused QKV projection) + residual + LayerNorm --------
    res = x
    qkv = jnp.dot(bf(x), w_qkv[...], preferred_element_type=jnp.float32) + b_qkv[...]
    h = mha(qkv[:, :d], qkv[:, d:2 * d], qkv[:, 2 * d:], vbias, w_os, b_os)
    x = layer_norm(res + h, g_ln1, b_ln1)

    # --- cross attention over the text memory (fused KV projection) ----------
    if use_txt:
        mem = txt_ref[...]
        st = mem.shape[0]
        tbias = jnp.broadcast_to(jnp.where(tmask_ref[...] > 0, 0.0, -1e30),
                                 (sq, st))
        res = x
        qc = jnp.dot(bf(x), w_qc[...], preferred_element_type=jnp.float32) + b_qc[...]
        kv = jnp.dot(bf(mem), w_kvc[...], preferred_element_type=jnp.float32) + b_kvc[...]
        h = mha(qc, kv[:, :d], kv[:, d:], tbias, w_oc, b_oc)
        x = layer_norm(res + h, g_ln2, b_ln2)

    # --- feed-forward + residual + LayerNorm ----------------------------------
    res = x
    h = jnp.dot(bf(x), w_f1[...], preferred_element_type=jnp.float32) + b_f1[...]
    h = jnp.maximum(h, 0.0)
    h = jnp.dot(bf(h), w_f2[...], preferred_element_type=jnp.float32) + b_f2[...]
    x = layer_norm(res + h, g_ln3, b_ln3)

    x_ref[...] = x                              # carry to next layer

    # --- last layer: encoder output + 2-layer neck on the "pred" token --------
    @pl.when(l == num_l - 1)
    def _():
        enc_ref[...] = x.astype(enc_ref.dtype)
        pred = x[sq - 1:sq, :]                                        # (1, D)
        h1 = jnp.dot(bf(pred), nk1_w[...],
                     preferred_element_type=jnp.float32) + nk1_b[...]
        cpt = jnp.dot(bf(h1), nk2_w[...],
                      preferred_element_type=jnp.float32) + nk2_b[...]
        cpt_ref[...] = cpt.astype(cpt_ref.dtype)


# ---------------------------------------------------------------------------
# Model forward (single fused pallas_call, layer-streamed weights)
# ---------------------------------------------------------------------------

def video_encoder_forward(params, vid, vid_mask, txt=None, txt_mask=None,
                          gauss_weight=None, require_enc=False,
                          num_heads=4, concept_nums=3):
    # TODO(synk): tgt_gauss_weight attention re-weighting is not implemented
    # (forward here is exercised with gauss_weight=None, the default usage).
    del gauss_weight
    b, s, d = vid.shape
    layers = params["layers"]
    num_layers = len(layers)
    use_txt = txt is not None
    dh = d // num_heads
    scale = float(dh) ** -0.5
    f32, bf16 = jnp.float32, jnp.bfloat16

    def stack(fn, dtype):
        return jnp.stack([fn(lp) for lp in layers], axis=0).astype(dtype)

    def row(v):  # (D,) -> (1, D) for TPU-friendly broadcasting
        return v.reshape(1, -1)

    # Stack / fuse weights once (one-time parameter transform):
    #  - QKV fused to (D, 3D), cross-KV to (D, 2D)
    #  - 1/sqrt(dh) folded into Wq / bq (self and cross)
    #  - matmul weights cast to bf16; biases / LayerNorm params stay f32
    w_qkv = stack(lambda lp: jnp.concatenate(
        [lp["self_attn"]["wq"] * scale, lp["self_attn"]["wk"],
         lp["self_attn"]["wv"]], 1), bf16)
    b_qkv = stack(lambda lp: row(jnp.concatenate(
        [lp["self_attn"]["bq"] * scale, lp["self_attn"]["bk"],
         lp["self_attn"]["bv"]])), f32)
    w_os = stack(lambda lp: lp["self_attn"]["wo"], bf16)
    b_os = stack(lambda lp: row(lp["self_attn"]["bo"]), f32)
    g_ln1 = stack(lambda lp: row(lp["self_ln"]["g"]), f32)
    b_ln1 = stack(lambda lp: row(lp["self_ln"]["b"]), f32)

    w_f1 = stack(lambda lp: lp["fc1"]["w"], bf16)
    b_f1 = stack(lambda lp: row(lp["fc1"]["b"]), f32)
    w_f2 = stack(lambda lp: lp["fc2"]["w"], bf16)
    b_f2 = stack(lambda lp: row(lp["fc2"]["b"]), f32)
    g_ln3 = stack(lambda lp: row(lp["final_ln"]["g"]), f32)
    b_ln3 = stack(lambda lp: row(lp["final_ln"]["b"]), f32)

    nk1_w = params["neck1"]["w"].astype(bf16)
    nk1_b = row(params["neck1"]["b"]).astype(f32)
    nk2_w = params["neck2"]["w"].astype(bf16)
    nk2_b = row(params["neck2"]["b"]).astype(f32)

    inputs, in_specs = [], []
    vmem_bytes = 0

    def add_input(arr, block_shape, index_map):
        nonlocal vmem_bytes
        inputs.append(arr)
        in_specs.append(pl.BlockSpec(block_shape, index_map))
        blk = math.prod(1 if x is None else int(x) for x in block_shape)
        vmem_bytes += 2 * blk * arr.dtype.itemsize   # double-buffered

    per_batch = lambda bi, li: (bi, 0, 0)   # constant over l -> fetched once / b
    per_layer = lambda bi, li: (li, 0, 0)   # streamed per layer (overlaps compute)
    const_2d = lambda bi, li: (0, 0)        # resident for the whole grid

    add_input(vid, (None, s, d), per_batch)
    add_input(vid_mask.astype(f32).reshape(b, 1, s), (None, 1, s), per_batch)
    if use_txt:
        st = txt.shape[1]
        add_input(txt, (None, st, d), per_batch)
        add_input(txt_mask.astype(f32).reshape(b, 1, st), (None, 1, st), per_batch)

    def add_stacked(arr):
        add_input(arr, (None,) + arr.shape[1:], per_layer)

    for arr in (w_qkv, b_qkv, w_os, b_os, g_ln1, b_ln1):
        add_stacked(arr)
    if use_txt:
        w_qc = stack(lambda lp: lp["cross_attn"]["wq"] * scale, bf16)
        b_qc = stack(lambda lp: row(lp["cross_attn"]["bq"] * scale), f32)
        w_kvc = stack(lambda lp: jnp.concatenate(
            [lp["cross_attn"]["wk"], lp["cross_attn"]["wv"]], 1), bf16)
        b_kvc = stack(lambda lp: row(jnp.concatenate(
            [lp["cross_attn"]["bk"], lp["cross_attn"]["bv"]])), f32)
        w_oc = stack(lambda lp: lp["cross_attn"]["wo"], bf16)
        b_oc = stack(lambda lp: row(lp["cross_attn"]["bo"]), f32)
        g_ln2 = stack(lambda lp: row(lp["cross_ln"]["g"]), f32)
        b_ln2 = stack(lambda lp: row(lp["cross_ln"]["b"]), f32)
        for arr in (w_qc, b_qc, w_kvc, b_kvc, w_oc, b_oc, g_ln2, b_ln2):
            add_stacked(arr)
    for arr in (w_f1, b_f1, w_f2, b_f2, g_ln3, b_ln3):
        add_stacked(arr)
    for arr in (nk1_w, nk1_b, nk2_w, nk2_b):
        add_input(arr, arr.shape, const_2d)

    cd = concept_nums * d
    out_shapes = (jax.ShapeDtypeStruct((b, s, d), f32),
                  jax.ShapeDtypeStruct((b, 1, cd), f32))
    # NOTE: at realistic d_model (>=128) the output last dim is lane-dense; at
    # the demo's D=32 the stores are masked but the output is only a few KB, so
    # the (S*D)-slab relayout isn't worth the lowering risk here.
    out_specs = (pl.BlockSpec((None, s, d), per_batch),
                 pl.BlockSpec((None, 1, cd), per_batch))
    vmem_bytes += 2 * (s * d + cd) * 4
    vmem_bytes += s * d * 4                                  # x scratch

    # Explicit scoped-VMEM limit sized from the actual per-step footprint
    # (defaults: 16 MiB v5e / 32 MiB v6e, v7x) with generous headroom.
    vmem_limit = int(min(max(2 * vmem_bytes + (8 << 20), 32 << 20), 96 << 20))

    enc_out, concept = pl.pallas_call(
        functools.partial(_fused_layer_kernel, num_heads=num_heads,
                          use_txt=use_txt),
        out_shape=out_shapes,
        grid=(b, num_layers),
        in_specs=in_specs,
        out_specs=out_specs,
        scratch_shapes=[pltpu.VMEM((s, d), f32)],
        compiler_params=pltpu.CompilerParams(
            dimension_semantics=("parallel", "arbitrary"),
            vmem_limit_bytes=vmem_limit),
    )(*inputs)

    vid_enc_out = enc_out                                    # (B, S, D)
    hy = vid_enc_out[:, :-1]                                 # (B, S-1, D)
    vid_concept = concept.reshape(b, cd)                     # (B, C*D)
    # torch.stack(torch.split(x, C, -1), 1).permute(0, 2, 1) == reshape + T
    vid_concepts = jnp.transpose(vid_concept.reshape(b, d, concept_nums),
                                 (0, 2, 1))                  # (B, C, D)
    if require_enc:
        return vid_concepts, vid_enc_out
    return vid_concepts, hy


# ---------------------------------------------------------------------------
# Deterministic parameter initialization (synthetic; shapes from __init__)
# ---------------------------------------------------------------------------

def _dense_params(key, din, dout, scale=0.02):
    return {"w": scale * jax.random.normal(key, (din, dout), jnp.float32),
            "b": jnp.zeros((dout,), jnp.float32)}


def _ln_params(d):
    return {"g": jnp.ones((d,), jnp.float32), "b": jnp.zeros((d,), jnp.float32)}


def _attn_params(key, d, scale=0.02):
    kq, kk, kv, ko = jax.random.split(key, 4)
    return {
        "wq": scale * jax.random.normal(kq, (d, d), jnp.float32),
        "bq": jnp.zeros((d,), jnp.float32),
        "wk": scale * jax.random.normal(kk, (d, d), jnp.float32),
        "bk": jnp.zeros((d,), jnp.float32),
        "wv": scale * jax.random.normal(kv, (d, d), jnp.float32),
        "bv": jnp.zeros((d,), jnp.float32),
        "wo": scale * jax.random.normal(ko, (d, d), jnp.float32),
        "bo": jnp.zeros((d,), jnp.float32),
    }


def init_video_encoder_params(key, d_model, num_layers, concept_nums):
    # TODO(synk): FFN width follows the CNM-style TransformerDecoder (d_model*2);
    # the reference TransformerDecoder source is not included in the module.
    ffn_dim = 2 * d_model
    layers = []
    for _ in range(num_layers):
        key, k_self, k_cross, k_fc1, k_fc2 = jax.random.split(key, 5)
        layers.append({
            "self_attn": _attn_params(k_self, d_model),
            "self_ln": _ln_params(d_model),
            "cross_attn": _attn_params(k_cross, d_model),
            "cross_ln": _ln_params(d_model),
            "fc1": _dense_params(k_fc1, d_model, ffn_dim),
            "fc2": _dense_params(k_fc2, ffn_dim, d_model),
            "final_ln": _ln_params(d_model),
        })
    key, k_n1, k_n2 = jax.random.split(key, 3)
    return {
        "layers": layers,
        "neck1": _dense_params(k_n1, d_model, d_model),
        "neck2": _dense_params(k_n2, d_model, concept_nums * d_model),
    }


# ---------------------------------------------------------------------------
# Demo
# ---------------------------------------------------------------------------

if __name__ == "__main__":
    d_model = 32
    num_heads = 4
    num_decoder_layers1 = 2
    # num_decoder_layers2 is an __init__ arg of the PyTorch module but is never
    # used in forward -> not needed here.
    concept_nums = 3
    B, S_vid, S_txt = 2, 9, 8        # vid includes a trailing "pred" token

    key = jax.random.PRNGKey(0)
    k_vid, k_txt, k_par = jax.random.split(key, 3)
    vid = jax.random.normal(k_vid, (B, S_vid, d_model), jnp.float32)
    txt = jax.random.normal(k_txt, (B, S_txt, d_model), jnp.float32)
    vid_mask = jnp.ones((B, S_vid), jnp.float32)
    txt_mask = jnp.ones((B, S_txt), jnp.float32).at[1, -2:].set(0.0)

    params = init_video_encoder_params(k_par, d_model, num_decoder_layers1,
                                       concept_nums)

    fwd = jax.jit(functools.partial(video_encoder_forward,
                                    require_enc=False,
                                    num_heads=num_heads,
                                    concept_nums=concept_nums))
    vid_concepts, hy = fwd(params, vid, vid_mask, txt, txt_mask)

    jax.block_until_ready((vid_concepts, hy))
    assert vid_concepts.shape == (B, concept_nums, d_model)
    assert hy.shape == (B, S_vid - 1, d_model)
    assert jnp.all(jnp.isfinite(vid_concepts)) and jnp.all(jnp.isfinite(hy))
    print("KERNEL_OK")
</pallas_src>

<mosaic_0001>
module attributes {stable_mosaic.version = 11 : i64} {
  func.func @_fused_layer_kernel(%arg0: i32, %arg1: i32, %arg2: memref<1x9x32xf32, #tpu.memory_space<vmem>>, %arg3: memref<1x1x9xf32, #tpu.memory_space<vmem>>, %arg4: memref<1x8x32xf32, #tpu.memory_space<vmem>>, %arg5: memref<1x1x8xf32, #tpu.memory_space<vmem>>, %arg6: memref<1x32x96xbf16, #tpu.memory_space<vmem>>, %arg7: memref<1x1x96xf32, #tpu.memory_space<vmem>>, %arg8: memref<1x32x32xbf16, #tpu.memory_space<vmem>>, %arg9: memref<1x1x32xf32, #tpu.memory_space<vmem>>, %arg10: memref<1x1x32xf32, #tpu.memory_space<vmem>>, %arg11: memref<1x1x32xf32, #tpu.memory_space<vmem>>, %arg12: memref<1x32x32xbf16, #tpu.memory_space<vmem>>, %arg13: memref<1x1x32xf32, #tpu.memory_space<vmem>>, %arg14: memref<1x32x64xbf16, #tpu.memory_space<vmem>>, %arg15: memref<1x1x64xf32, #tpu.memory_space<vmem>>, %arg16: memref<1x32x32xbf16, #tpu.memory_space<vmem>>, %arg17: memref<1x1x32xf32, #tpu.memory_space<vmem>>, %arg18: memref<1x1x32xf32, #tpu.memory_space<vmem>>, %arg19: memref<1x1x32xf32, #tpu.memory_space<vmem>>, %arg20: memref<1x32x64xbf16, #tpu.memory_space<vmem>>, %arg21: memref<1x1x64xf32, #tpu.memory_space<vmem>>, %arg22: memref<1x64x32xbf16, #tpu.memory_space<vmem>>, %arg23: memref<1x1x32xf32, #tpu.memory_space<vmem>>, %arg24: memref<1x1x32xf32, #tpu.memory_space<vmem>>, %arg25: memref<1x1x32xf32, #tpu.memory_space<vmem>>, %arg26: memref<32x32xbf16, #tpu.memory_space<vmem>>, %arg27: memref<1x32xf32, #tpu.memory_space<vmem>>, %arg28: memref<32x96xbf16, #tpu.memory_space<vmem>>, %arg29: memref<1x96xf32, #tpu.memory_space<vmem>>, %arg30: memref<1x9x32xf32, #tpu.memory_space<vmem>>, %arg31: memref<1x1x96xf32, #tpu.memory_space<vmem>>, %arg32: memref<9x32xf32, #tpu.memory_space<vmem>>) attributes {dimension_semantics = [#tpu.dimension_semantics<parallel>, #tpu.dimension_semantics<arbitrary>], iteration_bounds = array<i64: 2, 2>, scalar_prefetch = 0 : i64, scratch_operands = 1 : i64, tpu.core_type = #tpu.core_type<tc>, window_params = [{transform_indices = @transform_0, window_bounds = array<i64: 1, 9, 32>}, {transform_indices = @transform_1, window_bounds = array<i64: 1, 1, 9>}, {transform_indices = @transform_2, window_bounds = array<i64: 1, 8, 32>}, {transform_indices = @transform_3, window_bounds = array<i64: 1, 1, 8>}, {transform_indices = @transform_4, window_bounds = array<i64: 1, 32, 96>}, {transform_indices = @transform_5, window_bounds = array<i64: 1, 1, 96>}, {transform_indices = @transform_6, window_bounds = array<i64: 1, 32, 32>}, {transform_indices = @transform_7, window_bounds = array<i64: 1, 1, 32>}, {transform_indices = @transform_8, window_bounds = array<i64: 1, 1, 32>}, {transform_indices = @transform_9, window_bounds = array<i64: 1, 1, 32>}, {transform_indices = @transform_10, window_bounds = array<i64: 1, 32, 32>}, {transform_indices = @transform_11, window_bounds = array<i64: 1, 1, 32>}, {transform_indices = @transform_12, window_bounds = array<i64: 1, 32, 64>}, {transform_indices = @transform_13, window_bounds = array<i64: 1, 1, 64>}, {transform_indices = @transform_14, window_bounds = array<i64: 1, 32, 32>}, {transform_indices = @transform_15, window_bounds = array<i64: 1, 1, 32>}, {transform_indices = @transform_16, window_bounds = array<i64: 1, 1, 32>}, {transform_indices = @transform_17, window_bounds = array<i64: 1, 1, 32>}, {transform_indices = @transform_18, window_bounds = array<i64: 1, 32, 64>}, {transform_indices = @transform_19, window_bounds = array<i64: 1, 1, 64>}, {transform_indices = @transform_20, window_bounds = array<i64: 1, 64, 32>}, {transform_indices = @transform_21, window_bounds = array<i64: 1, 1, 32>}, {transform_indices = @transform_22, window_bounds = array<i64: 1, 1, 32>}, {transform_indices = @transform_23, window_bounds = array<i64: 1, 1, 32>}, {pipeline_mode = #tpu.pipeline_mode<synchronous>, transform_indices = @transform_24, window_bounds = array<i64: 32, 32>}, {pipeline_mode = #tpu.pipeline_mode<synchronous>, transform_indices = @transform_25, window_bounds = array<i64: 1, 32>}, {pipeline_mode = #tpu.pipeline_mode<synchronous>, transform_indices = @transform_26, window_bounds = array<i64: 32, 96>}, {pipeline_mode = #tpu.pipeline_mode<synchronous>, transform_indices = @transform_27, window_bounds = array<i64: 1, 96>}, {transform_indices = @transform_28, window_bounds = array<i64: 1, 9, 32>}, {transform_indices = @transform_29, window_bounds = array<i64: 1, 1, 96>}]} {
    %c0_i32 = arith.constant 0 : i32
    %0 = arith.cmpi eq, %arg1, %c0_i32 : i32
    %1 = arith.extui %0 : i1 to i32
    %c0_i32_0 = arith.constant 0 : i32
    %2 = arith.cmpi ne, %1, %c0_i32_0 : i32
    scf.if %2 {
      %c0_134 = arith.constant 0 : index
      %c0_135 = arith.constant 0 : index
      %c0_136 = arith.constant 0 : index
      %334 = vector.load %arg2[%c0_134, %c0_135, %c0_136] : memref<1x9x32xf32, #tpu.memory_space<vmem>>, vector<1x9x32xf32>
      %335 = vector.shape_cast %334 : vector<1x9x32xf32> to vector<9x32xf32>
      %c0_137 = arith.constant 0 : index
      %c0_138 = arith.constant 0 : index
      %336 = vector.load %arg32[%c0_137, %c0_138] : memref<9x32xf32, #tpu.memory_space<vmem>>, vector<9x32xf32>
      tpu.vector_store %arg32[%c0_137, %c0_138], %335 {strides = array<i32>} : memref<9x32xf32, #tpu.memory_space<vmem>>, vector<9x32xf32>,
    } else {
    }
    %c0 = arith.constant 0 : index
    %c0_1 = arith.constant 0 : index
    %3 = vector.load %arg32[%c0, %c0_1] : memref<9x32xf32, #tpu.memory_space<vmem>>, vector<9x32xf32>
    %c0_2 = arith.constant 0 : index
    %c0_3 = arith.constant 0 : index
    %c0_4 = arith.constant 0 : index
    %4 = vector.load %arg3[%c0_2, %c0_3, %c0_4] : memref<1x1x9xf32, #tpu.memory_space<vmem>>, vector<1x1x9xf32>
    %5 = vector.shape_cast %4 : vector<1x1x9xf32> to vector<1x9xf32>
    %cst = arith.constant 0.000000e+00 : f32
    %6 = vector.broadcast %cst : f32 to vector<1x9xf32>
    %7 = arith.cmpf ogt, %5, %6 : vector<1x9xf32>
    %cst_5 = arith.constant 0.000000e+00 : f32
    %cst_6 = arith.constant -1.000000e+30 : f32
    %8 = vector.broadcast %cst_5 : f32 to vector<1x9xf32>
    %9 = vector.broadcast %cst_6 : f32 to vector<1x9xf32>
    %10 = arith.select %7, %8, %9 : vector<1x9xi1>, vector<1x9xf32>
    %11 = vector.shape_cast %10 : vector<1x9xf32> to vector<1x9xf32>
    %12 = vector.broadcast %11 : vector<1x9xf32> to vector<9x9xf32>
    %13 = arith.truncf %3 : vector<9x32xf32> to vector<9x32xbf16>
    %c0_7 = arith.constant 0 : index
    %c0_8 = arith.constant 0 : index
    %c0_9 = arith.constant 0 : index
    %14 = vector.load %arg6[%c0_7, %c0_8, %c0_9] : memref<1x32x96xbf16, #tpu.memory_space<vmem>>, vector<1x32x96xbf16>
    %15 = vector.shape_cast %14 : vector<1x32x96xbf16> to vector<32x96xbf16>
    %cst_10 = arith.constant dense<0.000000e+00> : vector<9x96xf32>
    %16 = tpu.matmul %13, %15, %cst_10 {dimension_numbers = #tpu.dot_dimension_numbers<[1], [0], [0], [1], [0, 0, 1, 1], [], []>} : vector<9x32xbf16>, vector<32x96xbf16>, vector<9x96xf32> -> vector<9x96xf32>
    %c0_11 = arith.constant 0 : index
    %c0_12 = arith.constant 0 : index
    %c0_13 = arith.constant 0 : index
    %17 = vector.load %arg7[%c0_11, %c0_12, %c0_13] : memref<1x1x96xf32, #tpu.memory_space<vmem>>, vector<1x1x96xf32>
    %18 = vector.shape_cast %17 : vector<1x1x96xf32> to vector<1x96xf32>
    %19 = vector.broadcast %18 : vector<1x96xf32> to vector<9x96xf32>
    %20 = arith.addf %16, %19 : vector<9x96xf32>
    %21 = vector.extract_strided_slice %20 {offsets = [0, 0], sizes = [9, 32], strides = [1, 1]} : vector<9x96xf32> to vector<9x32xf32>
    %22 = vector.extract_strided_slice %20 {offsets = [0, 32], sizes = [9, 32], strides = [1, 1]} : vector<9x96xf32> to vector<9x32xf32>
    %23 = vector.extract_strided_slice %20 {offsets = [0, 64], sizes = [9, 32], strides = [1, 1]} : vector<9x96xf32> to vector<9x32xf32>
    %24 = vector.extract_strided_slice %21 {offsets = [0, 0], sizes = [9, 8], strides = [1, 1]} : vector<9x32xf32> to vector<9x8xf32>
    %25 = arith.truncf %24 : vector<9x8xf32> to vector<9x8xbf16>
    %26 = vector.extract_strided_slice %22 {offsets = [0, 0], sizes = [9, 8], strides = [1, 1]} : vector<9x32xf32> to vector<9x8xf32>
    %27 = arith.truncf %26 : vector<9x8xf32> to vector<9x8xbf16>
    %28 = vector.extract_strided_slice %23 {offsets = [0, 0], sizes = [9, 8], strides = [1, 1]} : vector<9x32xf32> to vector<9x8xf32>
    %29 = arith.truncf %28 : vector<9x8xf32> to vector<9x8xbf16>
    %cst_14 = arith.constant dense<0.000000e+00> : vector<9x9xf32>
    %30 = tpu.matmul %25, %27, %cst_14 {dimension_numbers = #tpu.dot_dimension_numbers<[1], [1], [0], [0], [0, 0, 1, 0], [], []>} : vector<9x8xbf16>, vector<9x8xbf16>, vector<9x9xf32> -> vector<9x9xf32>
    %31 = arith.addf %30, %12 : vector<9x9xf32>
    %cst_15 = arith.constant dense<0xFF800000> : vector<9xf32>
    %32 = vector.multi_reduction <maximumf>, %31, %cst_15 [1] : vector<9x9xf32> to vector<9xf32>
    %33 = vector.shape_cast %32 : vector<9xf32> to vector<9x1xf32>
    %34 = vector.broadcast %33 : vector<9x1xf32> to vector<9x9xf32>
    %35 = arith.subf %31, %34 : vector<9x9xf32>
    %36 = math.exp %35 : vector<9x9xf32>
    %cst_16 = arith.constant dense<0.000000e+00> : vector<9xf32>
    %37 = vector.multi_reduction <add>, %36, %cst_16 [1] : vector<9x9xf32> to vector<9xf32>
    %38 = vector.shape_cast %37 : vector<9xf32> to vector<9x1xf32>
    %39 = tpu.reciprocal %38 {approx = true} : vector<9x1xf32> -> vector<9x1xf32>
    %40 = vector.broadcast %39 : vector<9x1xf32> to vector<9x9xf32>
    %41 = arith.mulf %36, %40 : vector<9x9xf32>
    %42 = arith.truncf %41 : vector<9x9xf32> to vector<9x9xbf16>
    %cst_17 = arith.constant dense<0.000000e+00> : vector<9x8xf32>
    %43 = tpu.matmul %42, %29, %cst_17 {dimension_numbers = #tpu.dot_dimension_numbers<[1], [0], [0], [1], [0, 0, 1, 1], [], []>} : vector<9x9xbf16>, vector<9x8xbf16>, vector<9x8xf32> -> vector<9x8xf32>
    %44 = vector.extract_strided_slice %21 {offsets = [0, 8], sizes = [9, 8], strides = [1, 1]} : vector<9x32xf32> to vector<9x8xf32>
    %45 = arith.truncf %44 : vector<9x8xf32> to vector<9x8xbf16>
    %46 = vector.extract_strided_slice %22 {offsets = [0, 8], sizes = [9, 8], strides = [1, 1]} : vector<9x32xf32> to vector<9x8xf32>
    %47 = arith.truncf %46 : vector<9x8xf32> to vector<9x8xbf16>
    %48 = vector.extract_strided_slice %23 {offsets = [0, 8], sizes = [9, 8], strides = [1, 1]} : vector<9x32xf32> to vector<9x8xf32>
    %49 = arith.truncf %48 : vector<9x8xf32> to vector<9x8xbf16>
    %cst_18 = arith.constant dense<0.000000e+00> : vector<9x9xf32>
    %50 = tpu.matmul %45, %47, %cst_18 {dimension_numbers = #tpu.dot_dimension_numbers<[1], [1], [0], [0], [0, 0, 1, 0], [], []>} : vector<9x8xbf16>, vector<9x8xbf16>, vector<9x9xf32> -> vector<9x9xf32>
    %51 = arith.addf %50, %12 : vector<9x9xf32>
    %cst_19 = arith.constant dense<0xFF800000> : vector<9xf32>
    %52 = vector.multi_reduction <maximumf>, %51, %cst_19 [1] : vector<9x9xf32> to vector<9xf32>
    %53 = vector.shape_cast %52 : vector<9xf32> to vector<9x1xf32>
    %54 = vector.broadcast %53 : vector<9x1xf32> to vector<9x9xf32>
    %55 = arith.subf %51, %54 : vector<9x9xf32>
    %56 = math.exp %55 : vector<9x9xf32>
    %cst_20 = arith.constant dense<0.000000e+00> : vector<9xf32>
    %57 = vector.multi_reduction <add>, %56, %cst_20 [1] : vector<9x9xf32> to vector<9xf32>
    %58 = vector.shape_cast %57 : vector<9xf32> to vector<9x1xf32>
    %59 = tpu.reciprocal %58 {approx = true} : vector<9x1xf32> -> vector<9x1xf32>
    %60 = vector.broadcast %59 : vector<9x1xf32> to vector<9x9xf32>
    %61 = arith.mulf %56, %60 : vector<9x9xf32>
    %62 = arith.truncf %61 : vector<9x9xf32> to vector<9x9xbf16>
    %cst_21 = arith.constant dense<0.000000e+00> : vector<9x8xf32>
    %63 = tpu.matmul %62, %49, %cst_21 {dimension_numbers = #tpu.dot_dimension_numbers<[1], [0], [0], [1], [0, 0, 1, 1], [], []>} : vector<9x9xbf16>, vector<9x8xbf16>, vector<9x8xf32> -> vector<9x8xf32>
    %64 = vector.extract_strided_slice %21 {offsets = [0, 16], sizes = [9, 8], strides = [1, 1]} : vector<9x32xf32> to vector<9x8xf32>
    %65 = arith.truncf %64 : vector<9x8xf32> to vector<9x8xbf16>
    %66 = vector.extract_strided_slice %22 {offsets = [0, 16], sizes = [9, 8], strides = [1, 1]} : vector<9x32xf32> to vector<9x8xf32>
    %67 = arith.truncf %66 : vector<9x8xf32> to vector<9x8xbf16>
    %68 = vector.extract_strided_slice %23 {offsets = [0, 16], sizes = [9, 8], strides = [1, 1]} : vector<9x32xf32> to vector<9x8xf32>
    %69 = arith.truncf %68 : vector<9x8xf32> to vector<9x8xbf16>
    %cst_22 = arith.constant dense<0.000000e+00> : vector<9x9xf32>
    %70 = tpu.matmul %65, %67, %cst_22 {dimension_numbers = #tpu.dot_dimension_numbers<[1], [1], [0], [0], [0, 0, 1, 0], [], []>} : vector<9x8xbf16>, vector<9x8xbf16>, vector<9x9xf32> -> vector<9x9xf32>
    %71 = arith.addf %70, %12 : vector<9x9xf32>
    %cst_23 = arith.constant dense<0xFF800000> : vector<9xf32>
    %72 = vector.multi_reduction <maximumf>, %71, %cst_23 [1] : vector<9x9xf32> to vector<9xf32>
    %73 = vector.shape_cast %72 : vector<9xf32> to vector<9x1xf32>
    %74 = vector.broadcast %73 : vector<9x1xf32> to vector<9x9xf32>
    %75 = arith.subf %71, %74 : vector<9x9xf32>
    %76 = math.exp %75 : vector<9x9xf32>
    %cst_24 = arith.constant dense<0.000000e+00> : vector<9xf32>
    %77 = vector.multi_reduction <add>, %76, %cst_24 [1] : vector<9x9xf32> to vector<9xf32>
    %78 = vector.shape_cast %77 : vector<9xf32> to vector<9x1xf32>
    %79 = tpu.reciprocal %78 {approx = true} : vector<9x1xf32> -> vector<9x1xf32>
    %80 = vector.broadcast %79 : vector<9x1xf32> to vector<9x9xf32>
    %81 = arith.mulf %76, %80 : vector<9x9xf32>
    %82 = arith.truncf %81 : vector<9x9xf32> to vector<9x9xbf16>
    %cst_25 = arith.constant dense<0.000000e+00> : vector<9x8xf32>
    %83 = tpu.matmul %82, %69, %cst_25 {dimension_numbers = #tpu.dot_dimension_numbers<[1], [0], [0], [1], [0, 0, 1, 1], [], []>} : vector<9x9xbf16>, vector<9x8xbf16>, vector<9x8xf32> -> vector<9x8xf32>
    %84 = vector.extract_strided_slice %21 {offsets = [0, 24], sizes = [9, 8], strides = [1, 1]} : vector<9x32xf32> to vector<9x8xf32>
    %85 = arith.truncf %84 : vector<9x8xf32> to vector<9x8xbf16>
    %86 = vector.extract_strided_slice %22 {offsets = [0, 24], sizes = [9, 8], strides = [1, 1]} : vector<9x32xf32> to vector<9x8xf32>
    %87 = arith.truncf %86 : vector<9x8xf32> to vector<9x8xbf16>
    %88 = vector.extract_strided_slice %23 {offsets = [0, 24], sizes = [9, 8], strides = [1, 1]} : vector<9x32xf32> to vector<9x8xf32>
    %89 = arith.truncf %88 : vector<9x8xf32> to vector<9x8xbf16>
    %cst_26 = arith.constant dense<0.000000e+00> : vector<9x9xf32>
    %90 = tpu.matmul %85, %87, %cst_26 {dimension_numbers = #tpu.dot_dimension_numbers<[1], [1], [0], [0], [0, 0, 1, 0], [], []>} : vector<9x8xbf16>, vector<9x8xbf16>, vector<9x9xf32> -> vector<9x9xf32>
    %91 = arith.addf %90, %12 : vector<9x9xf32>
    %cst_27 = arith.constant dense<0xFF800000> : vector<9xf32>
    %92 = vector.multi_reduction <maximumf>, %91, %cst_27 [1] : vector<9x9xf32> to vector<9xf32>
    %93 = vector.shape_cast %92 : vector<9xf32> to vector<9x1xf32>
    %94 = vector.broadcast %93 : vector<9x1xf32> to vector<9x9xf32>
    %95 = arith.subf %91, %94 : vector<9x9xf32>
    %96 = math.exp %95 : vector<9x9xf32>
    %cst_28 = arith.constant dense<0.000000e+00> : vector<9xf32>
    %97 = vector.multi_reduction <add>, %96, %cst_28 [1] : vector<9x9xf32> to vector<9xf32>
    %98 = vector.shape_cast %97 : vector<9xf32> to vector<9x1xf32>
    %99 = tpu.reciprocal %98 {approx = true} : vector<9x1xf32> -> vector<9x1xf32>
    %100 = vector.broadcast %99 : vector<9x1xf32> to vector<9x9xf32>
    %101 = arith.mulf %96, %100 : vector<9x9xf32>
    %102 = arith.truncf %101 : vector<9x9xf32> to vector<9x9xbf16>
    %cst_29 = arith.constant dense<0.000000e+00> : vector<9x8xf32>
    %103 = tpu.matmul %102, %89, %cst_29 {dimension_numbers = #tpu.dot_dimension_numbers<[1], [0], [0], [1], [0, 0, 1, 1], [], []>} : vector<9x9xbf16>, vector<9x8xbf16>, vector<9x8xf32> -> vector<9x8xf32>
    %104 = tpu.concatenate %43, %63, %83, %103 in 1 : vector<9x8xf32>, vector<9x8xf32>, vector<9x8xf32>, vector<9x8xf32> -> vector<9x32xf32>
    %105 = arith.truncf %104 : vector<9x32xf32> to vector<9x32xbf16>
    %c0_30 = arith.constant 0 : index
    %c0_31 = arith.constant 0 : index
    %c0_32 = arith.constant 0 : index
    %106 = vector.load %arg8[%c0_30, %c0_31, %c0_32] : memref<1x32x32xbf16, #tpu.memory_space<vmem>>, vector<1x32x32xbf16>
    %107 = vector.shape_cast %106 : vector<1x32x32xbf16> to vector<32x32xbf16>
    %cst_33 = arith.constant dense<0.000000e+00> : vector<9x32xf32>
    %108 = tpu.matmul %105, %107, %cst_33 {dimension_numbers = #tpu.dot_dimension_numbers<[1], [0], [0], [1], [0, 0, 1, 1], [], []>} : vector<9x32xbf16>, vector<32x32xbf16>, vector<9x32xf32> -> vector<9x32xf32>
    %c0_34 = arith.constant 0 : index
    %c0_35 = arith.constant 0 : index
    %c0_36 = arith.constant 0 : index
    %109 = vector.load %arg9[%c0_34, %c0_35, %c0_36] : memref<1x1x32xf32, #tpu.memory_space<vmem>>, vector<1x1x32xf32>
    %110 = vector.shape_cast %109 : vector<1x1x32xf32> to vector<1x32xf32>
    %111 = vector.broadcast %110 : vector<1x32xf32> to vector<9x32xf32>
    %112 = arith.addf %108, %111 : vector<9x32xf32>
    %113 = arith.addf %3, %112 : vector<9x32xf32>
    %cst_37 = arith.constant dense<0.000000e+00> : vector<9xf32>
    %114 = vector.multi_reduction <add>, %113, %cst_37 [1] : vector<9x32xf32> to vector<9xf32>
    %115 = vector.shape_cast %114 : vector<9xf32> to vector<9x1xf32>
    %cst_38 = arith.constant 3.200000e+01 : f32
    %116 = vector.broadcast %cst_38 : f32 to vector<9x1xf32>
    %117 = arith.divf %115, %116 : vector<9x1xf32>
    %118 = vector.broadcast %117 : vector<9x1xf32> to vector<9x32xf32>
    %119 = arith.subf %113, %118 : vector<9x32xf32>
    %120 = arith.mulf %119, %119 : vector<9x32xf32>
    %cst_39 = arith.constant dense<0.000000e+00> : vector<9xf32>
    %121 = vector.multi_reduction <add>, %120, %cst_39 [1] : vector<9x32xf32> to vector<9xf32>
    %122 = vector.shape_cast %121 : vector<9xf32> to vector<9x1xf32>
    %cst_40 = arith.constant 3.200000e+01 : f32
    %123 = vector.broadcast %cst_40 : f32 to vector<9x1xf32>
    %124 = arith.divf %122, %123 : vector<9x1xf32>
    %125 = vector.broadcast %117 : vector<9x1xf32> to vector<9x32xf32>
    %126 = arith.subf %113, %125 : vector<9x32xf32>
    %cst_41 = arith.constant 9.99999974E-6 : f32
    %127 = vector.broadcast %cst_41 : f32 to vector<9x1xf32>
    %128 = arith.addf %124, %127 : vector<9x1xf32>
    %129 = math.rsqrt %128 : vector<9x1xf32>
    %130 = vector.broadcast %129 : vector<9x1xf32> to vector<9x32xf32>
    %131 = arith.mulf %126, %130 : vector<9x32xf32>
    %c0_42 = arith.constant 0 : index
    %c0_43 = arith.constant 0 : index
    %c0_44 = arith.constant 0 : index
    %132 = vector.load %arg10[%c0_42, %c0_43, %c0_44] : memref<1x1x32xf32, #tpu.memory_space<vmem>>, vector<1x1x32xf32>
    %133 = vector.shape_cast %132 : vector<1x1x32xf32> to vector<1x32xf32>
    %134 = vector.broadcast %133 : vector<1x32xf32> to vector<9x32xf32>
    %135 = arith.mulf %131, %134 : vector<9x32xf32>
    %c0_45 = arith.constant 0 : index
    %c0_46 = arith.constant 0 : index
    %c0_47 = arith.constant 0 : index
    %136 = vector.load %arg11[%c0_45, %c0_46, %c0_47] : memref<1x1x32xf32, #tpu.memory_space<vmem>>, vector<1x1x32xf32>
    %137 = vector.shape_cast %136 : vector<1x1x32xf32> to vector<1x32xf32>
    %138 = vector.broadcast %137 : vector<1x32xf32> to vector<9x32xf32>
    %139 = arith.addf %135, %138 : vector<9x32xf32>
    %c0_48 = arith.constant 0 : index
    %c0_49 = arith.constant 0 : index
    %c0_50 = arith.constant 0 : index
    %140 = vector.load %arg4[%c0_48, %c0_49, %c0_50] : memref<1x8x32xf32, #tpu.memory_space<vmem>>, vector<1x8x32xf32>
    %141 = vector.shape_cast %140 : vector<1x8x32xf32> to vector<8x32xf32>
    %c0_51 = arith.constant 0 : index
    %c0_52 = arith.constant 0 : index
    %c0_53 = arith.constant 0 : index
    %142 = vector.load %arg5[%c0_51, %c0_52, %c0_53] : memref<1x1x8xf32, #tpu.memory_space<vmem>>, vector<1x1x8xf32>
    %143 = vector.shape_cast %142 : vector<1x1x8xf32> to vector<1x8xf32>
    %cst_54 = arith.constant 0.000000e+00 : f32
    %144 = vector.broadcast %cst_54 : f32 to vector<1x8xf32>
    %145 = arith.cmpf ogt, %143, %144 : vector<1x8xf32>
    %cst_55 = arith.constant 0.000000e+00 : f32
    %cst_56 = arith.constant -1.000000e+30 : f32
    %146 = vector.broadcast %cst_55 : f32 to vector<1x8xf32>
    %147 = vector.broadcast %cst_56 : f32 to vector<1x8xf32>
    %148 = arith.select %145, %146, %147 : vector<1x8xi1>, vector<1x8xf32>
    %149 = vector.shape_cast %148 : vector<1x8xf32> to vector<1x8xf32>
    %150 = vector.broadcast %149 : vector<1x8xf32> to vector<9x8xf32>
    %151 = arith.truncf %139 : vector<9x32xf32> to vector<9x32xbf16>
    %c0_57 = arith.constant 0 : index
    %c0_58 = arith.constant 0 : index
    %c0_59 = arith.constant 0 : index
    %152 = vector.load %arg12[%c0_57, %c0_58, %c0_59] : memref<1x32x32xbf16, #tpu.memory_space<vmem>>, vector<1x32x32xbf16>
    %153 = vector.shape_cast %152 : vector<1x32x32xbf16> to vector<32x32xbf16>
    %cst_60 = arith.constant dense<0.000000e+00> : vector<9x32xf32>
    %154 = tpu.matmul %151, %153, %cst_60 {dimension_numbers = #tpu.dot_dimension_numbers<[1], [0], [0], [1], [0, 0, 1, 1], [], []>} : vector<9x32xbf16>, vector<32x32xbf16>, vector<9x32xf32> -> vector<9x32xf32>
    %c0_61 = arith.constant 0 : index
    %c0_62 = arith.constant 0 : index
    %c0_63 = arith.constant 0 : index
    %155 = vector.load %arg13[%c0_61, %c0_62, %c0_63] : memref<1x1x32xf32, #tpu.memory_space<vmem>>, vector<1x1x32xf32>
    %156 = vector.shape_cast %155 : vector<1x1x32xf32> to vector<1x32xf32>
    %157 = vector.broadcast %156 : vector<1x32xf32> to vector<9x32xf32>
    %158 = arith.addf %154, %157 : vector<9x32xf32>
    %159 = arith.truncf %141 : vector<8x32xf32> to vector<8x32xbf16>
    %c0_64 = arith.constant 0 : index
    %c0_65 = arith.constant 0 : index
    %c0_66 = arith.constant 0 : index
    %160 = vector.load %arg14[%c0_64, %c0_65, %c0_66] : memref<1x32x64xbf16, #tpu.memory_space<vmem>>, vector<1x32x64xbf16>
    %161 = vector.shape_cast %160 : vector<1x32x64xbf16> to vector<32x64xbf16>
    %cst_67 = arith.constant dense<0.000000e+00> : vector<8x64xf32>
    %162 = tpu.matmul %159, %161, %cst_67 {dimension_numbers = #tpu.dot_dimension_numbers<[1], [0], [0], [1], [0, 0, 1, 1], [], []>} : vector<8x32xbf16>, vector<32x64xbf16>, vector<8x64xf32> -> vector<8x64xf32>
    %c0_68 = arith.constant 0 : index
    %c0_69 = arith.constant 0 : index
    %c0_70 = arith.constant 0 : index
    %163 = vector.load %arg15[%c0_68, %c0_69, %c0_70] : memref<1x1x64xf32, #tpu.memory_space<vmem>>, vector<1x1x64xf32>
    %164 = vector.shape_cast %163 : vector<1x1x64xf32> to vector<1x64xf32>
    %165 = vector.broadcast %164 : vector<1x64xf32> to vector<8x64xf32>
    %166 = arith.addf %162, %165 : vector<8x64xf32>
    %167 = vector.extract_strided_slice %166 {offsets = [0, 0], sizes = [8, 32], strides = [1, 1]} : vector<8x64xf32> to vector<8x32xf32>
    %168 = vector.extract_strided_slice %166 {offsets = [0, 32], sizes = [8, 32], strides = [1, 1]} : vector<8x64xf32> to vector<8x32xf32>
    %169 = vector.extract_strided_slice %158 {offsets = [0, 0], sizes = [9, 8], strides = [1, 1]} : vector<9x32xf32> to vector<9x8xf32>
    %170 = arith.truncf %169 : vector<9x8xf32> to vector<9x8xbf16>
    %171 = vector.extract_strided_slice %167 {offsets = [0, 0], sizes = [8, 8], strides = [1, 1]} : vector<8x32xf32> to vector<8x8xf32>
    %172 = arith.truncf %171 : vector<8x8xf32> to vector<8x8xbf16>
    %173 = vector.extract_strided_slice %168 {offsets = [0, 0], sizes = [8, 8], strides = [1, 1]} : vector<8x32xf32> to vector<8x8xf32>
    %174 = arith.truncf %173 : vector<8x8xf32> to vector<8x8xbf16>
    %cst_71 = arith.constant dense<0.000000e+00> : vector<9x8xf32>
    %175 = tpu.matmul %170, %172, %cst_71 {dimension_numbers = #tpu.dot_dimension_numbers<[1], [1], [0], [0], [0, 0, 1, 0], [], []>} : vector<9x8xbf16>, vector<8x8xbf16>, vector<9x8xf32> -> vector<9x8xf32>
    %176 = arith.addf %175, %150 : vector<9x8xf32>
    %cst_72 = arith.constant dense<0xFF800000> : vector<9xf32>
    %177 = vector.multi_reduction <maximumf>, %176, %cst_72 [1] : vector<9x8xf32> to vector<9xf32>
    %178 = vector.shape_cast %177 : vector<9xf32> to vector<9x1xf32>
    %179 = vector.broadcast %178 : vector<9x1xf32> to vector<9x8xf32>
    %180 = arith.subf %176, %179 : vector<9x8xf32>
    %181 = math.exp %180 : vector<9x8xf32>
    %cst_73 = arith.constant dense<0.000000e+00> : vector<9xf32>
    %182 = vector.multi_reduction <add>, %181, %cst_73 [1] : vector<9x8xf32> to vector<9xf32>
    %183 = vector.shape_cast %182 : vector<9xf32> to vector<9x1xf32>
    %184 = tpu.reciprocal %183 {approx = true} : vector<9x1xf32> -> vector<9x1xf32>
    %185 = vector.broadcast %184 : vector<9x1xf32> to vector<9x8xf32>
    %186 = arith.mulf %181, %185 : vector<9x8xf32>
    %187 = arith.truncf %186 : vector<9x8xf32> to vector<9x8xbf16>
    %cst_74 = arith.constant dense<0.000000e+00> : vector<9x8xf32>
    %188 = tpu.matmul %187, %174, %cst_74 {dimension_numbers = #tpu.dot_dimension_numbers<[1], [0], [0], [1], [0, 0, 1, 1], [], []>} : vector<9x8xbf16>, vector<8x8xbf16>, vector<9x8xf32> -> vector<9x8xf32>
    %189 = vector.extract_strided_slice %158 {offsets = [0, 8], sizes = [9, 8], strides = [1, 1]} : vector<9x32xf32> to vector<9x8xf32>
    %190 = arith.truncf %189 : vector<9x8xf32> to vector<9x8xbf16>
    %191 = vector.extract_strided_slice %167 {offsets = [0, 8], sizes = [8, 8], strides = [1, 1]} : vector<8x32xf32> to vector<8x8xf32>
    %192 = arith.truncf %191 : vector<8x8xf32> to vector<8x8xbf16>
    %193 = vector.extract_strided_slice %168 {offsets = [0, 8], sizes = [8, 8], strides = [1, 1]} : vector<8x32xf32> to vector<8x8xf32>
    %194 = arith.truncf %193 : vector<8x8xf32> to vector<8x8xbf16>
    %cst_75 = arith.constant dense<0.000000e+00> : vector<9x8xf32>
    %195 = tpu.matmul %190, %192, %cst_75 {dimension_numbers = #tpu.dot_dimension_numbers<[1], [1], [0], [0], [0, 0, 1, 0], [], []>} : vector<9x8xbf16>, vector<8x8xbf16>, vector<9x8xf32> -> vector<9x8xf32>
    %196 = arith.addf %195, %150 : vector<9x8xf32>
    %cst_76 = arith.constant dense<0xFF800000> : vector<9xf32>
    %197 = vector.multi_reduction <maximumf>, %196, %cst_76 [1] : vector<9x8xf32> to vector<9xf32>
    %198 = vector.shape_cast %197 : vector<9xf32> to vector<9x1xf32>
    %199 = vector.broadcast %198 : vector<9x1xf32> to vector<9x8xf32>
    %200 = arith.subf %196, %199 : vector<9x8xf32>
    %201 = math.exp %200 : vector<9x8xf32>
    %cst_77 = arith.constant dense<0.000000e+00> : vector<9xf32>
    %202 = vector.multi_reduction <add>, %201, %cst_77 [1] : vector<9x8xf32> to vector<9xf32>
    %203 = vector.shape_cast %202 : vector<9xf32> to vector<9x1xf32>
    %204 = tpu.reciprocal %203 {approx = true} : vector<9x1xf32> -> vector<9x1xf32>
    %205 = vector.broadcast %204 : vector<9x1xf32> to vector<9x8xf32>
    %206 = arith.mulf %201, %205 : vector<9x8xf32>
    %207 = arith.truncf %206 : vector<9x8xf32> to vector<9x8xbf16>
    %cst_78 = arith.constant dense<0.000000e+00> : vector<9x8xf32>
    %208 = tpu.matmul %207, %194, %cst_78 {dimension_numbers = #tpu.dot_dimension_numbers<[1], [0], [0], [1], [0, 0, 1, 1], [], []>} : vector<9x8xbf16>, vector<8x8xbf16>, vector<9x8xf32> -> vector<9x8xf32>
    %209 = vector.extract_strided_slice %158 {offsets = [0, 16], sizes = [9, 8], strides = [1, 1]} : vector<9x32xf32> to vector<9x8xf32>
    %210 = arith.truncf %209 : vector<9x8xf32> to vector<9x8xbf16>
    %211 = vector.extract_strided_slice %167 {offsets = [0, 16], sizes = [8, 8], strides = [1, 1]} : vector<8x32xf32> to vector<8x8xf32>
    %212 = arith.truncf %211 : vector<8x8xf32> to vector<8x8xbf16>
    %213 = vector.extract_strided_slice %168 {offsets = [0, 16], sizes = [8, 8], strides = [1, 1]} : vector<8x32xf32> to vector<8x8xf32>
    %214 = arith.truncf %213 : vector<8x8xf32> to vector<8x8xbf16>
    %cst_79 = arith.constant dense<0.000000e+00> : vector<9x8xf32>
    %215 = tpu.matmul %210, %212, %cst_79 {dimension_numbers = #tpu.dot_dimension_numbers<[1], [1], [0], [0], [0, 0, 1, 0], [], []>} : vector<9x8xbf16>, vector<8x8xbf16>, vector<9x8xf32> -> vector<9x8xf32>
    %216 = arith.addf %215, %150 : vector<9x8xf32>
    %cst_80 = arith.constant dense<0xFF800000> : vector<9xf32>
    %217 = vector.multi_reduction <maximumf>, %216, %cst_80 [1] : vector<9x8xf32> to vector<9xf32>
    %218 = vector.shape_cast %217 : vector<9xf32> to vector<9x1xf32>
    %219 = vector.broadcast %218 : vector<9x1xf32> to vector<9x8xf32>
    %220 = arith.subf %216, %219 : vector<9x8xf32>
    %221 = math.exp %220 : vector<9x8xf32>
    %cst_81 = arith.constant dense<0.000000e+00> : vector<9xf32>
    %222 = vector.multi_reduction <add>, %221, %cst_81 [1] : vector<9x8xf32> to vector<9xf32>
    %223 = vector.shape_cast %222 : vector<9xf32> to vector<9x1xf32>
    %224 = tpu.reciprocal %223 {approx = true} : vector<9x1xf32> -> vector<9x1xf32>
    %225 = vector.broadcast %224 : vector<9x1xf32> to vector<9x8xf32>
    %226 = arith.mulf %221, %225 : vector<9x8xf32>
    %227 = arith.truncf %226 : vector<9x8xf32> to vector<9x8xbf16>
    %cst_82 = arith.constant dense<0.000000e+00> : vector<9x8xf32>
    %228 = tpu.matmul %227, %214, %cst_82 {dimension_numbers = #tpu.dot_dimension_numbers<[1], [0], [0], [1], [0, 0, 1, 1], [], []>} : vector<9x8xbf16>, vector<8x8xbf16>, vector<9x8xf32> -> vector<9x8xf32>
    %229 = vector.extract_strided_slice %158 {offsets = [0, 24], sizes = [9, 8], strides = [1, 1]} : vector<9x32xf32> to vector<9x8xf32>
    %230 = arith.truncf %229 : vector<9x8xf32> to vector<9x8xbf16>
    %231 = vector.extract_strided_slice %167 {offsets = [0, 24], sizes = [8, 8], strides = [1, 1]} : vector<8x32xf32> to vector<8x8xf32>
    %232 = arith.truncf %231 : vector<8x8xf32> to vector<8x8xbf16>
    %233 = vector.extract_strided_slice %168 {offsets = [0, 24], sizes = [8, 8], strides = [1, 1]} : vector<8x32xf32> to vector<8x8xf32>
    %234 = arith.truncf %233 : vector<8x8xf32> to vector<8x8xbf16>
    %cst_83 = arith.constant dense<0.000000e+00> : vector<9x8xf32>
    %235 = tpu.matmul %230, %232, %cst_83 {dimension_numbers = #tpu.dot_dimension_numbers<[1], [1], [0], [0], [0, 0, 1, 0], [], []>} : vector<9x8xbf16>, vector<8x8xbf16>, vector<9x8xf32> -> vector<9x8xf32>
    %236 = arith.addf %235, %150 : vector<9x8xf32>
    %cst_84 = arith.constant dense<0xFF800000> : vector<9xf32>
    %237 = vector.multi_reduction <maximumf>, %236, %cst_84 [1] : vector<9x8xf32> to vector<9xf32>
    %238 = vector.shape_cast %237 : vector<9xf32> to vector<9x1xf32>
    %239 = vector.broadcast %238 : vector<9x1xf32> to vector<9x8xf32>
    %240 = arith.subf %236, %239 : vector<9x8xf32>
    %241 = math.exp %240 : vector<9x8xf32>
    %cst_85 = arith.constant dense<0.000000e+00> : vector<9xf32>
    %242 = vector.multi_reduction <add>, %241, %cst_85 [1] : vector<9x8xf32> to vector<9xf32>
    %243 = vector.shape_cast %242 : vector<9xf32> to vector<9x1xf32>
    %244 = tpu.reciprocal %243 {approx = true} : vector<9x1xf32> -> vector<9x1xf32>
    %245 = vector.broadcast %244 : vector<9x1xf32> to vector<9x8xf32>
    %246 = arith.mulf %241, %245 : vector<9x8xf32>
    %247 = arith.truncf %246 : vector<9x8xf32> to vector<9x8xbf16>
    %cst_86 = arith.constant dense<0.000000e+00> : vector<9x8xf32>
    %248 = tpu.matmul %247, %234, %cst_86 {dimension_numbers = #tpu.dot_dimension_numbers<[1], [0], [0], [1], [0, 0, 1, 1], [], []>} : vector<9x8xbf16>, vector<8x8xbf16>, vector<9x8xf32> -> vector<9x8xf32>
    %249 = tpu.concatenate %188, %208, %228, %248 in 1 : vector<9x8xf32>, vector<9x8xf32>, vector<9x8xf32>, vector<9x8xf32> -> vector<9x32xf32>
    %250 = arith.truncf %249 : vector<9x32xf32> to vector<9x32xbf16>
    %c0_87 = arith.constant 0 : index
    %c0_88 = arith.constant 0 : index
    %c0_89 = arith.constant 0 : index
    %251 = vector.load %arg16[%c0_87, %c0_88, %c0_89] : memref<1x32x32xbf16, #tpu.memory_space<vmem>>, vector<1x32x32xbf16>
    %252 = vector.shape_cast %251 : vector<1x32x32xbf16> to vector<32x32xbf16>
    %cst_90 = arith.constant dense<0.000000e+00> : vector<9x32xf32>
    %253 = tpu.matmul %250, %252, %cst_90 {dimension_numbers = #tpu.dot_dimension_numbers<[1], [0], [0], [1], [0, 0, 1, 1], [], []>} : vector<9x32xbf16>, vector<32x32xbf16>, vector<9x32xf32> -> vector<9x32xf32>
    %c0_91 = arith.constant 0 : index
    %c0_92 = arith.constant 0 : index
    %c0_93 = arith.constant 0 : index
    %254 = vector.load %arg17[%c0_91, %c0_92, %c0_93] : memref<1x1x32xf32, #tpu.memory_space<vmem>>, vector<1x1x32xf32>
    %255 = vector.shape_cast %254 : vector<1x1x32xf32> to vector<1x32xf32>
    %256 = vector.broadcast %255 : vector<1x32xf32> to vector<9x32xf32>
    %257 = arith.addf %253, %256 : vector<9x32xf32>
    %258 = arith.addf %139, %257 : vector<9x32xf32>
    %cst_94 = arith.constant dense<0.000000e+00> : vector<9xf32>
    %259 = vector.multi_reduction <add>, %258, %cst_94 [1] : vector<9x32xf32> to vector<9xf32>
    %260 = vector.shape_cast %259 : vector<9xf32> to vector<9x1xf32>
    %cst_95 = arith.constant 3.200000e+01 : f32
    %261 = vector.broadcast %cst_95 : f32 to vector<9x1xf32>
    %262 = arith.divf %260, %261 : vector<9x1xf32>
    %263 = vector.broadcast %262 : vector<9x1xf32> to vector<9x32xf32>
    %264 = arith.subf %258, %263 : vector<9x32xf32>
    %265 = arith.mulf %264, %264 : vector<9x32xf32>
    %cst_96 = arith.constant dense<0.000000e+00> : vector<9xf32>
    %266 = vector.multi_reduction <add>, %265, %cst_96 [1] : vector<9x32xf32> to vector<9xf32>
    %267 = vector.shape_cast %266 : vector<9xf32> to vector<9x1xf32>
    %cst_97 = arith.constant 3.200000e+01 : f32
    %268 = vector.broadcast %cst_97 : f32 to vector<9x1xf32>
    %269 = arith.divf %267, %268 : vector<9x1xf32>
    %270 = vector.broadcast %262 : vector<9x1xf32> to vector<9x32xf32>
    %271 = arith.subf %258, %270 : vector<9x32xf32>
    %cst_98 = arith.constant 9.99999974E-6 : f32
    %272 = vector.broadcast %cst_98 : f32 to vector<9x1xf32>
    %273 = arith.addf %269, %272 : vector<9x1xf32>
    %274 = math.rsqrt %273 : vector<9x1xf32>
    %275 = vector.broadcast %274 : vector<9x1xf32> to vector<9x32xf32>
    %276 = arith.mulf %271, %275 : vector<9x32xf32>
    %c0_99 = arith.constant 0 : index
    %c0_100 = arith.constant 0 : index
    %c0_101 = arith.constant 0 : index
    %277 = vector.load %arg18[%c0_99, %c0_100, %c0_101] : memref<1x1x32xf32, #tpu.memory_space<vmem>>, vector<1x1x32xf32>
    %278 = vector.shape_cast %277 : vector<1x1x32xf32> to vector<1x32xf32>
    %279 = vector.broadcast %278 : vector<1x32xf32> to vector<9x32xf32>
    %280 = arith.mulf %276, %279 : vector<9x32xf32>
    %c0_102 = arith.constant 0 : index
    %c0_103 = arith.constant 0 : index
    %c0_104 = arith.constant 0 : index
    %281 = vector.load %arg19[%c0_102, %c0_103, %c0_104] : memref<1x1x32xf32, #tpu.memory_space<vmem>>, vector<1x1x32xf32>
    %282 = vector.shape_cast %281 : vector<1x1x32xf32> to vector<1x32xf32>
    %283 = vector.broadcast %282 : vector<1x32xf32> to vector<9x32xf32>
    %284 = arith.addf %280, %283 : vector<9x32xf32>
    %285 = arith.truncf %284 : vector<9x32xf32> to vector<9x32xbf16>
    %c0_105 = arith.constant 0 : index
    %c0_106 = arith.constant 0 : index
    %c0_107 = arith.constant 0 : index
    %286 = vector.load %arg20[%c0_105, %c0_106, %c0_107] : memref<1x32x64xbf16, #tpu.memory_space<vmem>>, vector<1x32x64xbf16>
    %287 = vector.shape_cast %286 : vector<1x32x64xbf16> to vector<32x64xbf16>
    %cst_108 = arith.constant dense<0.000000e+00> : vector<9x64xf32>
    %288 = tpu.matmul %285, %287, %cst_108 {dimension_numbers = #tpu.dot_dimension_numbers<[1], [0], [0], [1], [0, 0, 1, 1], [], []>} : vector<9x32xbf16>, vector<32x64xbf16>, vector<9x64xf32> -> vector<9x64xf32>
    %c0_109 = arith.constant 0 : index
    %c0_110 = arith.constant 0 : index
    %c0_111 = arith.constant 0 : index
    %289 = vector.load %arg21[%c0_109, %c0_110, %c0_111] : memref<1x1x64xf32, #tpu.memory_space<vmem>>, vector<1x1x64xf32>
    %290 = vector.shape_cast %289 : vector<1x1x64xf32> to vector<1x64xf32>
    %291 = vector.broadcast %290 : vector<1x64xf32> to vector<9x64xf32>
    %292 = arith.addf %288, %291 : vector<9x64xf32>
    %cst_112 = arith.constant 0.000000e+00 : f32
    %293 = vector.broadcast %cst_112 : f32 to vector<9x64xf32>
    %294 = arith.maximumf %292, %293 : vector<9x64xf32>
    %295 = arith.truncf %294 : vector<9x64xf32> to vector<9x64xbf16>
    %c0_113 = arith.constant 0 : index
    %c0_114 = arith.constant 0 : index
    %c0_115 = arith.constant 0 : index
    %296 = vector.load %arg22[%c0_113, %c0_114, %c0_115] : memref<1x64x32xbf16, #tpu.memory_space<vmem>>, vector<1x64x32xbf16>
    %297 = vector.shape_cast %296 : vector<1x64x32xbf16> to vector<64x32xbf16>
    %cst_116 = arith.constant dense<0.000000e+00> : vector<9x32xf32>
    %298 = tpu.matmul %295, %297, %cst_116 {dimension_numbers = #tpu.dot_dimension_numbers<[1], [0], [0], [1], [0, 0, 1, 1], [], []>} : vector<9x64xbf16>, vector<64x32xbf16>, vector<9x32xf32> -> vector<9x32xf32>
    %c0_117 = arith.constant 0 : index
    %c0_118 = arith.constant 0 : index
    %c0_119 = arith.constant 0 : index
    %299 = vector.load %arg23[%c0_117, %c0_118, %c0_119] : memref<1x1x32xf32, #tpu.memory_space<vmem>>, vector<1x1x32xf32>
    %300 = vector.shape_cast %299 : vector<1x1x32xf32> to vector<1x32xf32>
    %301 = vector.broadcast %300 : vector<1x32xf32> to vector<9x32xf32>
    %302 = arith.addf %298, %301 : vector<9x32xf32>
    %303 = arith.addf %284, %302 : vector<9x32xf32>
    %cst_120 = arith.constant dense<0.000000e+00> : vector<9xf32>
    %304 = vector.multi_reduction <add>, %303, %cst_120 [1] : vector<9x32xf32> to vector<9xf32>
    %305 = vector.shape_cast %304 : vector<9xf32> to vector<9x1xf32>
    %cst_121 = arith.constant 3.200000e+01 : f32
    %306 = vector.broadcast %cst_121 : f32 to vector<9x1xf32>
    %307 = arith.divf %305, %306 : vector<9x1xf32>
    %308 = vector.broadcast %307 : vector<9x1xf32> to vector<9x32xf32>
    %309 = arith.subf %303, %308 : vector<9x32xf32>
    %310 = arith.mulf %309, %309 : vector<9x32xf32>
    %cst_122 = arith.constant dense<0.000000e+00> : vector<9xf32>
    %311 = vector.multi_reduction <add>, %310, %cst_122 [1] : vector<9x32xf32> to vector<9xf32>
    %312 = vector.shape_cast %311 : vector<9xf32> to vector<9x1xf32>
    %cst_123 = arith.constant 3.200000e+01 : f32
    %313 = vector.broadcast %cst_123 : f32 to vector<9x1xf32>
    %314 = arith.divf %312, %313 : vector<9x1xf32>
    %315 = vector.broadcast %307 : vector<9x1xf32> to vector<9x32xf32>
    %316 = arith.subf %303, %315 : vector<9x32xf32>
    %cst_124 = arith.constant 9.99999974E-6 : f32
    %317 = vector.broadcast %cst_124 : f32 to vector<9x1xf32>
    %318 = arith.addf %314, %317 : vector<9x1xf32>
    %319 = math.rsqrt %318 : vector<9x1xf32>
    %320 = vector.broadcast %319 : vector<9x1xf32> to vector<9x32xf32>
    %321 = arith.mulf %316, %320 : vector<9x32xf32>
    %c0_125 = arith.constant 0 : index
    %c0_126 = arith.constant 0 : index
    %c0_127 = arith.constant 0 : index
    %322 = vector.load %arg24[%c0_125, %c0_126, %c0_127] : memref<1x1x32xf32, #tpu.memory_space<vmem>>, vector<1x1x32xf32>
    %323 = vector.shape_cast %322 : vector<1x1x32xf32> to vector<1x32xf32>
    %324 = vector.broadcast %323 : vector<1x32xf32> to vector<9x32xf32>
    %325 = arith.mulf %321, %324 : vector<9x32xf32>
    %c0_128 = arith.constant 0 : index
    %c0_129 = arith.constant 0 : index
    %c0_130 = arith.constant 0 : index
    %326 = vector.load %arg25[%c0_128, %c0_129, %c0_130] : memref<1x1x32xf32, #tpu.memory_space<vmem>>, vector<1x1x32xf32>
    %327 = vector.shape_cast %326 : vector<1x1x32xf32> to vector<1x32xf32>
    %328 = vector.broadcast %327 : vector<1x32xf32> to vector<9x32xf32>
    %329 = arith.addf %325, %328 : vector<9x32xf32>
    %c0_131 = arith.constant 0 : index
    %c0_132 = arith.constant 0 : index
    %330 = vector.load %arg32[%c0_131, %c0_132] : memref<9x32xf32, #tpu.memory_space<vmem>>, vector<9x32xf32>
    tpu.vector_store %arg32[%c0_131, %c0_132], %329 {strides = array<i32>} : memref<9x32xf32, #tpu.memory_space<vmem>>, vector<9x32xf32>,
    %c1_i32 = arith.constant 1 : i32
    %331 = arith.cmpi eq, %arg1, %c1_i32 : i32
    %332 = arith.extui %331 : i1 to i32
    %c0_i32_133 = arith.constant 0 : i32
    %333 = arith.cmpi ne, %332, %c0_i32_133 : i32
    scf.if %333 {
      %c0_134 = arith.constant 0 : index
      %c0_135 = arith.constant 0 : index
      %c0_136 = arith.constant 0 : index
      %334 = vector.load %arg30[%c0_134, %c0_135, %c0_136] : memref<1x9x32xf32, #tpu.memory_space<vmem>>, vector<1x9x32xf32>
      %335 = vector.shape_cast %334 : vector<1x9x32xf32> to vector<9x32xf32>
      %336 = vector.shape_cast %329 : vector<9x32xf32> to vector<1x9x32xf32>
      tpu.vector_store %arg30[%c0_134, %c0_135, %c0_136], %336 {strides = array<i32>} : memref<1x9x32xf32, #tpu.memory_space<vmem>>, vector<1x9x32xf32>,
      %337 = vector.extract_strided_slice %329 {offsets = [8, 0], sizes = [1, 32], strides = [1, 1]} : vector<9x32xf32> to vector<1x32xf32>
      %338 = arith.truncf %337 : vector<1x32xf32> to vector<1x32xbf16>
      %c0_137 = arith.constant 0 : index
      %c0_138 = arith.constant 0 : index
      %339 = vector.load %arg26[%c0_137, %c0_138] : memref<32x32xbf16, #tpu.memory_space<vmem>>, vector<32x32xbf16>
      %cst_139 = arith.constant dense<0.000000e+00> : vector<1x32xf32>
      %340 = tpu.matmul %338, %339, %cst_139 {dimension_numbers = #tpu.dot_dimension_numbers<[1], [0], [0], [1], [0, 0, 1, 1], [], []>} : vector<1x32xbf16>, vector<32x32xbf16>, vector<1x32xf32> -> vector<1x32xf32>
      %c0_140 = arith.constant 0 : index
      %c0_141 = arith.constant 0 : index
      %341 = vector.load %arg27[%c0_140, %c0_141] : memref<1x32xf32, #tpu.memory_space<vmem>>, vector<1x32xf32>
      %342 = arith.addf %340, %341 : vector<1x32xf32>
      %343 = arith.truncf %342 : vector<1x32xf32> to vector<1x32xbf16>
      %c0_142 = arith.constant 0 : index
      %c0_143 = arith.constant 0 : index
      %344 = vector.load %arg28[%c0_142, %c0_143] : memref<32x96xbf16, #tpu.memory_space<vmem>>, vector<32x96xbf16>
      %cst_144 = arith.constant dense<0.000000e+00> : vector<1x96xf32>
      %345 = tpu.matmul %343, %344, %cst_144 {dimension_numbers = #tpu.dot_dimension_numbers<[1], [0], [0], [1], [0, 0, 1, 1], [], []>} : vector<1x32xbf16>, vector<32x96xbf16>, vector<1x96xf32> -> vector<1x96xf32>
      %c0_145 = arith.constant 0 : index
      %c0_146 = arith.constant 0 : index
      %346 = vector.load %arg29[%c0_145, %c0_146] : memref<1x96xf32, #tpu.memory_space<vmem>>, vector<1x96xf32>
      %347 = arith.addf %345, %346 : vector<1x96xf32>
      %c0_147 = arith.constant 0 : index
      %c0_148 = arith.constant 0 : index
      %c0_149 = arith.constant 0 : index
      %348 = vector.load %arg31[%c0_147, %c0_148, %c0_149] : memref<1x1x96xf32, #tpu.memory_space<vmem>>, vector<1x1x96xf32>
      %349 = vector.shape_cast %348 : vector<1x1x96xf32> to vector<1x96xf32>
      %350 = vector.shape_cast %347 : vector<1x96xf32> to vector<1x1x96xf32>
      tpu.vector_store %arg31[%c0_147, %c0_148, %c0_149], %350 {strides = array<i32>} : memref<1x1x96xf32, #tpu.memory_space<vmem>>, vector<1x1x96xf32>,
    } else {
    }
    return
  }
  func.func @transform_0(%arg0: i32, %arg1: i32) -> (i32, i32, i32) {
    %c0_i32 = arith.constant 0 : i32
    %c0_i32_0 = arith.constant 0 : i32
    %c0_i32_1 = arith.constant 0 : i32
    return %arg0, %c0_i32, %c0_i32_0 : i32, i32, i32
  }
  func.func @transform_1(%arg0: i32, %arg1: i32) -> (i32, i32, i32) {
    %c0_i32 = arith.constant 0 : i32
    %c0_i32_0 = arith.constant 0 : i32
    %c0_i32_1 = arith.constant 0 : i32
    return %arg0, %c0_i32, %c0_i32_0 : i32, i32, i32
  }
  func.func @transform_2(%arg0: i32, %arg1: i32) -> (i32, i32, i32) {
    %c0_i32 = arith.constant 0 : i32
    %c0_i32_0 = arith.constant 0 : i32
    %c0_i32_1 = arith.constant 0 : i32
    return %arg0, %c0_i32, %c0_i32_0 : i32, i32, i32
  }
  func.func @transform_3(%arg0: i32, %arg1: i32) -> (i32, i32, i32) {
    %c0_i32 = arith.constant 0 : i32
    %c0_i32_0 = arith.constant 0 : i32
    %c0_i32_1 = arith.constant 0 : i32
    return %arg0, %c0_i32, %c0_i32_0 : i32, i32, i32
  }
  func.func @transform_4(%arg0: i32, %arg1: i32) -> (i32, i32, i32) {
    %c0_i32 = arith.constant 0 : i32
    %c0_i32_0 = arith.constant 0 : i32
    %c0_i32_1 = arith.constant 0 : i32
    return %arg1, %c0_i32, %c0_i32_0 : i32, i32, i32
  }
  func.func @transform_5(%arg0: i32, %arg1: i32) -> (i32, i32, i32) {
    %c0_i32 = arith.constant 0 : i32
    %c0_i32_0 = arith.constant 0 : i32
    %c0_i32_1 = arith.constant 0 : i32
    return %arg1, %c0_i32, %c0_i32_0 : i32, i32, i32
  }
  func.func @transform_6(%arg0: i32, %arg1: i32) -> (i32, i32, i32) {
    %c0_i32 = arith.constant 0 : i32
    %c0_i32_0 = arith.constant 0 : i32
    %c0_i32_1 = arith.constant 0 : i32
    return %arg1, %c0_i32, %c0_i32_0 : i32, i32, i32
  }
  func.func @transform_7(%arg0: i32, %arg1: i32) -> (i32, i32, i32) {
    %c0_i32 = arith.constant 0 : i32
    %c0_i32_0 = arith.constant 0 : i32
    %c0_i32_1 = arith.constant 0 : i32
    return %arg1, %c0_i32, %c0_i32_0 : i32, i32, i32
  }
  func.func @transform_8(%arg0: i32, %arg1: i32) -> (i32, i32, i32) {
    %c0_i32 = arith.constant 0 : i32
    %c0_i32_0 = arith.constant 0 : i32
    %c0_i32_1 = arith.constant 0 : i32
    return %arg1, %c0_i32, %c0_i32_0 : i32, i32, i32
  }
  func.func @transform_9(%arg0: i32, %arg1: i32) -> (i32, i32, i32) {
    %c0_i32 = arith.constant 0 : i32
    %c0_i32_0 = arith.constant 0 : i32
    %c0_i32_1 = arith.constant 0 : i32
    return %arg1, %c0_i32, %c0_i32_0 : i32, i32, i32
  }
  func.func @transform_10(%arg0: i32, %arg1: i32) -> (i32, i32, i32) {
    %c0_i32 = arith.constant 0 : i32
    %c0_i32_0 = arith.constant 0 : i32
    %c0_i32_1 = arith.constant 0 : i32
    return %arg1, %c0_i32, %c0_i32_0 : i32, i32, i32
  }
  func.func @transform_11(%arg0: i32, %arg1: i32) -> (i32, i32, i32) {
    %c0_i32 = arith.constant 0 : i32
    %c0_i32_0 = arith.constant 0 : i32
    %c0_i32_1 = arith.constant 0 : i32
    return %arg1, %c0_i32, %c0_i32_0 : i32, i32, i32
  }
  func.func @transform_12(%arg0: i32, %arg1: i32) -> (i32, i32, i32) {
    %c0_i32 = arith.constant 0 : i32
    %c0_i32_0 = arith.constant 0 : i32
    %c0_i32_1 = arith.constant 0 : i32
    return %arg1, %c0_i32, %c0_i32_0 : i32, i32, i32
  }
  func.func @transform_13(%arg0: i32, %arg1: i32) -> (i32, i32, i32) {
    %c0_i32 = arith.constant 0 : i32
    %c0_i32_0 = arith.constant 0 : i32
    %c0_i32_1 = arith.constant 0 : i32
    return %arg1, %c0_i32, %c0_i32_0 : i32, i32, i32
  }
  func.func @transform_14(%arg0: i32, %arg1: i32) -> (i32, i32, i32) {
    %c0_i32 = arith.constant 0 : i32
    %c0_i32_0 = arith.constant 0 : i32
    %c0_i32_1 = arith.constant 0 : i32
    return %arg1, %c0_i32, %c0_i32_0 : i32, i32, i32
  }
  func.func @transform_15(%arg0: i32, %arg1: i32) -> (i32, i32, i32) {
    %c0_i32 = arith.constant 0 : i32
    %c0_i32_0 = arith.constant 0 : i32
    %c0_i32_1 = arith.constant 0 : i32
    return %arg1, %c0_i32, %c0_i32_0 : i32, i32, i32
  }
  func.func @transform_16(%arg0: i32, %arg1: i32) -> (i32, i32, i32) {
    %c0_i32 = arith.constant 0 : i32
    %c0_i32_0 = arith.constant 0 : i32
    %c0_i32_1 = arith.constant 0 : i32
    return %arg1, %c0_i32, %c0_i32_0 : i32, i32, i32
  }
  func.func @transform_17(%arg0: i32, %arg1: i32) -> (i32, i32, i32) {
    %c0_i32 = arith.constant 0 : i32
    %c0_i32_0 = arith.constant 0 : i32
    %c0_i32_1 = arith.constant 0 : i32
    return %arg1, %c0_i32, %c0_i32_0 : i32, i32, i32
  }
  func.func @transform_18(%arg0: i32, %arg1: i32) -> (i32, i32, i32) {
    %c0_i32 = arith.constant 0 : i32
    %c0_i32_0 = arith.constant 0 : i32
    %c0_i32_1 = arith.constant 0 : i32
    return %arg1, %c0_i32, %c0_i32_0 : i32, i32, i32
  }
  func.func @transform_19(%arg0: i32, %arg1: i32) -> (i32, i32, i32) {
    %c0_i32 = arith.constant 0 : i32
    %c0_i32_0 = arith.constant 0 : i32
    %c0_i32_1 = arith.constant 0 : i32
    return %arg1, %c0_i32, %c0_i32_0 : i32, i32, i32
  }
  func.func @transform_20(%arg0: i32, %arg1: i32) -> (i32, i32, i32) {
    %c0_i32 = arith.constant 0 : i32
    %c0_i32_0 = arith.constant 0 : i32
    %c0_i32_1 = arith.constant 0 : i32
    return %arg1, %c0_i32, %c0_i32_0 : i32, i32, i32
  }
  func.func @transform_21(%arg0: i32, %arg1: i32) -> (i32, i32, i32) {
    %c0_i32 = arith.constant 0 : i32
    %c0_i32_0 = arith.constant 0 : i32
    %c0_i32_1 = arith.constant 0 : i32
    return %arg1, %c0_i32, %c0_i32_0 : i32, i32, i32
  }
  func.func @transform_22(%arg0: i32, %arg1: i32) -> (i32, i32, i32) {
    %c0_i32 = arith.constant 0 : i32
    %c0_i32_0 = arith.constant 0 : i32
    %c0_i32_1 = arith.constant 0 : i32
    return %arg1, %c0_i32, %c0_i32_0 : i32, i32, i32
  }
  func.func @transform_23(%arg0: i32, %arg1: i32) -> (i32, i32, i32) {
    %c0_i32 = arith.constant 0 : i32
    %c0_i32_0 = arith.constant 0 : i32
    %c0_i32_1 = arith.constant 0 : i32
    return %arg1, %c0_i32, %c0_i32_0 : i32, i32, i32
  }
  func.func @transform_24(%arg0: i32, %arg1: i32) -> (i32, i32) {
    %c0_i32 = arith.constant 0 : i32
    %c0_i32_0 = arith.constant 0 : i32
    %c0_i32_1 = arith.constant 0 : i32
    return %c0_i32, %c0_i32_0 : i32, i32
  }
  func.func @transform_25(%arg0: i32, %arg1: i32) -> (i32, i32) {
    %c0_i32 = arith.constant 0 : i32
    %c0_i32_0 = arith.constant 0 : i32
    %c0_i32_1 = arith.constant 0 : i32
    return %c0_i32, %c0_i32_0 : i32, i32
  }
  func.func @transform_26(%arg0: i32, %arg1: i32) -> (i32, i32) {
    %c0_i32 = arith.constant 0 : i32
    %c0_i32_0 = arith.constant 0 : i32
    %c0_i32_1 = arith.constant 0 : i32
    return %c0_i32, %c0_i32_0 : i32, i32
  }
  func.func @transform_27(%arg0: i32, %arg1: i32) -> (i32, i32) {
    %c0_i32 = arith.constant 0 : i32
    %c0_i32_0 = arith.constant 0 : i32
    %c0_i32_1 = arith.constant 0 : i32
    return %c0_i32, %c0_i32_0 : i32, i32
  }
  func.func @transform_28(%arg0: i32, %arg1: i32) -> (i32, i32, i32) {
    %c0_i32 = arith.constant 0 : i32
    %c0_i32_0 = arith.constant 0 : i32
    %c0_i32_1 = arith.constant 0 : i32
    return %arg0, %c0_i32, %c0_i32_0 : i32, i32, i32
  }
  func.func @transform_29(%arg0: i32, %arg1: i32) -> (i32, i32, i32) {
    %c0_i32 = arith.constant 0 : i32
    %c0_i32_0 = arith.constant 0 : i32
    %c0_i32_1 = arith.constant 0 : i32
    return %arg0, %c0_i32, %c0_i32_0 : i32, i32, i32
  }
}

</mosaic_0001>

<llo_original>
// kernel: video_encoder_forward.1
$region0: #{video_encoder_forward.1}
  #allocation0 [shape = 'u32[]', space=smem, size = 0x4, offset = 0x4, fixed_abs, tag = 'smem constant byte address 0x4 - core index']
  #allocation1 [shape = 'u32[72,128]{1,0:T(1,128)}', space=vmem, size = 0x9000, scoped, tag = 'internal scratch']
  #allocation2 [shape = 'f32[9,32]{1,0:T(8,128)}', space=vmem, size = 0x2000, scoped, tag = 'scratch operand']
  %s0 = inlined_call_operand.smem [shape: u32[30], index: -1, kind: input, shape index: {}]
  %s1 = sld [smem:[%s0]]
  %s2 = scalar_lea.smem %s0, 1
  %s3 = sld [smem:[%s2]]
  %s4 = scalar_lea.smem %s0, 2
  %s5 = sld [smem:[%s4]]
  %s6 = scalar_lea.smem %s0, 3
  %s7 = sld [smem:[%s6]]
  %s8 = scalar_lea.smem %s0, 4
  %s9 = sld [smem:[%s8]]
  %s10 = scalar_lea.smem %s0, 5
  %s11 = sld [smem:[%s10]]
  %s12 = scalar_lea.smem %s0, 6
  %s13 = sld [smem:[%s12]]
  %s14 = scalar_lea.smem %s0, 7
  %s15 = sld [smem:[%s14]]
  %s16 = scalar_lea.smem %s0, 8
  %s17 = sld [smem:[%s16]]
  %s18 = scalar_lea.smem %s0, 9
  %s19 = sld [smem:[%s18]]
  %s20 = scalar_lea.smem %s0, 10
  %s21 = sld [smem:[%s20]]
  %s22 = scalar_lea.smem %s0, 11
  %s23 = sld [smem:[%s22]]
  %s24 = scalar_lea.smem %s0, 12
  %s25 = sld [smem:[%s24]]
  %s26 = scalar_lea.smem %s0, 13
  %s27 = sld [smem:[%s26]]
  %s28 = scalar_lea.smem %s0, 14
  %s29 = sld [smem:[%s28]]
  %s30 = scalar_lea.smem %s0, 15
  %s31 = sld [smem:[%s30]]
  %s32 = scalar_lea.smem %s0, 16
  %s33 = sld [smem:[%s32]]
  %s34 = scalar_lea.smem %s0, 17
  %s35 = sld [smem:[%s34]]
  %s36 = scalar_lea.smem %s0, 18
  %s37 = sld [smem:[%s36]]
  %s38 = scalar_lea.smem %s0, 19
  %s39 = sld [smem:[%s38]]
  %s40 = scalar_lea.smem %s0, 20
  %s41 = sld [smem:[%s40]]
  %s42 = scalar_lea.smem %s0, 21
  %s43 = sld [smem:[%s42]]
  %s44 = scalar_lea.smem %s0, 22
  %s45 = sld [smem:[%s44]]
  %s46 = scalar_lea.smem %s0, 23
  %s47 = sld [smem:[%s46]]
  %s48 = scalar_lea.smem %s0, 24
  %s49 = sld [smem:[%s48]]
  %s50 = scalar_lea.smem %s0, 25
  %s51 = sld [smem:[%s50]]
  %s52 = scalar_lea.smem %s0, 26
  %s53 = sld [smem:[%s52]]
  %s54 = scalar_lea.smem %s0, 27
  %s55 = sld [smem:[%s54]]
  %s56 = scalar_lea.smem %s0, 28
  %s57 = sld [smem:[%s56]]
  %s58 = scalar_lea.smem %s0, 29
  %s59 = sld [smem:[%s58]]
  %60 = xla_tuple %s57, %s59
  %s61 = sld [smem:[#allocation0]]
  $region161: #{video_encoder_forward.1} parent=0
    _
  %s63 = ssub.s32 1, %s61
  %s64 = scalar_select 0, %s63, %s61
  loop: start=0, step=1, limit=6
  $region2: #{video_encoder_forward.1} parent=0 // loop_pre_header
    _
  $region3: #{video_encoder_forward.1} parent=0 // loop_header
    %s66 = sphi 0, %s70
    %p67 = scmp.ge.s32.totalorder %s66, 6
    %s73 = sphi 0, %s85
    %s74 = sphi 0, %s81
    %s75 = sphi 0, %s73
    %s76 = sphi 0, %s74
    %s77 = sphi 0, %s75
    %s78 = sphi 0, %s76
    %s88 = sphi 0, %s90
    %s91 = sphi 0, %s88
    %s92 = sphi 0, %s91
    %s108 = sphi 0, %s92
    %s114 = sphi 0, %s116
    %s117 = sphi 0, %s114
    %s118 = sphi 0, %s117
    %s134 = sphi 0, %s118
    %s140 = sphi 0, %s142
    %s143 = sphi 0, %s140
    %s144 = sphi 0, %s143
    %s160 = sphi 0, %s144
    %s166 = sphi 0, %s168
    %s169 = sphi 0, %s166
    %s170 = sphi 0, %s169
    %s186 = sphi 0, %s170
    %s192 = sphi 0, %s194
    %s195 = sphi 0, %s192
    %s196 = sphi 0, %s195
    %s212 = sphi 0, %s196
    %s218 = sphi 0, %s220
    %s221 = sphi 0, %s218
    %s222 = sphi 0, %s221
    %s238 = sphi 0, %s222
    %s244 = sphi 0, %s246
    %s247 = sphi 0, %s244
    %s248 = sphi 0, %s247
    %s264 = sphi 0, %s248
    %s270 = sphi 0, %s272
    %s273 = sphi 0, %s270
    %s274 = sphi 0, %s273
    %s290 = sphi 0, %s274
    %s296 = sphi 0, %s298
    %s299 = sphi 0, %s296
    %s300 = sphi 0, %s299
    %s316 = sphi 0, %s300
    %s322 = sphi 0, %s324
    %s325 = sphi 0, %s322
    %s326 = sphi 0, %s325
    %s342 = sphi 0, %s326
    %s348 = sphi 0, %s350
    %s351 = sphi 0, %s348
    %s352 = sphi 0, %s351
    %s368 = sphi 0, %s352
    %s374 = sphi 0, %s376
    %s377 = sphi 0, %s374
    %s378 = sphi 0, %s377
    %s394 = sphi 0, %s378
    %s400 = sphi 0, %s402
    %s403 = sphi 0, %s400
    %s404 = sphi 0, %s403
    %s420 = sphi 0, %s404
    %s426 = sphi 0, %s428
    %s429 = sphi 0, %s426
    %s430 = sphi 0, %s429
    %s446 = sphi 0, %s430
    %s452 = sphi 0, %s454
    %s455 = sphi 0, %s452
    %s456 = sphi 0, %s455
    %s472 = sphi 0, %s456
    %s478 = sphi 0, %s480
    %s481 = sphi 0, %s478
    %s482 = sphi 0, %s481
    %s498 = sphi 0, %s482
    %s504 = sphi 0, %s506
    %s507 = sphi 0, %s504
    %s508 = sphi 0, %s507
    %s524 = sphi 0, %s508
    %s530 = sphi 0, %s532
    %s533 = sphi 0, %s530
    %s534 = sphi 0, %s533
    %s550 = sphi 0, %s534
    %s556 = sphi 0, %s558
    %s559 = sphi 0, %s556
    %s560 = sphi 0, %s559
    %s576 = sphi 0, %s560
    %s582 = sphi 0, %s584
    %s585 = sphi 0, %s582
    %s586 = sphi 0, %s585
    %s602 = sphi 0, %s586
    %s608 = sphi 0, %s610
    %s611 = sphi 0, %s608
    %s612 = sphi 0, %s611
    %s628 = sphi 0, %s612
    %s634 = sphi 0, %s636
    %s637 = sphi 0, %s634
    %s638 = sphi 0, %s637
    %s654 = sphi 0, %s638
    %s660 = sphi 0, %s662
    %s663 = sphi 0, %s660
    %s664 = sphi 0, %s663
    %s680 = sphi 0, %s664
    %s686 = sphi 0, %s688
    %s689 = sphi 0, %s686
    %s690 = sphi 0, %s689
    %s706 = sphi 0, %s690
    %s710 = sphi 0, %s710
    %s712 = sphi 0, %s710
    %s713 = sphi 0, %s712
    %s727 = sphi 0, %s713
    %s731 = sphi 0, %s731
    %s733 = sphi 0, %s731
    %s734 = sphi 0, %s733
    %s748 = sphi 0, %s734
    %s752 = sphi 0, %s752
    %s754 = sphi 0, %s752
    %s755 = sphi 0, %s754
    %s769 = sphi 0, %s755
    %s773 = sphi 0, %s773
    %s775 = sphi 0, %s773
    %s776 = sphi 0, %s775
    %s790 = sphi 0, %s776
    %s796 = sphi 0, %s798
    %s799 = sphi 0, %s796
    %s800 = sphi 0, %s799
    %s816 = sphi 0, %s800
    %s822 = sphi 0, %s824
    %s825 = sphi 0, %s822
    %s826 = sphi 0, %s825
    %s842 = sphi 0, %s826
  $region4: #{video_encoder_forward.1} parent=0 // loop_header_branch
    %69 = sbr.rel (%p67) target = $region8
  $region5: #{video_encoder_forward.1} parent=0 // loop_body
    %s71 = ssub.s32 %s66, 1
    %s72 = ssub.s32 %s66, 2
    %s79 = sadd.s32 1, %s74
    %p80 = scmp.ge.s32.totalorder %s79, 2
    %s81 = scalar_select %p80, 0, %s79
    %s82 = sadd.s32 1, %s73
    %s83 = scalar_select %p80, %s82, %s73
    %p84 = scmp.ge.s32.totalorder %s83, 2
    %s85 = scalar_select %p84, 0, %s83
    %s86 = ssub.s32 %s73, %s85
    %p87 = scmp.eq.s32.totalorder %s86, 0
    %s89 = sadd.s32 %s88, 1
    %s90 = scalar_select %p87, %s88, %s89
    %p93 = pneg %p87
    %p94 = scmp.eq.s32.totalorder %s66, 3
    %p95 = por %p93, %p94
    %p96 = scmp.ne.s32.totalorder %s88, %s91
    %p97 = scmp.eq.s32.totalorder %s66, 0
    %p98 = por %p96, %p97
    %p99 = scmp.ne.s32.totalorder %s88, %s91
    %p100 = scmp.eq.s32.totalorder %s71, 3
    %p101 = por %p99, %p100
    %p102 = scmp.ne.s32.totalorder %s91, %s92
    %p103 = scmp.eq.s32.totalorder %s71, 0
    %p104 = por %p102, %p103
    %p105 = scmp.ne.s32.totalorder %s91, %s92
    %p106 = scmp.eq.s32.totalorder %s72, 3
    %p107 = por %p105, %p106
    %p109 = scmp.ne.s32.totalorder %s92, %s108
    %p110 = scmp.eq.s32.totalorder %s72, 0
    %p111 = por %p109, %p110
    %s112 = ssub.s32 %s73, %s85
    %p113 = scmp.eq.s32.totalorder %s112, 0
    %s115 = sadd.s32 %s114, 1
    %s116 = scalar_select %p113, %s114, %s115
    %p119 = pneg %p113
    %p120 = scmp.eq.s32.totalorder %s66, 3
    %p121 = por %p119, %p120
    %p122 = scmp.ne.s32.totalorder %s114, %s117
    %p123 = scmp.eq.s32.totalorder %s66, 0
    %p124 = por %p122, %p123
    %p125 = scmp.ne.s32.totalorder %s114, %s117
    %p126 = scmp.eq.s32.totalorder %s71, 3
    %p127 = por %p125, %p126
    %p128 = scmp.ne.s32.totalorder %s117, %s118
    %p129 = scmp.eq.s32.totalorder %s71, 0
    %p130 = por %p128, %p129
    %p131 = scmp.ne.s32.totalorder %s117, %s118
    %p132 = scmp.eq.s32.totalorder %s72, 3
    %p133 = por %p131, %p132
    %p135 = scmp.ne.s32.totalorder %s118, %s134
    %p136 = scmp.eq.s32.totalorder %s72, 0
    %p137 = por %p135, %p136
    %s138 = ssub.s32 %s73, %s85
    %p139 = scmp.eq.s32.totalorder %s138, 0
    %s141 = sadd.s32 %s140, 1
    %s142 = scalar_select %p139, %s140, %s141
    %p145 = pneg %p139
    %p146 = scmp.eq.s32.totalorder %s66, 3
    %p147 = por %p145, %p146
    %p148 = scmp.ne.s32.totalorder %s140, %s143
    %p149 = scmp.eq.s32.totalorder %s66, 0
    %p150 = por %p148, %p149
    %p151 = scmp.ne.s32.totalorder %s140, %s143
    %p152 = scmp.eq.s32.totalorder %s71, 3
    %p153 = por %p151, %p152
    %p154 = scmp.ne.s32.totalorder %s143, %s144
    %p155 = scmp.eq.s32.totalorder %s71, 0
    %p156 = por %p154, %p155
    %p157 = scmp.ne.s32.totalorder %s143, %s144
    %p158 = scmp.eq.s32.totalorder %s72, 3
    %p159 = por %p157, %p158
    %p161 = scmp.ne.s32.totalorder %s144, %s160
    %p162 = scmp.eq.s32.totalorder %s72, 0
    %p163 = por %p161, %p162
    %s164 = ssub.s32 %s73, %s85
    %p165 = scmp.eq.s32.totalorder %s164, 0
    %s167 = sadd.s32 %s166, 1
    %s168 = scalar_select %p165, %s166, %s167
    %p171 = pneg %p165
    %p172 = scmp.eq.s32.totalorder %s66, 3
    %p173 = por %p171, %p172
    %p174 = scmp.ne.s32.totalorder %s166, %s169
    %p175 = scmp.eq.s32.totalorder %s66, 0
    %p176 = por %p174, %p175
    %p177 = scmp.ne.s32.totalorder %s166, %s169
    %p178 = scmp.eq.s32.totalorder %s71, 3
    %p179 = por %p177, %p178
    %p180 = scmp.ne.s32.totalorder %s169, %s170
    %p181 = scmp.eq.s32.totalorder %s71, 0
    %p182 = por %p180, %p181
    %p183 = scmp.ne.s32.totalorder %s169, %s170
    %p184 = scmp.eq.s32.totalorder %s72, 3
    %p185 = por %p183, %p184
    %p187 = scmp.ne.s32.totalorder %s170, %s186
    %p188 = scmp.eq.s32.totalorder %s72, 0
    %p189 = por %p187, %p188
    %s190 = ssub.s32 %s74, %s81
    %p191 = scmp.eq.s32.totalorder %s190, 0
    %s193 = sadd.s32 %s192, 1
    %s194 = scalar_select %p191, %s192, %s193
    %p197 = pneg %p191
    %p198 = scmp.eq.s32.totalorder %s66, 3
    %p199 = por %p197, %p198
    %p200 = scmp.ne.s32.totalorder %s192, %s195
    %p201 = scmp.eq.s32.totalorder %s66, 0
    %p202 = por %p200, %p201
    %p203 = scmp.ne.s32.totalorder %s192, %s195
    %p204 = scmp.eq.s32.totalorder %s71, 3
    %p205 = por %p203, %p204
    %p206 = scmp.ne.s32.totalorder %s195, %s196
    %p207 = scmp.eq.s32.totalorder %s71, 0
    %p208 = por %p206, %p207
    %p209 = scmp.ne.s32.totalorder %s195, %s196
    %p210 = scmp.eq.s32.totalorder %s72, 3
    %p211 = por %p209, %p210
    %p213 = scmp.ne.s32.totalorder %s196, %s212
    %p214 = scmp.eq.s32.totalorder %s72, 0
    %p215 = por %p213, %p214
    %s216 = ssub.s32 %s74, %s81
    %p217 = scmp.eq.s32.totalorder %s216, 0
    %s219 = sadd.s32 %s218, 1
    %s220 = scalar_select %p217, %s218, %s219
    %p223 = pneg %p217
    %p224 = scmp.eq.s32.totalorder %s66, 3
    %p225 = por %p223, %p224
    %p226 = scmp.ne.s32.totalorder %s218, %s221
    %p227 = scmp.eq.s32.totalorder %s66, 0
    %p228 = por %p226, %p227
    %p229 = scmp.ne.s32.totalorder %s218, %s221
    %p230 = scmp.eq.s32.totalorder %s71, 3
    %p231 = por %p229, %p230
    %p232 = scmp.ne.s32.totalorder %s221, %s222
    %p233 = scmp.eq.s32.totalorder %s71, 0
    %p234 = por %p232, %p233
    %p235 = scmp.ne.s32.totalorder %s221, %s222
    %p236 = scmp.eq.s32.totalorder %s72, 3
    %p237 = por %p235, %p236
    %p239 = scmp.ne.s32.totalorder %s222, %s238
    %p240 = scmp.eq.s32.totalorder %s72, 0
    %p241 = por %p239, %p240
    %s242 = ssub.s32 %s74, %s81
    %p243 = scmp.eq.s32.totalorder %s242, 0
    %s245 = sadd.s32 %s244, 1
    %s246 = scalar_select %p243, %s244, %s245
    %p249 = pneg %p243
    %p250 = scmp.eq.s32.totalorder %s66, 3
    %p251 = por %p249, %p250
    %p252 = scmp.ne.s32.totalorder %s244, %s247
    %p253 = scmp.eq.s32.totalorder %s66, 0
    %p254 = por %p252, %p253
    %p255 = scmp.ne.s32.totalorder %s244, %s247
    %p256 = scmp.eq.s32.totalorder %s71, 3
    %p257 = por %p255, %p256
    %p258 = scmp.ne.s32.totalorder %s247, %s248
    %p259 = scmp.eq.s32.totalorder %s71, 0
    %p260 = por %p258, %p259
    %p261 = scmp.ne.s32.totalorder %s247, %s248
    %p262 = scmp.eq.s32.totalorder %s72, 3
    %p263 = por %p261, %p262
    %p265 = scmp.ne.s32.totalorder %s248, %s264
    %p266 = scmp.eq.s32.totalorder %s72, 0
    %p267 = por %p265, %p266
    %s268 = ssub.s32 %s74, %s81
    %p269 = scmp.eq.s32.totalorder %s268, 0
    %s271 = sadd.s32 %s270, 1
    %s272 = scalar_select %p269, %s270, %s271
    %p275 = pneg %p269
    %p276 = scmp.eq.s32.totalorder %s66, 3
    %p277 = por %p275, %p276
    %p278 = scmp.ne.s32.totalorder %s270, %s273
    %p279 = scmp.eq.s32.totalorder %s66, 0
    %p280 = por %p278, %p279
    %p281 = scmp.ne.s32.totalorder %s270, %s273
    %p282 = scmp.eq.s32.totalorder %s71, 3
    %p283 = por %p281, %p282
    %p284 = scmp.ne.s32.totalorder %s273, %s274
    %p285 = scmp.eq.s32.totalorder %s71, 0
    %p286 = por %p284, %p285
    %p287 = scmp.ne.s32.totalorder %s273, %s274
    %p288 = scmp.eq.s32.totalorder %s72, 3
    %p289 = por %p287, %p288
    %p291 = scmp.ne.s32.totalorder %s274, %s290
    %p292 = scmp.eq.s32.totalorder %s72, 0
    %p293 = por %p291, %p292
    %s294 = ssub.s32 %s74, %s81
    %p295 = scmp.eq.s32.totalorder %s294, 0
    %s297 = sadd.s32 %s296, 1
    %s298 = scalar_select %p295, %s296, %s297
    %p301 = pneg %p295
    %p302 = scmp.eq.s32.totalorder %s66, 3
    %p303 = por %p301, %p302
    %p304 = scmp.ne.s32.totalorder %s296, %s299
    %p305 = scmp.eq.s32.totalorder %s66, 0
    %p306 = por %p304, %p305
    %p307 = scmp.ne.s32.totalorder %s296, %s299
    %p308 = scmp.eq.s32.totalorder %s71, 3
    %p309 = por %p307, %p308
    %p310 = scmp.ne.s32.totalorder %s299, %s300
    %p311 = scmp.eq.s32.totalorder %s71, 0
    %p312 = por %p310, %p311
    %p313 = scmp.ne.s32.totalorder %s299, %s300
    %p314 = scmp.eq.s32.totalorder %s72, 3
    %p315 = por %p313, %p314
    %p317 = scmp.ne.s32.totalorder %s300, %s316
    %p318 = scmp.eq.s32.totalorder %s72, 0
    %p319 = por %p317, %p318
    %s320 = ssub.s32 %s74, %s81
    %p321 = scmp.eq.s32.totalorder %s320, 0
    %s323 = sadd.s32 %s322, 1
    %s324 = scalar_select %p321, %s322, %s323
    %p327 = pneg %p321
    %p328 = scmp.eq.s32.totalorder %s66, 3
    %p329 = por %p327, %p328
    %p330 = scmp.ne.s32.totalorder %s322, %s325
    %p331 = scmp.eq.s32.totalorder %s66, 0
    %p332 = por %p330, %p331
    %p333 = scmp.ne.s32.totalorder %s322, %s325
    %p334 = scmp.eq.s32.totalorder %s71, 3
    %p335 = por %p333, %p334
    %p336 = scmp.ne.s32.totalorder %s325, %s326
    %p337 = scmp.eq.s32.totalorder %s71, 0
    %p338 = por %p336, %p337
    %p339 = scmp.ne.s32.totalorder %s325, %s326
    %p340 = scmp.eq.s32.totalorder %s72, 3
    %p341 = por %p339, %p340
    %p343 = scmp.ne.s32.totalorder %s326, %s342
    %p344 = scmp.eq.s32.totalorder %s72, 0
    %p345 = por %p343, %p344
    %s346 = ssub.s32 %s74, %s81
    %p347 = scmp.eq.s32.totalorder %s346, 0
    %s349 = sadd.s32 %s348, 1
    %s350 = scalar_select %p347, %s348, %s349
    %p353 = pneg %p347
    %p354 = scmp.eq.s32.totalorder %s66, 3
    %p355 = por %p353, %p354
    %p356 = scmp.ne.s32.totalorder %s348, %s351
    %p357 = scmp.eq.s32.totalorder %s66, 0
    %p358 = por %p356, %p357
    %p359 = scmp.ne.s32.totalorder %s348, %s351
    %p360 = scmp.eq.s32.totalorder %s71, 3
    %p361 = por %p359, %p360
    %p362 = scmp.ne.s32.totalorder %s351, %s352
    %p363 = scmp.eq.s32.totalorder %s71, 0
    %p364 = por %p362, %p363
    %p365 = scmp.ne.s32.totalorder %s351, %s352
    %p366 = scmp.eq.s32.totalorder %s72, 3
    %p367 = por %p365, %p366
    %p369 = scmp.ne.s32.totalorder %s352, %s368
    %p370 = scmp.eq.s32.totalorder %s72, 0
    %p371 = por %p369, %p370
    %s372 = ssub.s32 %s74, %s81
    %p373 = scmp.eq.s32.totalorder %s372, 0
    %s375 = sadd.s32 %s374, 1
    %s376 = scalar_select %p373, %s374, %s375
    %p379 = pneg %p373
    %p380 = scmp.eq.s32.totalorder %s66, 3
    %p381 = por %p379, %p380
    %p382 = scmp.ne.s32.totalorder %s374, %s377
    %p383 = scmp.eq.s32.totalorder %s66, 0
    %p384 = por %p382, %p383
    %p385 = scmp.ne.s32.totalorder %s374, %s377
    %p386 = scmp.eq.s32.totalorder %s71, 3
    %p387 = por %p385, %p386
    %p388 = scmp.ne.s32.totalorder %s377, %s378
    %p389 = scmp.eq.s32.totalorder %s71, 0
    %p390 = por %p388, %p389
    %p391 = scmp.ne.s32.totalorder %s377, %s378
    %p392 = scmp.eq.s32.totalorder %s72, 3
    %p393 = por %p391, %p392
    %p395 = scmp.ne.s32.totalorder %s378, %s394
    %p396 = scmp.eq.s32.totalorder %s72, 0
    %p397 = por %p395, %p396
    %s398 = ssub.s32 %s74, %s81
    %p399 = scmp.eq.s32.totalorder %s398, 0
    %s401 = sadd.s32 %s400, 1
    %s402 = scalar_select %p399, %s400, %s401
    %p405 = pneg %p399
    %p406 = scmp.eq.s32.totalorder %s66, 3
    %p407 = por %p405, %p406
    %p408 = scmp.ne.s32.totalorder %s400, %s403
    %p409 = scmp.eq.s32.totalorder %s66, 0
    %p410 = por %p408, %p409
    %p411 = scmp.ne.s32.totalorder %s400, %s403
    %p412 = scmp.eq.s32.totalorder %s71, 3
    %p413 = por %p411, %p412
    %p414 = scmp.ne.s32.totalorder %s403, %s404
    %p415 = scmp.eq.s32.totalorder %s71, 0
    %p416 = por %p414, %p415
    %p417 = scmp.ne.s32.totalorder %s403, %s404
    %p418 = scmp.eq.s32.totalorder %s72, 3
    %p419 = por %p417, %p418
    %p421 = scmp.ne.s32.totalorder %s404, %s420
    %p422 = scmp.eq.s32.totalorder %s72, 0
    %p423 = por %p421, %p422
    %s424 = ssub.s32 %s74, %s81
    %p425 = scmp.eq.s32.totalorder %s424, 0
    %s427 = sadd.s32 %s426, 1
    %s428 = scalar_select %p425, %s426, %s427
    %p431 = pneg %p425
    %p432 = scmp.eq.s32.totalorder %s66, 3
    %p433 = por %p431, %p432
    %p434 = scmp.ne.s32.totalorder %s426, %s429
    %p435 = scmp.eq.s32.totalorder %s66, 0
    %p436 = por %p434, %p435
    %p437 = scmp.ne.s32.totalorder %s426, %s429
    %p438 = scmp.eq.s32.totalorder %s71, 3
    %p439 = por %p437, %p438
    %p440 = scmp.ne.s32.totalorder %s429, %s430
    %p441 = scmp.eq.s32.totalorder %s71, 0
    %p442 = por %p440, %p441
    %p443 = scmp.ne.s32.totalorder %s429, %s430
    %p444 = scmp.eq.s32.totalorder %s72, 3
    %p445 = por %p443, %p444
    %p447 = scmp.ne.s32.totalorder %s430, %s446
    %p448 = scmp.eq.s32.totalorder %s72, 0
    %p449 = por %p447, %p448
    %s450 = ssub.s32 %s74, %s81
    %p451 = scmp.eq.s32.totalorder %s450, 0
    %s453 = sadd.s32 %s452, 1
    %s454 = scalar_select %p451, %s452, %s453
    %p457 = pneg %p451
    %p458 = scmp.eq.s32.totalorder %s66, 3
    %p459 = por %p457, %p458
    %p460 = scmp.ne.s32.totalorder %s452, %s455
    %p461 = scmp.eq.s32.totalorder %s66, 0
    %p462 = por %p460, %p461
    %p463 = scmp.ne.s32.totalorder %s452, %s455
    %p464 = scmp.eq.s32.totalorder %s71, 3
    %p465 = por %p463, %p464
    %p466 = scmp.ne.s32.totalorder %s455, %s456
    %p467 = scmp.eq.s32.totalorder %s71, 0
    %p468 = por %p466, %p467
    %p469 = scmp.ne.s32.totalorder %s455, %s456
    %p470 = scmp.eq.s32.totalorder %s72, 3
    %p471 = por %p469, %p470
    %p473 = scmp.ne.s32.totalorder %s456, %s472
    %p474 = scmp.eq.s32.totalorder %s72, 0
    %p475 = por %p473, %p474
    %s476 = ssub.s32 %s74, %s81
    %p477 = scmp.eq.s32.totalorder %s476, 0
    %s479 = sadd.s32 %s478, 1
    %s480 = scalar_select %p477, %s478, %s479
    %p483 = pneg %p477
    %p484 = scmp.eq.s32.totalorder %s66, 3
    %p485 = por %p483, %p484
    %p486 = scmp.ne.s32.totalorder %s478, %s481
    %p487 = scmp.eq.s32.totalorder %s66, 0
    %p488 = por %p486, %p487
    %p489 = scmp.ne.s32.totalorder %s478, %s481
    %p490 = scmp.eq.s32.totalorder %s71, 3
    %p491 = por %p489, %p490
    %p492 = scmp.ne.s32.totalorder %s481, %s482
    %p493 = scmp.eq.s32.totalorder %s71, 0
    %p494 = por %p492, %p493
    %p495 = scmp.ne.s32.totalorder %s481, %s482
    %p496 = scmp.eq.s32.totalorder %s72, 3
    %p497 = por %p495, %p496
    %p499 = scmp.ne.s32.totalorder %s482, %s498
    %p500 = scmp.eq.s32.totalorder %s72, 0
    %p501 = por %p499, %p500
    %s502 = ssub.s32 %s74, %s81
    %p503 = scmp.eq.s32.totalorder %s502, 0
    %s505 = sadd.s32 %s504, 1
    %s506 = scalar_select %p503, %s504, %s505
    %p509 = pneg %p503
    %p510 = scmp.eq.s32.totalorder %s66, 3
    %p511 = por %p509, %p510
    %p512 = scmp.ne.s32.totalorder %s504, %s507
    %p513 = scmp.eq.s32.totalorder %s66, 0
    %p514 = por %p512, %p513
    %p515 = scmp.ne.s32.totalorder %s504, %s507
    %p516 = scmp.eq.s32.totalorder %s71, 3
    %p517 = por %p515, %p516
    %p518 = scmp.ne.s32.totalorder %s507, %s508
    %p519 = scmp.eq.s32.totalorder %s71, 0
    %p520 = por %p518, %p519
    %p521 = scmp.ne.s32.totalorder %s507, %s508
    %p522 = scmp.eq.s32.totalorder %s72, 3
    %p523 = por %p521, %p522
    %p525 = scmp.ne.s32.totalorder %s508, %s524
    %p526 = scmp.eq.s32.totalorder %s72, 0
    %p527 = por %p525, %p526
    %s528 = ssub.s32 %s74, %s81
    %p529 = scmp.eq.s32.totalorder %s528, 0
    %s531 = sadd.s32 %s530, 1
    %s532 = scalar_select %p529, %s530, %s531
    %p535 = pneg %p529
    %p536 = scmp.eq.s32.totalorder %s66, 3
    %p537 = por %p535, %p536
    %p538 = scmp.ne.s32.totalorder %s530, %s533
    %p539 = scmp.eq.s32.totalorder %s66, 0
    %p540 = por %p538, %p539
    %p541 = scmp.ne.s32.totalorder %s530, %s533
    %p542 = scmp.eq.s32.totalorder %s71, 3
    %p543 = por %p541, %p542
    %p544 = scmp.ne.s32.totalorder %s533, %s534
    %p545 = scmp.eq.s32.totalorder %s71, 0
    %p546 = por %p544, %p545
    %p547 = scmp.ne.s32.totalorder %s533, %s534
    %p548 = scmp.eq.s32.totalorder %s72, 3
    %p549 = por %p547, %p548
    %p551 = scmp.ne.s32.totalorder %s534, %s550
    %p552 = scmp.eq.s32.totalorder %s72, 0
    %p553 = por %p551, %p552
    %s554 = ssub.s32 %s74, %s81
    %p555 = scmp.eq.s32.totalorder %s554, 0
    %s557 = sadd.s32 %s556, 1
    %s558 = scalar_select %p555, %s556, %s557
    %p561 = pneg %p555
    %p562 = scmp.eq.s32.totalorder %s66, 3
    %p563 = por %p561, %p562
    %p564 = scmp.ne.s32.totalorder %s556, %s559
    %p565 = scmp.eq.s32.totalorder %s66, 0
    %p566 = por %p564, %p565
    %p567 = scmp.ne.s32.totalorder %s556, %s559
    %p568 = scmp.eq.s32.totalorder %s71, 3
    %p569 = por %p567, %p568
    %p570 = scmp.ne.s32.totalorder %s559, %s560
    %p571 = scmp.eq.s32.totalorder %s71, 0
    %p572 = por %p570, %p571
    %p573 = scmp.ne.s32.totalorder %s559, %s560
    %p574 = scmp.eq.s32.totalorder %s72, 3
    %p575 = por %p573, %p574
    %p577 = scmp.ne.s32.totalorder %s560, %s576
    %p578 = scmp.eq.s32.totalorder %s72, 0
    %p579 = por %p577, %p578
    %s580 = ssub.s32 %s74, %s81
    %p581 = scmp.eq.s32.totalorder %s580, 0
    %s583 = sadd.s32 %s582, 1
    %s584 = scalar_select %p581, %s582, %s583
    %p587 = pneg %p581
    %p588 = scmp.eq.s32.totalorder %s66, 3
    %p589 = por %p587, %p588
    %p590 = scmp.ne.s32.totalorder %s582, %s585
    %p591 = scmp.eq.s32.totalorder %s66, 0
    %p592 = por %p590, %p591
    %p593 = scmp.ne.s32.totalorder %s582, %s585
    %p594 = scmp.eq.s32.totalorder %s71, 3
    %p595 = por %p593, %p594
    %p596 = scmp.ne.s32.totalorder %s585, %s586
    %p597 = scmp.eq.s32.totalorder %s71, 0
    %p598 = por %p596, %p597
    %p599 = scmp.ne.s32.totalorder %s585, %s586
    %p600 = scmp.eq.s32.totalorder %s72, 3
    %p601 = por %p599, %p600
    %p603 = scmp.ne.s32.totalorder %s586, %s602
    %p604 = scmp.eq.s32.totalorder %s72, 0
    %p605 = por %p603, %p604
    %s606 = ssub.s32 %s74, %s81
    %p607 = scmp.eq.s32.totalorder %s606, 0
    %s609 = sadd.s32 %s608, 1
    %s610 = scalar_select %p607, %s608, %s609
    %p613 = pneg %p607
    %p614 = scmp.eq.s32.totalorder %s66, 3
    %p615 = por %p613, %p614
    %p616 = scmp.ne.s32.totalorder %s608, %s611
    %p617 = scmp.eq.s32.totalorder %s66, 0
    %p618 = por %p616, %p617
    %p619 = scmp.ne.s32.totalorder %s608, %s611
    %p620 = scmp.eq.s32.totalorder %s71, 3
    %p621 = por %p619, %p620
    %p622 = scmp.ne.s32.totalorder %s611, %s612
    %p623 = scmp.eq.s32.totalorder %s71, 0
    %p624 = por %p622, %p623
    %p625 = scmp.ne.s32.totalorder %s611, %s612
    %p626 = scmp.eq.s32.totalorder %s72, 3
    %p627 = por %p625, %p626
    %p629 = scmp.ne.s32.totalorder %s612, %s628
    %p630 = scmp.eq.s32.totalorder %s72, 0
    %p631 = por %p629, %p630
    %s632 = ssub.s32 %s74, %s81
    %p633 = scmp.eq.s32.totalorder %s632, 0
    %s635 = sadd.s32 %s634, 1
    %s636 = scalar_select %p633, %s634, %s635
    %p639 = pneg %p633
    %p640 = scmp.eq.s32.totalorder %s66, 3
    %p641 = por %p639, %p640
    %p642 = scmp.ne.s32.totalorder %s634, %s637
    %p643 = scmp.eq.s32.totalorder %s66, 0
    %p644 = por %p642, %p643
    %p645 = scmp.ne.s32.totalorder %s634, %s637
    %p646 = scmp.eq.s32.totalorder %s71, 3
    %p647 = por %p645, %p646
    %p648 = scmp.ne.s32.totalorder %s637, %s638
    %p649 = scmp.eq.s32.totalorder %s71, 0
    %p650 = por %p648, %p649
    %p651 = scmp.ne.s32.totalorder %s637, %s638
    %p652 = scmp.eq.s32.totalorder %s72, 3
    %p653 = por %p651, %p652
    %p655 = scmp.ne.s32.totalorder %s638, %s654
    %p656 = scmp.eq.s32.totalorder %s72, 0
    %p657 = por %p655, %p656
    %s658 = ssub.s32 %s74, %s81
    %p659 = scmp.eq.s32.totalorder %s658, 0
    %s661 = sadd.s32 %s660, 1
    %s662 = scalar_select %p659, %s660, %s661
    %p665 = pneg %p659
    %p666 = scmp.eq.s32.totalorder %s66, 3
    %p667 = por %p665, %p666
    %p668 = scmp.ne.s32.totalorder %s660, %s663
    %p669 = scmp.eq.s32.totalorder %s66, 0
    %p670 = por %p668, %p669
    %p671 = scmp.ne.s32.totalorder %s660, %s663
    %p672 = scmp.eq.s32.totalorder %s71, 3
    %p673 = por %p671, %p672
    %p674 = scmp.ne.s32.totalorder %s663, %s664
    %p675 = scmp.eq.s32.totalorder %s71, 0
    %p676 = por %p674, %p675
    %p677 = scmp.ne.s32.totalorder %s663, %s664
    %p678 = scmp.eq.s32.totalorder %s72, 3
    %p679 = por %p677, %p678
    %p681 = scmp.ne.s32.totalorder %s664, %s680
    %p682 = scmp.eq.s32.totalorder %s72, 0
    %p683 = por %p681, %p682
    %s684 = ssub.s32 %s74, %s81
    %p685 = scmp.eq.s32.totalorder %s684, 0
    %s687 = sadd.s32 %s686, 1
    %s688 = scalar_select %p685, %s686, %s687
    %p691 = pneg %p685
    %p692 = scmp.eq.s32.totalorder %s66, 3
    %p693 = por %p691, %p692
    %p694 = scmp.ne.s32.totalorder %s686, %s689
    %p695 = scmp.eq.s32.totalorder %s66, 0
    %p696 = por %p694, %p695
    %p697 = scmp.ne.s32.totalorder %s686, %s689
    %p698 = scmp.eq.s32.totalorder %s71, 3
    %p699 = por %p697, %p698
    %p700 = scmp.ne.s32.totalorder %s689, %s690
    %p701 = scmp.eq.s32.totalorder %s71, 0
    %p702 = por %p700, %p701
    %p703 = scmp.ne.s32.totalorder %s689, %s690
    %p704 = scmp.eq.s32.totalorder %s72, 3
    %p705 = por %p703, %p704
    %p707 = scmp.ne.s32.totalorder %s690, %s706
    %p708 = scmp.eq.s32.totalorder %s72, 0
    %p709 = por %p707, %p708
    %s711 = sadd.s32 %s710, 1
    %p714 = scmp.eq.s32.totalorder %s66, 3
    %p715 = scmp.ne.s32.totalorder %s710, %s712
    %p716 = scmp.eq.s32.totalorder %s66, 0
    %p717 = por %p715, %p716
    %p718 = scmp.ne.s32.totalorder %s710, %s712
    %p719 = scmp.eq.s32.totalorder %s71, 3
    %p720 = por %p718, %p719
    %p721 = scmp.ne.s32.totalorder %s712, %s713
    %p722 = scmp.eq.s32.totalorder %s71, 0
    %p723 = por %p721, %p722
    %p724 = scmp.ne.s32.totalorder %s712, %s713
    %p725 = scmp.eq.s32.totalorder %s72, 3
    %p726 = por %p724, %p725
    %p728 = scmp.ne.s32.totalorder %s713, %s727
    %p729 = scmp.eq.s32.totalorder %s72, 0
    %p730 = por %p728, %p729
    %s732 = sadd.s32 %s731, 1
    %p735 = scmp.eq.s32.totalorder %s66, 3
    %p736 = scmp.ne.s32.totalorder %s731, %s733
    %p737 = scmp.eq.s32.totalorder %s66, 0
    %p738 = por %p736, %p737
    %p739 = scmp.ne.s32.totalorder %s731, %s733
    %p740 = scmp.eq.s32.totalorder %s71, 3
    %p741 = por %p739, %p740
    %p742 = scmp.ne.s32.totalorder %s733, %s734
    %p743 = scmp.eq.s32.totalorder %s71, 0
    %p744 = por %p742, %p743
    %p745 = scmp.ne.s32.totalorder %s733, %s734
    %p746 = scmp.eq.s32.totalorder %s72, 3
    %p747 = por %p745, %p746
    %p749 = scmp.ne.s32.totalorder %s734, %s748
    %p750 = scmp.eq.s32.totalorder %s72, 0
    %p751 = por %p749, %p750
    %s753 = sadd.s32 %s752, 1
    %p756 = scmp.eq.s32.totalorder %s66, 3
    %p757 = scmp.ne.s32.totalorder %s752, %s754
    %p758 = scmp.eq.s32.totalorder %s66, 0
    %p759 = por %p757, %p758
    %p760 = scmp.ne.s32.totalorder %s752, %s754
    %p761 = scmp.eq.s32.totalorder %s71, 3
    %p762 = por %p760, %p761
    %p763 = scmp.ne.s32.totalorder %s754, %s755
    %p764 = scmp.eq.s32.totalorder %s71, 0
    %p765 = por %p763, %p764
    %p766 = scmp.ne.s32.totalorder %s754, %s755
    %p767 = scmp.eq.s32.totalorder %s72, 3
    %p768 = por %p766, %p767
    %p770 = scmp.ne.s32.totalorder %s755, %s769
    %p771 = scmp.eq.s32.totalorder %s72, 0
    %p772 = por %p770, %p771
    %s774 = sadd.s32 %s773, 1
    %p777 = scmp.eq.s32.totalorder %s66, 3
    %p778 = scmp.ne.s32.totalorder %s773, %s775
    %p779 = scmp.eq.s32.totalorder %s66, 0
    %p780 = por %p778, %p779
    %p781 = scmp.ne.s32.totalorder %s773, %s775
    %p782 = scmp.eq.s32.totalorder %s71, 3
    %p783 = por %p781, %p782
    %p784 = scmp.ne.s32.totalorder %s775, %s776
    %p785 = scmp.eq.s32.totalorder %s71, 0
    %p786 = por %p784, %p785
    %p787 = scmp.ne.s32.totalorder %s775, %s776
    %p788 = scmp.eq.s32.totalorder %s72, 3
    %p789 = por %p787, %p788
    %p791 = scmp.ne.s32.totalorder %s776, %s790
    %p792 = scmp.eq.s32.totalorder %s72, 0
    %p793 = por %p791, %p792
    %s794 = ssub.s32 %s73, %s85
    %p795 = scmp.eq.s32.totalorder %s794, 0
    %s797 = sadd.s32 %s796, 1
    %s798 = scalar_select %p795, %s796, %s797
    %p801 = pneg %p795
    %p802 = scmp.eq.s32.totalorder %s66, 3
    %p803 = por %p801, %p802
    %p804 = scmp.ne.s32.totalorder %s796, %s799
    %p805 = scmp.eq.s32.totalorder %s66, 0
    %p806 = por %p804, %p805
    %p807 = scmp.ne.s32.totalorder %s796, %s799
    %p808 = scmp.eq.s32.totalorder %s71, 3
    %p809 = por %p807, %p808
    %p810 = scmp.ne.s32.totalorder %s799, %s800
    %p811 = scmp.eq.s32.totalorder %s71, 0
    %p812 = por %p810, %p811
    %p813 = scmp.ne.s32.totalorder %s799, %s800
    %p814 = scmp.eq.s32.totalorder %s72, 3
    %p815 = por %p813, %p814
    %p817 = scmp.ne.s32.totalorder %s800, %s816
    %p818 = scmp.eq.s32.totalorder %s72, 0
    %p819 = por %p817, %p818
    %s820 = ssub.s32 %s73, %s85
    %p821 = scmp.eq.s32.totalorder %s820, 0
    %s823 = sadd.s32 %s822, 1
    %s824 = scalar_select %p821, %s822, %s823
    %p827 = pneg %p821
    %p828 = scmp.eq.s32.totalorder %s66, 3
    %p829 = por %p827, %p828
    %p830 = scmp.ne.s32.totalorder %s822, %s825
    %p831 = scmp.eq.s32.totalorder %s66, 0
    %p832 = por %p830, %p831
    %p833 = scmp.ne.s32.totalorder %s822, %s825
    %p834 = scmp.eq.s32.totalorder %s71, 3
    %p835 = por %p833, %p834
    %p836 = scmp.ne.s32.totalorder %s825, %s826
    %p837 = scmp.eq.s32.totalorder %s71, 0
    %p838 = por %p836, %p837
    %p839 = scmp.ne.s32.totalorder %s825, %s826
    %p840 = scmp.eq.s32.totalorder %s72, 3
    %p841 = por %p839, %p840
    %p843 = scmp.ne.s32.totalorder %s826, %s842
    %p844 = scmp.eq.s32.totalorder %s72, 0
    %p845 = por %p843, %p844
    %p846 = scmp.le.s32.totalorder 1, %s66
    %p847 = scmp.lt.s32.totalorder %s66, 5
    %p848 = pnand %p846, %p847
    %p849 = pneg %p848
    // Predicated region
    $region9: #{video_encoder_forward.1} parent=5 // pred_check
      _
    $region10: #{video_encoder_forward.1} parent=5 // pred_check_branch
      %851 = sbr.rel (%p848) target = $region12
    $region11: #{video_encoder_forward.1} parent=5 // pred_region
      %s852 = ssub.s32 %s66, 1
      // Predicated region
      $region13: #{video_encoder_forward.1} parent=11 // pred_check
        %p853 = pneg %p723
      $region14: #{video_encoder_forward.1} parent=11 // pred_check_branch
        %855 = sbr.rel (%p853) target = $region16
      $region15: #{video_encoder_forward.1} parent=11 // pred_region
        _
      $region16: #{video_encoder_forward.1} parent=11 // pred_fallthru
        _
      // Predicated region
      $region17: #{video_encoder_forward.1} parent=11 // pred_check
        %p856 = pneg %p744
      $region18: #{video_encoder_forward.1} parent=11 // pred_check_branch
        %858 = sbr.rel (%p856) target = $region20
      $region19: #{video_encoder_forward.1} parent=11 // pred_region
        _
      $region20: #{video_encoder_forward.1} parent=11 // pred_fallthru
        _
      // Predicated region
      $region21: #{video_encoder_forward.1} parent=11 // pred_check
        %p859 = pneg %p765
      $region22: #{video_encoder_forward.1} parent=11 // pred_check_branch
        %861 = sbr.rel (%p859) target = $region24
      $region23: #{video_encoder_forward.1} parent=11 // pred_region
        _
      $region24: #{video_encoder_forward.1} parent=11 // pred_fallthru
        _
      // Predicated region
      $region25: #{video_encoder_forward.1} parent=11 // pred_check
        %p862 = pneg %p786
      $region26: #{video_encoder_forward.1} parent=11 // pred_check_branch
        %864 = sbr.rel (%p862) target = $region28
      $region27: #{video_encoder_forward.1} parent=11 // pred_region
        _
      $region28: #{video_encoder_forward.1} parent=11 // pred_fallthru
        _
    $region12: #{video_encoder_forward.1} parent=5 // pred_fallthru
      _
    %p865 = scmp.lt.s32.totalorder %s66, 4
    // Predicated region
    $region29: #{video_encoder_forward.1} parent=5 // pred_check
      %p866 = pneg %p865
    $region30: #{video_encoder_forward.1} parent=5 // pred_check_branch
      %868 = sbr.rel (%p866) target = $region32
    $region31: #{video_encoder_forward.1} parent=5 // pred_region
      // Predicated region
      $region33: #{video_encoder_forward.1} parent=31 // pred_check
        %p869 = pneg %p98
      $region34: #{video_encoder_forward.1} parent=31 // pred_check_branch
        %871 = sbr.rel (%p869) target = $region36
      $region35: #{video_encoder_forward.1} parent=31 // pred_region
        %p872 = scmp.lt.s32.totalorder %s73, 1
        %s873 = scalar_select %p872, %s73, 1
        %s874 = smul.addr %s873, 2
        %s875 = smul.addr %s874, 8
        %s876 = scalar_lea.vmem %s1, %s875
      $region36: #{video_encoder_forward.1} parent=31 // pred_fallthru
        _
      // Predicated region
      $region37: #{video_encoder_forward.1} parent=31 // pred_check
        %p877 = pneg %p124
      $region38: #{video_encoder_forward.1} parent=31 // pred_check_branch
        %879 = sbr.rel (%p877) target = $region40
      $region39: #{video_encoder_forward.1} parent=31 // pred_region
        %p880 = scmp.lt.s32.totalorder %s73, 1
        %s881 = scalar_select %p880, %s73, 1
        %s882 = scalar_lea.vmem %s3, %s881
      $region40: #{video_encoder_forward.1} parent=31 // pred_fallthru
        _
      // Predicated region
      $region41: #{video_encoder_forward.1} parent=31 // pred_check
        %p883 = pneg %p150
      $region42: #{video_encoder_forward.1} parent=31 // pred_check_branch
        %885 = sbr.rel (%p883) target = $region44
      $region43: #{video_encoder_forward.1} parent=31 // pred_region
        %p886 = scmp.lt.s32.totalorder %s73, 1
        %s887 = scalar_select %p886, %s73, 1
        %s888 = smul.addr %s887, 8
        %s889 = scalar_lea.vmem %s5, %s888
      $region44: #{video_encoder_forward.1} parent=31 // pred_fallthru
        _
      // Predicated region
      $region45: #{video_encoder_forward.1} parent=31 // pred_check
        %p890 = pneg %p176
      $region46: #{video_encoder_forward.1} parent=31 // pred_check_branch
        %892 = sbr.rel (%p890) target = $region48
      $region47: #{video_encoder_forward.1} parent=31 // pred_region
        %p893 = scmp.lt.s32.totalorder %s73, 1
        %s894 = scalar_select %p893, %s73, 1
        %s895 = scalar_lea.vmem %s7, %s894
      $region48: #{video_encoder_forward.1} parent=31 // pred_fallthru
        _
      // Predicated region
      $region49: #{video_encoder_forward.1} parent=31 // pred_check
        %p896 = pneg %p202
      $region50: #{video_encoder_forward.1} parent=31 // pred_check_branch
        %898 = sbr.rel (%p896) target = $region52
      $region51: #{video_encoder_forward.1} parent=31 // pred_region
        %p899 = scmp.lt.s32.totalorder %s74, 1
        %s900 = scalar_select %p899, %s74, 1
        %s901 = smul.addr %s900, 4
        %s902 = smul.addr %s901, 4
        %s903 = scalar_lea.vmem %s9, %s902
      $region52: #{video_encoder_forward.1} parent=31 // pred_fallthru
        _
      // Predicated region
      $region53: #{video_encoder_forward.1} parent=31 // pred_check
        %p904 = pneg %p228
      $region54: #{video_encoder_forward.1} parent=31 // pred_check_branch
        %906 = sbr.rel (%p904) target = $region56
      $region55: #{video_encoder_forward.1} parent=31 // pred_region
        %p907 = scmp.lt.s32.totalorder %s74, 1
        %s908 = scalar_select %p907, %s74, 1
        %s909 = scalar_lea.vmem %s11, %s908
      $region56: #{video_encoder_forward.1} parent=31 // pred_fallthru
        _
      // Predicated region
      $region57: #{video_encoder_forward.1} parent=31 // pred_check
        %p910 = pneg %p254
      $region58: #{video_encoder_forward.1} parent=31 // pred_check_branch
        %912 = sbr.rel (%p910) target = $region60
      $region59: #{video_encoder_forward.1} parent=31 // pred_region
        %p913 = scmp.lt.s32.totalorder %s74, 1
        %s914 = scalar_select %p913, %s74, 1
        %s915 = smul.addr %s914, 4
        %s916 = smul.addr %s915, 4
        %s917 = scalar_lea.vmem %s13, %s916
      $region60: #{video_encoder_forward.1} parent=31 // pred_fallthru
        _
      // Predicated region
      $region61: #{video_encoder_forward.1} parent=31 // pred_check
        %p918 = pneg %p280
      $region62: #{video_encoder_forward.1} parent=31 // pred_check_branch
        %920 = sbr.rel (%p918) target = $region64
      $region63: #{video_encoder_forward.1} parent=31 // pred_region
        %p921 = scmp.lt.s32.totalorder %s74, 1
        %s922 = scalar_select %p921, %s74, 1
        %s923 = scalar_lea.vmem %s15, %s922
      $region64: #{video_encoder_forward.1} parent=31 // pred_fallthru
        _
      // Predicated region
      $region65: #{video_encoder_forward.1} parent=31 // pred_check
        %p924 = pneg %p306
      $region66: #{video_encoder_forward.1} parent=31 // pred_check_branch
        %926 = sbr.rel (%p924) target = $region68
      $region67: #{video_encoder_forward.1} parent=31 // pred_region
        %p927 = scmp.lt.s32.totalorder %s74, 1
        %s928 = scalar_select %p927, %s74, 1
        %s929 = scalar_lea.vmem %s17, %s928
      $region68: #{video_encoder_forward.1} parent=31 // pred_fallthru
        _
      // Predicated region
      $region69: #{video_encoder_forward.1} parent=31 // pred_check
        %p930 = pneg %p332
      $region70: #{video_encoder_forward.1} parent=31 // pred_check_branch
        %932 = sbr.rel (%p930) target = $region72
      $region71: #{video_encoder_forward.1} parent=31 // pred_region
        %p933 = scmp.lt.s32.totalorder %s74, 1
        %s934 = scalar_select %p933, %s74, 1
        %s935 = scalar_lea.vmem %s19, %s934
      $region72: #{video_encoder_forward.1} parent=31 // pred_fallthru
        _
      // Predicated region
      $region73: #{video_encoder_forward.1} parent=31 // pred_check
        %p936 = pneg %p358
      $region74: #{video_encoder_forward.1} parent=31 // pred_check_branch
        %938 = sbr.rel (%p936) target = $region76
      $region75: #{video_encoder_forward.1} parent=31 // pred_region
        %p939 = scmp.lt.s32.totalorder %s74, 1
        %s940 = scalar_select %p939, %s74, 1
        %s941 = smul.addr %s940, 4
        %s942 = smul.addr %s941, 4
        %s943 = scalar_lea.vmem %s21, %s942
      $region76: #{video_encoder_forward.1} parent=31 // pred_fallthru
        _
      // Predicated region
      $region77: #{video_encoder_forward.1} parent=31 // pred_check
        %p944 = pneg %p384
      $region78: #{video_encoder_forward.1} parent=31 // pred_check_branch
        %946 = sbr.rel (%p944) target = $region80
      $region79: #{video_encoder_forward.1} parent=31 // pred_region
        %p947 = scmp.lt.s32.totalorder %s74, 1
        %s948 = scalar_select %p947, %s74, 1
        %s949 = scalar_lea.vmem %s23, %s948
      $region80: #{video_encoder_forward.1} parent=31 // pred_fallthru
        _
      // Predicated region
      $region81: #{video_encoder_forward.1} parent=31 // pred_check
        %p950 = pneg %p410
      $region82: #{video_encoder_forward.1} parent=31 // pred_check_branch
        %952 = sbr.rel (%p950) target = $region84
      $region83: #{video_encoder_forward.1} parent=31 // pred_region
        %p953 = scmp.lt.s32.totalorder %s74, 1
        %s954 = scalar_select %p953, %s74, 1
        %s955 = smul.addr %s954, 4
        %s956 = smul.addr %s955, 4
        %s957 = scalar_lea.vmem %s25, %s956
      $region84: #{video_encoder_forward.1} parent=31 // pred_fallthru
        _
      // Predicated region
      $region85: #{video_encoder_forward.1} parent=31 // pred_check
        %p958 = pneg %p436
      $region86: #{video_encoder_forward.1} parent=31 // pred_check_branch
        %960 = sbr.rel (%p958) target = $region88
      $region87: #{video_encoder_forward.1} parent=31 // pred_region
        %p961 = scmp.lt.s32.totalorder %s74, 1
        %s962 = scalar_select %p961, %s74, 1
        %s963 = scalar_lea.vmem %s27, %s962
      $region88: #{video_encoder_forward.1} parent=31 // pred_fallthru
        _
      // Predicated region
      $region89: #{video_encoder_forward.1} parent=31 // pred_check
        %p964 = pneg %p462
      $region90: #{video_encoder_forward.1} parent=31 // pred_check_branch
        %966 = sbr.rel (%p964) target = $region92
      $region91: #{video_encoder_forward.1} parent=31 // pred_region
        %p967 = scmp.lt.s32.totalorder %s74, 1
        %s968 = scalar_select %p967, %s74, 1
        %s969 = smul.addr %s968, 4
        %s970 = smul.addr %s969, 4
        %s971 = scalar_lea.vmem %s29, %s970
      $region92: #{video_encoder_forward.1} parent=31 // pred_fallthru
        _
      // Predicated region
      $region93: #{video_encoder_forward.1} parent=31 // pred_check
        %p972 = pneg %p488
      $region94: #{video_encoder_forward.1} parent=31 // pred_check_branch
        %974 = sbr.rel (%p972) target = $region96
      $region95: #{video_encoder_forward.1} parent=31 // pred_region
        %p975 = scmp.lt.s32.totalorder %s74, 1
        %s976 = scalar_select %p975, %s74, 1
        %s977 = scalar_lea.vmem %s31, %s976
      $region96: #{video_encoder_forward.1} parent=31 // pred_fallthru
        _
      // Predicated region
      $region97: #{video_encoder_forward.1} parent=31 // pred_check
        %p978 = pneg %p514
      $region98: #{video_encoder_forward.1} parent=31 // pred_check_branch
        %980 = sbr.rel (%p978) target = $region100
      $region99: #{video_encoder_forward.1} parent=31 // pred_region
        %p981 = scmp.lt.s32.totalorder %s74, 1
        %s982 = scalar_select %p981, %s74, 1
        %s983 = scalar_lea.vmem %s33, %s982
      $region100: #{video_encoder_forward.1} parent=31 // pred_fallthru
        _
      // Predicated region
      $region101: #{video_encoder_forward.1} parent=31 // pred_check
        %p984 = pneg %p540
      $region102: #{video_encoder_forward.1} parent=31 // pred_check_branch
        %986 = sbr.rel (%p984) target = $region104
      $region103: #{video_encoder_forward.1} parent=31 // pred_region
        %p987 = scmp.lt.s32.totalorder %s74, 1
        %s988 = scalar_select %p987, %s74, 1
        %s989 = scalar_lea.vmem %s35, %s988
      $region104: #{video_encoder_forward.1} parent=31 // pred_fallthru
        _
      // Predicated region
      $region105: #{video_encoder_forward.1} parent=31 // pred_check
        %p990 = pneg %p566
      $region106: #{video_encoder_forward.1} parent=31 // pred_check_branch
        %992 = sbr.rel (%p990) target = $region108
      $region107: #{video_encoder_forward.1} parent=31 // pred_region
        %p993 = scmp.lt.s32.totalorder %s74, 1
        %s994 = scalar_select %p993, %s74, 1
        %s995 = smul.addr %s994, 4
        %s996 = smul.addr %s995, 4
        %s997 = scalar_lea.vmem %s37, %s996
      $region108: #{video_encoder_forward.1} parent=31 // pred_fallthru
        _
      // Predicated region
      $region109: #{video_encoder_forward.1} parent=31 // pred_check
        %p998 = pneg %p592
      $region110: #{video_encoder_forward.1} parent=31 // pred_check_branch
        %1000 = sbr.rel (%p998) target = $region112
      $region111: #{video_encoder_forward.1} parent=31 // pred_region
        %p1001 = scmp.lt.s32.totalorder %s74, 1
        %s1002 = scalar_select %p1001, %s74, 1
        %s1003 = scalar_lea.vmem %s39, %s1002
      $region112: #{video_encoder_forward.1} parent=31 // pred_fallthru
        _
      // Predicated region
      $region113: #{video_encoder_forward.1} parent=31 // pred_check
        %p1004 = pneg %p618
      $region114: #{video_encoder_forward.1} parent=31 // pred_check_branch
        %1006 = sbr.rel (%p1004) target = $region116
      $region115: #{video_encoder_forward.1} parent=31 // pred_region
        %p1007 = scmp.lt.s32.totalorder %s74, 1
        %s1008 = scalar_select %p1007, %s74, 1
        %s1009 = smul.addr %s1008, 8
        %s1010 = smul.addr %s1009, 4
        %s1011 = scalar_lea.vmem %s41, %s1010
      $region116: #{video_encoder_forward.1} parent=31 // pred_fallthru
        _
      // Predicated region
      $region117: #{video_encoder_forward.1} parent=31 // pred_check
        %p1012 = pneg %p644
      $region118: #{video_encoder_forward.1} parent=31 // pred_check_branch
        %1014 = sbr.rel (%p1012) target = $region120
      $region119: #{video_encoder_forward.1} parent=31 // pred_region
        %p1015 = scmp.lt.s32.totalorder %s74, 1
        %s1016 = scalar_select %p1015, %s74, 1
        %s1017 = scalar_lea.vmem %s43, %s1016
      $region120: #{video_encoder_forward.1} parent=31 // pred_fallthru
        _
      // Predicated region
      $region121: #{video_encoder_forward.1} parent=31 // pred_check
        %p1018 = pneg %p670
      $region122: #{video_encoder_forward.1} parent=31 // pred_check_branch
        %1020 = sbr.rel (%p1018) target = $region124
      $region123: #{video_encoder_forward.1} parent=31 // pred_region
        %p1021 = scmp.lt.s32.totalorder %s74, 1
        %s1022 = scalar_select %p1021, %s74, 1
        %s1023 = scalar_lea.vmem %s45, %s1022
      $region124: #{video_encoder_forward.1} parent=31 // pred_fallthru
        _
      // Predicated region
      $region125: #{video_encoder_forward.1} parent=31 // pred_check
        %p1024 = pneg %p696
      $region126: #{video_encoder_forward.1} parent=31 // pred_check_branch
        %1026 = sbr.rel (%p1024) target = $region128
      $region127: #{video_encoder_forward.1} parent=31 // pred_region
        %p1027 = scmp.lt.s32.totalorder %s74, 1
        %s1028 = scalar_select %p1027, %s74, 1
        %s1029 = scalar_lea.vmem %s47, %s1028
      $region128: #{video_encoder_forward.1} parent=31 // pred_fallthru
        _
    $region32: #{video_encoder_forward.1} parent=5 // pred_fallthru
      _
    %p1030 = scmp.le.s32.totalorder 1, %s66
    %p1031 = scmp.lt.s32.totalorder %s66, 5
    %p1032 = pnand %p1030, %p1031
    %p1033 = pneg %p1032
    // Predicated region
    $region129: #{video_encoder_forward.1} parent=5 // pred_check
      _
    $region130: #{video_encoder_forward.1} parent=5 // pred_check_branch
      %1035 = sbr.rel (%p1032) target = $region132
    $region131: #{video_encoder_forward.1} parent=5 // pred_region
      %s1036 = ssub.s32 %s66, 1
      %p1037 = scmp.lt.s32.totalorder %s75, 1
      %s1038 = scalar_select %p1037, %s75, 1
      %s1039 = smul.addr %s1038, 2
      %s1040 = smul.addr %s1039, 8
      %s1041 = scalar_lea.vmem %s1, %s1040
      %p1042 = pneg %p104
      %p1043 = pneg %p101
      %p1044 = scmp.lt.s32.totalorder %s75, 1
      %s1045 = scalar_select %p1044, %s75, 1
      %s1046 = scalar_lea.vmem %s3, %s1045
      %p1047 = pneg %p130
      %p1048 = pneg %p127
      %p1049 = scmp.lt.s32.totalorder %s75, 1
      %s1050 = scalar_select %p1049, %s75, 1
      %s1051 = smul.addr %s1050, 8
      %s1052 = scalar_lea.vmem %s5, %s1051
      %p1053 = pneg %p156
      %p1054 = pneg %p153
      %p1055 = scmp.lt.s32.totalorder %s75, 1
      %s1056 = scalar_select %p1055, %s75, 1
      %s1057 = scalar_lea.vmem %s7, %s1056
      %p1058 = pneg %p182
      %p1059 = pneg %p179
      %p1060 = scmp.lt.s32.totalorder %s76, 1
      %s1061 = scalar_select %p1060, %s76, 1
      %s1062 = smul.addr %s1061, 4
      %s1063 = smul.addr %s1062, 4
      %s1064 = scalar_lea.vmem %s9, %s1063
      %p1065 = pneg %p208
      %p1066 = pneg %p205
      %p1067 = scmp.lt.s32.totalorder %s76, 1
      %s1068 = scalar_select %p1067, %s76, 1
      %s1069 = scalar_lea.vmem %s11, %s1068
      %p1070 = pneg %p234
      %p1071 = pneg %p231
      %p1072 = scmp.lt.s32.totalorder %s76, 1
      %s1073 = scalar_select %p1072, %s76, 1
      %s1074 = smul.addr %s1073, 4
      %s1075 = smul.addr %s1074, 4
      %s1076 = scalar_lea.vmem %s13, %s1075
      %p1077 = pneg %p260
      %p1078 = pneg %p257
      %p1079 = scmp.lt.s32.totalorder %s76, 1
      %s1080 = scalar_select %p1079, %s76, 1
      %s1081 = scalar_lea.vmem %s15, %s1080
      %p1082 = pneg %p286
      %p1083 = pneg %p283
      %p1084 = scmp.lt.s32.totalorder %s76, 1
      %s1085 = scalar_select %p1084, %s76, 1
      %s1086 = scalar_lea.vmem %s17, %s1085
      %p1087 = pneg %p312
      %p1088 = pneg %p309
      %p1089 = scmp.lt.s32.totalorder %s76, 1
      %s1090 = scalar_select %p1089, %s76, 1
      %s1091 = scalar_lea.vmem %s19, %s1090
      %p1092 = pneg %p338
      %p1093 = pneg %p335
      %p1094 = scmp.lt.s32.totalorder %s76, 1
      %s1095 = scalar_select %p1094, %s76, 1
      %s1096 = smul.addr %s1095, 4
      %s1097 = smul.addr %s1096, 4
      %s1098 = scalar_lea.vmem %s21, %s1097
      %p1099 = pneg %p364
      %p1100 = pneg %p361
      %p1101 = scmp.lt.s32.totalorder %s76, 1
      %s1102 = scalar_select %p1101, %s76, 1
      %s1103 = scalar_lea.vmem %s23, %s1102
      %p1104 = pneg %p390
      %p1105 = pneg %p387
      %p1106 = scmp.lt.s32.totalorder %s76, 1
      %s1107 = scalar_select %p1106, %s76, 1
      %s1108 = smul.addr %s1107, 4
      %s1109 = smul.addr %s1108, 4
      %s1110 = scalar_lea.vmem %s25, %s1109
      %p1111 = pneg %p416
      %p1112 = pneg %p413
      %p1113 = scmp.lt.s32.totalorder %s76, 1
      %s1114 = scalar_select %p1113, %s76, 1
      %s1115 = scalar_lea.vmem %s27, %s1114
      %p1116 = pneg %p442
      %p1117 = pneg %p439
      %p1118 = scmp.lt.s32.totalorder %s76, 1
      %s1119 = scalar_select %p1118, %s76, 1
      %s1120 = smul.addr %s1119, 4
      %s1121 = smul.addr %s1120, 4
      %s1122 = scalar_lea.vmem %s29, %s1121
      %p1123 = pneg %p468
      %p1124 = pneg %p465
      %p1125 = scmp.lt.s32.totalorder %s76, 1
      %s1126 = scalar_select %p1125, %s76, 1
      %s1127 = scalar_lea.vmem %s31, %s1126
      %p1128 = pneg %p494
      %p1129 = pneg %p491
      %p1130 = scmp.lt.s32.totalorder %s76, 1
      %s1131 = scalar_select %p1130, %s76, 1
      %s1132 = scalar_lea.vmem %s33, %s1131
      %p1133 = pneg %p520
      %p1134 = pneg %p517
      %p1135 = scmp.lt.s32.totalorder %s76, 1
      %s1136 = scalar_select %p1135, %s76, 1
      %s1137 = scalar_lea.vmem %s35, %s1136
      %p1138 = pneg %p546
      %p1139 = pneg %p543
      %p1140 = scmp.lt.s32.totalorder %s76, 1
      %s1141 = scalar_select %p1140, %s76, 1
      %s1142 = smul.addr %s1141, 4
      %s1143 = smul.addr %s1142, 4
      %s1144 = scalar_lea.vmem %s37, %s1143
      %p1145 = pneg %p572
      %p1146 = pneg %p569
      %p1147 = scmp.lt.s32.totalorder %s76, 1
      %s1148 = scalar_select %p1147, %s76, 1
      %s1149 = scalar_lea.vmem %s39, %s1148
      %p1150 = pneg %p598
      %p1151 = pneg %p595
      %p1152 = scmp.lt.s32.totalorder %s76, 1
      %s1153 = scalar_select %p1152, %s76, 1
      %s1154 = smul.addr %s1153, 8
      %s1155 = smul.addr %s1154, 4
      %s1156 = scalar_lea.vmem %s41, %s1155
      %p1157 = pneg %p624
      %p1158 = pneg %p621
      %p1159 = scmp.lt.s32.totalorder %s76, 1
      %s1160 = scalar_select %p1159, %s76, 1
      %s1161 = scalar_lea.vmem %s43, %s1160
      %p1162 = pneg %p650
      %p1163 = pneg %p647
      %p1164 = scmp.lt.s32.totalorder %s76, 1
      %s1165 = scalar_select %p1164, %s76, 1
      %s1166 = scalar_lea.vmem %s45, %s1165
      %p1167 = pneg %p676
      %p1168 = pneg %p673
      %p1169 = scmp.lt.s32.totalorder %s76, 1
      %s1170 = scalar_select %p1169, %s76, 1
      %s1171 = scalar_lea.vmem %s47, %s1170
      %p1172 = pneg %p702
      %p1173 = pneg %p699
      %p1174 = pneg %p723
      %p1175 = pneg %p720
      %p1176 = pneg %p744
      %p1177 = pneg %p741
      %p1178 = pneg %p765
      %p1179 = pneg %p762
      %p1180 = pneg %p786
      %p1181 = pneg %p783
      %p1182 = pneg %p812
      %p1183 = pneg %p809
      %p1184 = scmp.lt.s32.totalorder %s75, 1
      %s1185 = scalar_select %p1184, %s75, 1
      %s1186 = smul.addr %s1185, 2
      %s1187 = smul.addr %s1186, 8
      %s1188 = scalar_lea.vmem %s57, %s1187
      %p1189 = pneg %p838
      %p1190 = pneg %p835
      %p1191 = scmp.lt.s32.totalorder %s75, 1
      %s1192 = scalar_select %p1191, %s75, 1
      %s1193 = scalar_lea.vmem %s59, %s1192
      %p1194 = scmp.lt.s32.totalorder %s75, 1
      %s1195 = scalar_select %p1194, %s75, 1
      %s1196 = smul.addr %s1195, 2
      %s1197 = smul.addr %s1196, 8
      %s1198 = scalar_lea.vmem %s1, %s1197
      %p1199 = scmp.lt.s32.totalorder %s75, 1
      %s1200 = scalar_select %p1199, %s75, 1
      %s1201 = scalar_lea.vmem %s3, %s1200
      %p1202 = scmp.lt.s32.totalorder %s75, 1
      %s1203 = scalar_select %p1202, %s75, 1
      %s1204 = smul.addr %s1203, 8
      %s1205 = scalar_lea.vmem %s5, %s1204
      %p1206 = scmp.lt.s32.totalorder %s75, 1
      %s1207 = scalar_select %p1206, %s75, 1
      %s1208 = scalar_lea.vmem %s7, %s1207
      %p1209 = scmp.lt.s32.totalorder %s76, 1
      %s1210 = scalar_select %p1209, %s76, 1
      %s1211 = smul.addr %s1210, 4
      %s1212 = smul.addr %s1211, 4
      %s1213 = scalar_lea.vmem %s9, %s1212
      %p1214 = scmp.lt.s32.totalorder %s76, 1
      %s1215 = scalar_select %p1214, %s76, 1
      %s1216 = scalar_lea.vmem %s11, %s1215
      %p1217 = scmp.lt.s32.totalorder %s76, 1
      %s1218 = scalar_select %p1217, %s76, 1
      %s1219 = smul.addr %s1218, 4
      %s1220 = smul.addr %s1219, 4
      %s1221 = scalar_lea.vmem %s13, %s1220
      %p1222 = scmp.lt.s32.totalorder %s76, 1
      %s1223 = scalar_select %p1222, %s76, 1
      %s1224 = scalar_lea.vmem %s15, %s1223
      %p1225 = scmp.lt.s32.totalorder %s76, 1
      %s1226 = scalar_select %p1225, %s76, 1
      %s1227 = scalar_lea.vmem %s17, %s1226
      %p1228 = scmp.lt.s32.totalorder %s76, 1
      %s1229 = scalar_select %p1228, %s76, 1
      %s1230 = scalar_lea.vmem %s19, %s1229
      %p1231 = scmp.lt.s32.totalorder %s76, 1
      %s1232 = scalar_select %p1231, %s76, 1
      %s1233 = smul.addr %s1232, 4
      %s1234 = smul.addr %s1233, 4
      %s1235 = scalar_lea.vmem %s21, %s1234
      %p1236 = scmp.lt.s32.totalorder %s76, 1
      %s1237 = scalar_select %p1236, %s76, 1
      %s1238 = scalar_lea.vmem %s23, %s1237
      %p1239 = scmp.lt.s32.totalorder %s76, 1
      %s1240 = scalar_select %p1239, %s76, 1
      %s1241 = smul.addr %s1240, 4
      %s1242 = smul.addr %s1241, 4
      %s1243 = scalar_lea.vmem %s25, %s1242
      %p1244 = scmp.lt.s32.totalorder %s76, 1
      %s1245 = scalar_select %p1244, %s76, 1
      %s1246 = scalar_lea.vmem %s27, %s1245
      %p1247 = scmp.lt.s32.totalorder %s76, 1
      %s1248 = scalar_select %p1247, %s76, 1
      %s1249 = smul.addr %s1248, 4
      %s1250 = smul.addr %s1249, 4
      %s1251 = scalar_lea.vmem %s29, %s1250
      %p1252 = scmp.lt.s32.totalorder %s76, 1
      %s1253 = scalar_select %p1252, %s76, 1
      %s1254 = scalar_lea.vmem %s31, %s1253
      %p1255 = scmp.lt.s32.totalorder %s76, 1
      %s1256 = scalar_select %p1255, %s76, 1
      %s1257 = scalar_lea.vmem %s33, %s1256
      %p1258 = scmp.lt.s32.totalorder %s76, 1
      %s1259 = scalar_select %p1258, %s76, 1
      %s1260 = scalar_lea.vmem %s35, %s1259
      %p1261 = scmp.lt.s32.totalorder %s76, 1
      %s1262 = scalar_select %p1261, %s76, 1
      %s1263 = smul.addr %s1262, 4
      %s1264 = smul.addr %s1263, 4
      %s1265 = scalar_lea.vmem %s37, %s1264
      %p1266 = scmp.lt.s32.totalorder %s76, 1
      %s1267 = scalar_select %p1266, %s76, 1
      %s1268 = scalar_lea.vmem %s39, %s1267
      %p1269 = scmp.lt.s32.totalorder %s76, 1
      %s1270 = scalar_select %p1269, %s76, 1
      %s1271 = smul.addr %s1270, 8
      %s1272 = smul.addr %s1271, 4
      %s1273 = scalar_lea.vmem %s41, %s1272
      %p1274 = scmp.lt.s32.totalorder %s76, 1
      %s1275 = scalar_select %p1274, %s76, 1
      %s1276 = scalar_lea.vmem %s43, %s1275
      %p1277 = scmp.lt.s32.totalorder %s76, 1
      %s1278 = scalar_select %p1277, %s76, 1
      %s1279 = scalar_lea.vmem %s45, %s1278
      %p1280 = scmp.lt.s32.totalorder %s76, 1
      %s1281 = scalar_select %p1280, %s76, 1
      %s1282 = scalar_lea.vmem %s47, %s1281
      %p1283 = scmp.lt.s32.totalorder %s75, 1
      %s1284 = scalar_select %p1283, %s75, 1
      %s1285 = smul.addr %s1284, 2
      %s1286 = smul.addr %s1285, 8
      %s1287 = scalar_lea.vmem %s57, %s1286
      %p1288 = scmp.lt.s32.totalorder %s75, 1
      %s1289 = scalar_select %p1288, %s75, 1
      %s1290 = scalar_lea.vmem %s59, %s1289
      %p1292 = scmp.eq.s32.totalorder %s76, 0
      // Predicated region
      $region133: #{video_encoder_forward.1} parent=131 // pred_check
        %p1293 = pneg %p1292
      $region134: #{video_encoder_forward.1} parent=131 // pred_check_branch
        %1295 = sbr.rel (%p1293) target = $region136
      $region135: #{video_encoder_forward.1} parent=131 // pred_region
        %v1296 = vld [vmem:[%s1198] sm:$0xff]
        %v1297 = vld [vmem:[%s1198 + $0x8] sm:$0x1]
        %vm1298 = vcmask 261120
        %1299 = vst.msk [vmem:[#allocation2] sm:$0xff] %vm1298, %v1296
        %vm1300 = vcmask 253952
        %1301 = vst.msk [vmem:[#allocation2 + $0x8] sm:$0x1] %vm1300, %v1297
      $region136: #{video_encoder_forward.1} parent=131 // pred_fallthru
        _
      %v1302 = vld [vmem:[#allocation2] sm:$0xff]
      %v1303 = vld [vmem:[#allocation2 + $0x8] sm:$0x1]
      %v1304 = vld [vmem:[%s1201] sm:$0x1]
      %vm1305 = vcmp.gt.f32.partialorder %v1304, 0.0
      %v1306 = vsel %vm1305, 0.0, -1e+30
      %v1308 = vperm.slane %v1306, 0
      %v1310 = vpack.c.bf16 %v1303, %v1302
      %v1311 = vld [vmem:[%s1213] sm:$0xf]
      %v1312 = vld [vmem:[%s1213 + $0x4] sm:$0xf]
      %v1313 = vld [vmem:[%s1213 + $0x8] sm:$0xf]
      %v1314 = vld [vmem:[%s1213 + $0xc] sm:$0xf]
      %v1315 = vld [vmem:[%s1216] sm:$0x1]
      %v1317 = vperm.slane %v1315, 0
      %v1323 = vunpack.c.l.b16 %v1311
      %v1324 = vunpack.c.l.b16 %v1312
      %v1325 = vunpack.c.l.b16 %v1313
      %v1326 = vunpack.c.l.b16 %v1314
      %v1327 = vpack.c.b16 %v1324, %v1323
      %v1328 = vpack.c.b16 %v1326, %v1325
      %vm1331 = vcmask 261120
      %v1333 = vsel %vm1331, %v1310, 0
      %1335 = vmatpush.bf16.msra.mxu0 0
      %1336 = vmatpush.bf16.msra.mxu0 0
      %1337 = vmatpush.bf16.msra.mxu0 0
      %1338 = vmatpush.bf16.msra.mxu0 0
      %1339 = vmatpush.bf16.msra.mxu0 0
      %1340 = vmatpush.bf16.msra.mxu0 0
      %1341 = vmatpush.bf16.msra.mxu0 %v1328
      %1342 = vmatpush.bf16.msra.mxu0 %v1327
      %1343 = vmatmul.bf16.gmra.mxu0 %v1333
      %v1344 = vpop.f32.mrf.mxu0
      %v1345 = vadd.f32 %v1317, %v1344
      %v1346 = vpop.f32.mrf.mxu0
      %v1347 = vadd.f32 %v1317, %v1346
      %1348 = vdwg.mxu0
      %v1349 = vpack.c.bf16 %v1347, %v1345
      %1351 = vrot.lane.b32.xlu0 %v1349, 96
      %v1352 = vpop.permute.xlu0 %1351
      %vm1353 = vcmask 64512
      %v1355 = vsel %vm1353, %v1349, 0
      %v1358 = vsel %vm1353, %v1352, 0
      %1360 = vmatpush.bf16.xpose.msra.mxu0 0
      %1361 = vmatpush.bf16.xpose.msra.mxu0 0
      %1362 = vmatpush.bf16.xpose.msra.mxu0 0
      %1363 = vmatpush.bf16.xpose.msra.mxu0 0
      %1364 = vmatpush.bf16.xpose.msra.mxu0 0
      %1365 = vmatpush.bf16.xpose.msra.mxu0 0
      %1366 = vmatpush.bf16.xpose.msra.mxu0 0
      %1367 = vmatpush.bf16.xpose.msra.mxu0 %v1358
      %1368 = vmatmul.bf16.gmra.mxu0 %v1355
      %v1369 = vpop.f32.mrf.mxu0
      %v1370 = vadd.f32 %v1308, %v1369
      %v1371 = vpop.f32.mrf.mxu0
      %v1372 = vadd.f32 %v1308, %v1371
      %1373 = vdwg.mxu0
      %vm1374 = vcmask 72704
      %v1375 = vsel %vm1374, %v1370, -inf
      %1376 = vmax.xlane.f32.xlu0 %v1375
      %v1377 = vpop.xlane.xlu0 %1376
      %vm1378 = vcmask 65536
      %v1379 = vsel %vm1378, %v1372, -inf
      %1380 = vmax.xlane.f32.xlu0 %v1379
      %v1381 = vpop.xlane.xlu0 %1380
      %v1382 = vsub.f32 %v1370, %v1377
      %v1383 = vsub.f32 %v1372, %v1381
      %v1384 = vmul.f32 %v1382, 1.442695
      %v1385 = vpow.pop %v1384
      %v1386 = vmul.f32 %v1383, 1.442695
      %v1387 = vpow.pop %v1386
      %v1388 = vsel %vm1374, %v1385, 0.0
      %1389 = vadd.xlane.f32.xlu0 %v1388
      %v1390 = vpop.xlane.xlu0 %1389
      %v1391 = vsel %vm1378, %v1387, 0.0
      %1392 = vadd.xlane.f32.xlu0 %v1391
      %v1393 = vpop.xlane.xlu0 %1392
      %v1394 = vrcp.pop %v1390
      %v1395 = vrcp.pop %v1393
      %v1396 = vmul.f32 %v1385, %v1394
      %v1397 = vmul.f32 %v1387, %v1395
      %v1398 = vpack.c.bf16 %v1397, %v1396
      %1399 = vrot.lane.b32.xlu0 %v1349, 64
      %v1400 = vpop.permute.xlu0 %1399
      %v1402 = vsel %vm1374, %v1398, 0
      %vm1404 = vcmask 1043456
      %vm1405 = vcmask 1044480
      %v1406 = vsel %vm1404, 4294967295, 65535
      %v1407 = vsel %vm1405, %v1406, 0
      %v1409 = vand.u32 %v1400, %v1407
      %1411 = vmatpush.bf16.msra.mxu0 0
      %1412 = vmatpush.bf16.msra.mxu0 0
      %1413 = vmatpush.bf16.msra.mxu0 0
      %1414 = vmatpush.bf16.msra.mxu0 0
      %1415 = vmatpush.bf16.msra.mxu0 0
      %1416 = vmatpush.bf16.msra.mxu0 0
      %1417 = vmatpush.bf16.msra.mxu0 0
      %1418 = vmatpush.bf16.msra.mxu0 %v1409
      %1419 = vmatmul.bf16.gmra.mxu0 %v1402
      %v1420 = vpop.f32.mrf.mxu0
      %v1421 = vadd.f32 0.0, %v1420
      %v1422 = vpop.f32.mrf.mxu0
      %v1423 = vadd.f32 0.0, %v1422
      %1424 = vdwg.mxu0
      %1425 = vrot.lane.b32.xlu0 %v1349, 120
      %v1426 = vpop.permute.xlu0 %1425
      %1427 = vrot.lane.b32.xlu0 %v1349, 88
      %v1428 = vpop.permute.xlu0 %1427
      %v1430 = vsel %vm1353, %v1426, 0
      %v1433 = vsel %vm1353, %v1428, 0
      %1435 = vmatpush.bf16.xpose.msra.mxu0 0
      %1436 = vmatpush.bf16.xpose.msra.mxu0 0
      %1437 = vmatpush.bf16.xpose.msra.mxu0 0
      %1438 = vmatpush.bf16.xpose.msra.mxu0 0
      %1439 = vmatpush.bf16.xpose.msra.mxu0 0
      %1440 = vmatpush.bf16.xpose.msra.mxu0 0
      %1441 = vmatpush.bf16.xpose.msra.mxu0 0
      %1442 = vmatpush.bf16.xpose.msra.mxu0 %v1433
      %1443 = vmatmul.bf16.gmra.mxu0 %v1430
      %v1444 = vpop.f32.mrf.mxu0
      %v1445 = vadd.f32 %v1308, %v1444
      %v1446 = vpop.f32.mrf.mxu0
      %v1447 = vadd.f32 %v1308, %v1446
      %1448 = vdwg.mxu0
      %v1449 = vsel %vm1374, %v1445, -inf
      %1450 = vmax.xlane.f32.xlu0 %v1449
      %v1451 = vpop.xlane.xlu0 %1450
      %v1452 = vsel %vm1378, %v1447, -inf
      %1453 = vmax.xlane.f32.xlu0 %v1452
      %v1454 = vpop.xlane.xlu0 %1453
      %v1455 = vsub.f32 %v1445, %v1451
      %v1456 = vsub.f32 %v1447, %v1454
      %v1457 = vmul.f32 %v1455, 1.442695
      %v1458 = vpow.pop %v1457
      %v1459 = vmul.f32 %v1456, 1.442695
      %v1460 = vpow.pop %v1459
      %v1461 = vsel %vm1374, %v1458, 0.0
      %1462 = vadd.xlane.f32.xlu0 %v1461
      %v1463 = vpop.xlane.xlu0 %1462
      %v1464 = vsel %vm1378, %v1460, 0.0
      %1465 = vadd.xlane.f32.xlu0 %v1464
      %v1466 = vpop.xlane.xlu0 %1465
      %v1467 = vrcp.pop %v1463
      %v1468 = vrcp.pop %v1466
      %v1469 = vmul.f32 %v1458, %v1467
      %v1470 = vmul.f32 %v1460, %v1468
      %v1471 = vpack.c.bf16 %v1470, %v1469
      %1472 = vrot.lane.b32.xlu0 %v1349, 56
      %v1473 = vpop.permute.xlu0 %1472
      %v1475 = vsel %vm1374, %v1471, 0
      %v1478 = vand.u32 %v1473, %v1407
      %1480 = vmatpush.bf16.msra.mxu0 0
      %1481 = vmatpush.bf16.msra.mxu0 0
      %1482 = vmatpush.bf16.msra.mxu0 0
      %1483 = vmatpush.bf16.msra.mxu0 0
      %1484 = vmatpush.bf16.msra.mxu0 0
      %1485 = vmatpush.bf16.msra.mxu0 0
      %1486 = vmatpush.bf16.msra.mxu0 0
      %1487 = vmatpush.bf16.msra.mxu0 %v1478
      %1488 = vmatmul.bf16.gmra.mxu0 %v1475
      %v1489 = vpop.f32.mrf.mxu0
      %v1490 = vadd.f32 0.0, %v1489
      %v1491 = vpop.f32.mrf.mxu0
      %v1492 = vadd.f32 0.0, %v1491
      %1493 = vdwg.mxu0
      %1494 = vrot.lane.b32.xlu0 %v1349, 112
      %v1495 = vpop.permute.xlu0 %1494
      %1496 = vrot.lane.b32.xlu0 %v1349, 80
      %v1497 = vpop.permute.xlu0 %1496
      %v1499 = vsel %vm1353, %v1495, 0
      %v1502 = vsel %vm1353, %v1497, 0
      %1504 = vmatpush.bf16.xpose.msra.mxu0 0
      %1505 = vmatpush.bf16.xpose.msra.mxu0 0
      %1506 = vmatpush.bf16.xpose.msra.mxu0 0
      %1507 = vmatpush.bf16.xpose.msra.mxu0 0
      %1508 = vmatpush.bf16.xpose.msra.mxu0 0
      %1509 = vmatpush.bf16.xpose.msra.mxu0 0
      %1510 = vmatpush.bf16.xpose.msra.mxu0 0
      %1511 = vmatpush.bf16.xpose.msra.mxu0 %v1502
      %1512 = vmatmul.bf16.gmra.mxu0 %v1499
      %v1513 = vpop.f32.mrf.mxu0
      %v1514 = vadd.f32 %v1308, %v1513
      %v1515 = vpop.f32.mrf.mxu0
      %v1516 = vadd.f32 %v1308, %v1515
      %1517 = vdwg.mxu0
      %v1518 = vsel %vm1374, %v1514, -inf
      %1519 = vmax.xlane.f32.xlu0 %v1518
      %v1520 = vpop.xlane.xlu0 %1519
      %v1521 = vsel %vm1378, %v1516, -inf
      %1522 = vmax.xlane.f32.xlu0 %v1521
      %v1523 = vpop.xlane.xlu0 %1522
      %v1524 = vsub.f32 %v1514, %v1520
      %v1525 = vsub.f32 %v1516, %v1523
      %v1526 = vmul.f32 %v1524, 1.442695
      %v1527 = vpow.pop %v1526
      %v1528 = vmul.f32 %v1525, 1.442695
      %v1529 = vpow.pop %v1528
      %v1530 = vsel %vm1374, %v1527, 0.0
      %1531 = vadd.xlane.f32.xlu0 %v1530
      %v1532 = vpop.xlane.xlu0 %1531
      %v1533 = vsel %vm1378, %v1529, 0.0
      %1534 = vadd.xlane.f32.xlu0 %v1533
      %v1535 = vpop.xlane.xlu0 %1534
      %v1536 = vrcp.pop %v1532
      %v1537 = vrcp.pop %v1535
      %v1538 = vmul.f32 %v1527, %v1536
      %v1539 = vmul.f32 %v1529, %v1537
      %v1540 = vpack.c.bf16 %v1539, %v1538
      %1541 = vrot.lane.b32.xlu0 %v1349, 48
      %v1542 = vpop.permute.xlu0 %1541
      %v1544 = vsel %vm1374, %v1540, 0
      %v1547 = vand.u32 %v1542, %v1407
      %1549 = vmatpush.bf16.msra.mxu0 0
      %1550 = vmatpush.bf16.msra.mxu0 0
      %1551 = vmatpush.bf16.msra.mxu0 0
      %1552 = vmatpush.bf16.msra.mxu0 0
      %1553 = vmatpush.bf16.msra.mxu0 0
      %1554 = vmatpush.bf16.msra.mxu0 0
      %1555 = vmatpush.bf16.msra.mxu0 0
      %1556 = vmatpush.bf16.msra.mxu0 %v1547
      %1557 = vmatmul.bf16.gmra.mxu0 %v1544
      %v1558 = vpop.f32.mrf.mxu0
      %v1559 = vadd.f32 0.0, %v1558
      %v1560 = vpop.f32.mrf.mxu0
      %v1561 = vadd.f32 0.0, %v1560
      %1562 = vdwg.mxu0
      %1563 = vrot.lane.b32.xlu0 %v1349, 104
      %v1564 = vpop.permute.xlu0 %1563
      %1565 = vrot.lane.b32.xlu0 %v1349, 72
      %v1566 = vpop.permute.xlu0 %1565
      %v1568 = vsel %vm1353, %v1564, 0
      %v1571 = vsel %vm1353, %v1566, 0
      %1573 = vmatpush.bf16.xpose.msra.mxu0 0
      %1574 = vmatpush.bf16.xpose.msra.mxu0 0
      %1575 = vmatpush.bf16.xpose.msra.mxu0 0
      %1576 = vmatpush.bf16.xpose.msra.mxu0 0
      %1577 = vmatpush.bf16.xpose.msra.mxu0 0
      %1578 = vmatpush.bf16.xpose.msra.mxu0 0
      %1579 = vmatpush.bf16.xpose.msra.mxu0 0
      %1580 = vmatpush.bf16.xpose.msra.mxu0 %v1571
      %1581 = vmatmul.bf16.gmra.mxu0 %v1568
      %v1582 = vpop.f32.mrf.mxu0
      %v1583 = vadd.f32 %v1308, %v1582
      %v1584 = vpop.f32.mrf.mxu0
      %v1585 = vadd.f32 %v1308, %v1584
      %1586 = vdwg.mxu0
      %v1587 = vsel %vm1374, %v1583, -inf
      %1588 = vmax.xlane.f32.xlu0 %v1587
      %v1589 = vpop.xlane.xlu0 %1588
      %v1590 = vsel %vm1378, %v1585, -inf
      %1591 = vmax.xlane.f32.xlu0 %v1590
      %v1592 = vpop.xlane.xlu0 %1591
      %v1593 = vsub.f32 %v1583, %v1589
      %v1594 = vsub.f32 %v1585, %v1592
      %v1595 = vmul.f32 %v1593, 1.442695
      %v1596 = vpow.pop %v1595
      %v1597 = vmul.f32 %v1594, 1.442695
      %v1598 = vpow.pop %v1597
      %v1599 = vsel %vm1374, %v1596, 0.0
      %1600 = vadd.xlane.f32.xlu0 %v1599
      %v1601 = vpop.xlane.xlu0 %1600
      %v1602 = vsel %vm1378, %v1598, 0.0
      %1603 = vadd.xlane.f32.xlu0 %v1602
      %v1604 = vpop.xlane.xlu0 %1603
      %v1605 = vrcp.pop %v1601
      %v1606 = vrcp.pop %v1604
      %v1607 = vmul.f32 %v1596, %v1605
      %v1608 = vmul.f32 %v1598, %v1606
      %v1609 = vpack.c.bf16 %v1608, %v1607
      %1610 = vrot.lane.b32.xlu0 %v1349, 40
      %v1611 = vpop.permute.xlu0 %1610
      %v1613 = vsel %vm1374, %v1609, 0
      %v1616 = vand.u32 %v1611, %v1407
      %1618 = vmatpush.bf16.msra.mxu0 0
      %1619 = vmatpush.bf16.msra.mxu0 0
      %1620 = vmatpush.bf16.msra.mxu0 0
      %1621 = vmatpush.bf16.msra.mxu0 0
      %1622 = vmatpush.bf16.msra.mxu0 0
      %1623 = vmatpush.bf16.msra.mxu0 0
      %1624 = vmatpush.bf16.msra.mxu0 0
      %1625 = vmatpush.bf16.msra.mxu0 %v1616
      %1626 = vmatmul.bf16.gmra.mxu0 %v1613
      %v1627 = vpop.f32.mrf.mxu0
      %v1628 = vadd.f32 0.0, %v1627
      %v1629 = vpop.f32.mrf.mxu0
      %v1630 = vadd.f32 0.0, %v1629
      %1631 = vdwg.mxu0
      %1634 = vrot.lane.b32.xlu0 %v1490, 8
      %v1635 = vpop.permute.xlu0 %1634
      %1636 = vrot.lane.b32.xlu0 %v1492, 8
      %v1637 = vpop.permute.xlu0 %1636
      %1642 = vrot.lane.b32.xlu0 %v1559, 16
      %v1643 = vpop.permute.xlu0 %1642
      %1644 = vrot.lane.b32.xlu0 %v1561, 16
      %v1645 = vpop.permute.xlu0 %1644
      %1650 = vrot.lane.b32.xlu0 %v1628, 24
      %v1651 = vpop.permute.xlu0 %1650
      %1652 = vrot.lane.b32.xlu0 %v1630, 24
      %v1653 = vpop.permute.xlu0 %1652
      %v1656 = vsel %vm1353, %v1421, %v1635
      %v1657 = vsel %vm1353, %v1423, %v1637
      %vm1658 = vcmask 130048
      %v1659 = vsel %vm1658, %v1656, %v1643
      %v1660 = vsel %vm1658, %v1657, %v1645
      %vm1661 = vcmask 195584
      %v1662 = vsel %vm1661, %v1659, %v1651
      %v1663 = vsel %vm1661, %v1660, %v1653
      %v1664 = vpack.c.bf16 %v1663, %v1662
      %v1665 = vld [vmem:[%s1221] sm:$0xf]
      %v1666 = vld [vmem:[%s1221 + $0x4] sm:$0xf]
      %v1667 = vld [vmem:[%s1221 + $0x8] sm:$0xf]
      %v1668 = vld [vmem:[%s1221 + $0xc] sm:$0xf]
      %v1669 = vld [vmem:[%s1224] sm:$0x1]
      %v1671 = vperm.slane %v1669, 0
      %v1677 = vunpack.c.l.b16 %v1665
      %v1678 = vunpack.c.l.b16 %v1666
      %v1679 = vunpack.c.l.b16 %v1667
      %v1680 = vunpack.c.l.b16 %v1668
      %v1681 = vpack.c.b16 %v1678, %v1677
      %v1682 = vpack.c.b16 %v1680, %v1679
      %v1686 = vsel %vm1331, %v1664, 0
      %1688 = vmatpush.bf16.msra.mxu0 0
      %1689 = vmatpush.bf16.msra.mxu0 0
      %1690 = vmatpush.bf16.msra.mxu0 0
      %1691 = vmatpush.bf16.msra.mxu0 0
      %1692 = vmatpush.bf16.msra.mxu0 0
      %1693 = vmatpush.bf16.msra.mxu0 0
      %1694 = vmatpush.bf16.msra.mxu0 %v1682
      %1695 = vmatpush.bf16.msra.mxu0 %v1681
      %1696 = vmatmul.bf16.gmra.mxu0 %v1686
      %v1697 = vpop.f32.mrf.mxu0
      %v1698 = vadd.f32 %v1671, %v1697
      %v1699 = vpop.f32.mrf.mxu0
      %v1700 = vadd.f32 %v1671, %v1699
      %1701 = vdwg.mxu0
      %v1702 = vadd.f32 %v1302, %v1698
      %v1703 = vadd.f32 %v1303, %v1700
      %v1704 = vsel %vm1331, %v1702, 0.0
      %1705 = vadd.xlane.f32.xlu0 %v1704
      %v1706 = vpop.xlane.xlu0 %1705
      %vm1707 = vcmask 253952
      %v1708 = vsel %vm1707, %v1703, 0.0
      %1709 = vadd.xlane.f32.xlu0 %v1708
      %v1710 = vpop.xlane.xlu0 %1709
      %v1711 = vrcp.pop 32.0
      %v1712 = vmul.f32 32.0, %v1711
      %v1713 = vsub.f32 1.0, %v1712
      %v1714 = vmul.f32 %v1711, %v1713
      %v1715 = vadd.f32 %v1711, %v1714
      %vm1716 = vweird.f32 %v1711
      %v1717 = vsel %vm1716, %v1711, %v1715
      %v1718 = vmul.f32 %v1706, %v1717
      %v1719 = vmul.f32 %v1710, %v1717
      %v1720 = vsub.f32 %v1702, %v1718
      %v1721 = vsub.f32 %v1703, %v1719
      %v1722 = vmul.f32 %v1720, %v1720
      %v1723 = vmul.f32 %v1721, %v1721
      %v1724 = vsel %vm1331, %v1722, 0.0
      %1725 = vadd.xlane.f32.xlu0 %v1724
      %v1726 = vpop.xlane.xlu0 %1725
      %v1727 = vsel %vm1707, %v1723, 0.0
      %1728 = vadd.xlane.f32.xlu0 %v1727
      %v1729 = vpop.xlane.xlu0 %1728
      %v1730 = vmul.f32 %v1726, %v1717
      %v1731 = vmul.f32 %v1729, %v1717
      %v1732 = vadd.f32 %v1730, 1e-05
      %v1733 = vadd.f32 %v1731, 1e-05
      %v1734 = vrsqrt.pop %v1732
      %v1735 = vmul.f32 %v1734, %v1732
      %v1736 = vmul.f32 %v1735, %v1734
      %v1737 = vmul.f32 0.5, %v1736
      %v1738 = vsub.f32 1.5, %v1737
      %v1739 = vmul.f32 %v1734, %v1738
      %vm1740 = vweird.f32 %v1732
      %vm1741 = vweird.f32 %v1734
      %vm1742 = vmor %vm1740, %vm1741
      %v1743 = vsel %vm1742, %v1734, %v1739
      %v1744 = vrsqrt.pop %v1733
      %v1745 = vmul.f32 %v1744, %v1733
      %v1746 = vmul.f32 %v1745, %v1744
      %v1747 = vmul.f32 0.5, %v1746
      %v1748 = vsub.f32 1.5, %v1747
      %v1749 = vmul.f32 %v1744, %v1748
      %vm1750 = vweird.f32 %v1733
      %vm1751 = vweird.f32 %v1744
      %vm1752 = vmor %vm1750, %vm1751
      %v1753 = vsel %vm1752, %v1744, %v1749
      %v1754 = vmul.f32 %v1720, %v1743
      %v1755 = vmul.f32 %v1721, %v1753
      %v1756 = vld [vmem:[%s1227] sm:$0x1]
      %v1758 = vperm.slane %v1756, 0
      %v1760 = vmul.f32 %v1754, %v1758
      %v1761 = vmul.f32 %v1755, %v1758
      %v1762 = vld [vmem:[%s1230] sm:$0x1]
      %v1764 = vperm.slane %v1762, 0
      %v1766 = vadd.f32 %v1760, %v1764
      %v1767 = vadd.f32 %v1761, %v1764
      %v1768 = vld [vmem:[%s1205] sm:$0xff]
      %v1769 = vld [vmem:[%s1208] sm:$0x1]
      %vm1770 = vcmp.gt.f32.partialorder %v1769, 0.0
      %v1771 = vsel %vm1770, 0.0, -1e+30
      %v1773 = vperm.slane %v1771, 0
      %v1775 = vpack.c.bf16 %v1767, %v1766
      %v1776 = vld [vmem:[%s1235] sm:$0xf]
      %v1777 = vld [vmem:[%s1235 + $0x4] sm:$0xf]
      %v1778 = vld [vmem:[%s1235 + $0x8] sm:$0xf]
      %v1779 = vld [vmem:[%s1235 + $0xc] sm:$0xf]
      %v1780 = vld [vmem:[%s1238] sm:$0x1]
      %v1782 = vperm.slane %v1780, 0
      %v1788 = vunpack.c.l.b16 %v1776
      %v1789 = vunpack.c.l.b16 %v1777
      %v1790 = vunpack.c.l.b16 %v1778
      %v1791 = vunpack.c.l.b16 %v1779
      %v1792 = vpack.c.b16 %v1789, %v1788
      %v1793 = vpack.c.b16 %v1791, %v1790
      %v1797 = vsel %vm1331, %v1775, 0
      %1799 = vmatpush.bf16.msra.mxu0 0
      %1800 = vmatpush.bf16.msra.mxu0 0
      %1801 = vmatpush.bf16.msra.mxu0 0
      %1802 = vmatpush.bf16.msra.mxu0 0
      %1803 = vmatpush.bf16.msra.mxu0 0
      %1804 = vmatpush.bf16.msra.mxu0 0
      %1805 = vmatpush.bf16.msra.mxu0 %v1793
      %1806 = vmatpush.bf16.msra.mxu0 %v1792
      %1807 = vmatmul.bf16.gmra.mxu0 %v1797
      %v1808 = vpop.f32.mrf.mxu0
      %v1809 = vadd.f32 %v1782, %v1808
      %v1810 = vpop.f32.mrf.mxu0
      %v1811 = vadd.f32 %v1782, %v1810
      %1812 = vdwg.mxu0
      %v1813 = vpack.c.bf16 %v1768, %v1768
      %v1814 = vld [vmem:[%s1243] sm:$0xf]
      %v1815 = vld [vmem:[%s1243 + $0x4] sm:$0xf]
      %v1816 = vld [vmem:[%s1243 + $0x8] sm:$0xf]
      %v1817 = vld [vmem:[%s1243 + $0xc] sm:$0xf]
      %v1818 = vld [vmem:[%s1246] sm:$0x1]
      %v1820 = vperm.slane %v1818, 0
      %v1826 = vunpack.c.l.b16 %v1814
      %v1827 = vunpack.c.l.b16 %v1815
      %v1828 = vunpack.c.l.b16 %v1816
      %v1829 = vunpack.c.l.b16 %v1817
      %v1830 = vpack.c.b16 %v1827, %v1826
      %v1831 = vpack.c.b16 %v1829, %v1828
      %v1835 = vsel %vm1331, %v1813, 0
      %1837 = vmatpush.bf16.msra.mxu0 0
      %1838 = vmatpush.bf16.msra.mxu0 0
      %1839 = vmatpush.bf16.msra.mxu0 0
      %1840 = vmatpush.bf16.msra.mxu0 0
      %1841 = vmatpush.bf16.msra.mxu0 0
      %1842 = vmatpush.bf16.msra.mxu0 0
      %1843 = vmatpush.bf16.msra.mxu0 %v1831
      %1844 = vmatpush.bf16.msra.mxu0 %v1830
      %1845 = vmatmul.bf16.gmra.mxu0 %v1835
      %v1846 = vpop.f32.mrf.mxu0
      %v1847 = vadd.f32 %v1820, %v1846
      %v1848 = vpop.f32.mrf.mxu0
      %1849 = vdwg.mxu0
      %v1850 = vpack.c.bf16 %v1811, %v1809
      %v1851 = vpack.c.bf16 %v1847, %v1847
      %v1853 = vsel %vm1353, %v1850, 0
      %v1856 = vsel %vm1353, %v1851, 0
      %1858 = vmatpush.bf16.xpose.msra.mxu0 0
      %1859 = vmatpush.bf16.xpose.msra.mxu0 0
      %1860 = vmatpush.bf16.xpose.msra.mxu0 0
      %1861 = vmatpush.bf16.xpose.msra.mxu0 0
      %1862 = vmatpush.bf16.xpose.msra.mxu0 0
      %1863 = vmatpush.bf16.xpose.msra.mxu0 0
      %1864 = vmatpush.bf16.xpose.msra.mxu0 0
      %1865 = vmatpush.bf16.xpose.msra.mxu0 %v1856
      %1866 = vmatmul.bf16.gmra.mxu0 %v1853
      %v1867 = vpop.f32.mrf.mxu0
      %v1868 = vadd.f32 %v1773, %v1867
      %v1869 = vpop.f32.mrf.mxu0
      %v1870 = vadd.f32 %v1773, %v1869
      %1871 = vdwg.mxu0
      %v1872 = vsel %vm1353, %v1868, -inf
      %1873 = vmax.xlane.f32.xlu0 %v1872
      %v1874 = vpop.xlane.xlu0 %1873
      %vm1875 = vcmask 57344
      %v1876 = vsel %vm1875, %v1870, -inf
      %1877 = vmax.xlane.f32.xlu0 %v1876
      %v1878 = vpop.xlane.xlu0 %1877
      %v1879 = vsub.f32 %v1868, %v1874
      %v1880 = vsub.f32 %v1870, %v1878
      %v1881 = vmul.f32 %v1879, 1.442695
      %v1882 = vpow.pop %v1881
      %v1883 = vmul.f32 %v1880, 1.442695
      %v1884 = vpow.pop %v1883
      %v1885 = vsel %vm1353, %v1882, 0.0
      %1886 = vadd.xlane.f32.xlu0 %v1885
      %v1887 = vpop.xlane.xlu0 %1886
      %v1888 = vsel %vm1875, %v1884, 0.0
      %1889 = vadd.xlane.f32.xlu0 %v1888
      %v1890 = vpop.xlane.xlu0 %1889
      %v1891 = vrcp.pop %v1887
      %v1892 = vrcp.pop %v1890
      %v1893 = vmul.f32 %v1882, %v1891
      %v1894 = vmul.f32 %v1884, %v1892
      %v1895 = vpack.c.bf16 %v1894, %v1893
      %1897 = vrot.lane.b32.xlu0 %v1851, 96
      %v1898 = vpop.permute.xlu0 %1897
      %v1900 = vsel %vm1353, %v1895, 0
      %v1903 = vsel %vm1404, %v1898, 0
      %1905 = vmatpush.bf16.msra.mxu0 0
      %1906 = vmatpush.bf16.msra.mxu0 0
      %1907 = vmatpush.bf16.msra.mxu0 0
      %1908 = vmatpush.bf16.msra.mxu0 0
      %1909 = vmatpush.bf16.msra.mxu0 0
      %1910 = vmatpush.bf16.msra.mxu0 0
      %1911 = vmatpush.bf16.msra.mxu0 0
      %1912 = vmatpush.bf16.msra.mxu0 %v1903
      %1913 = vmatmul.bf16.gmra.mxu0 %v1900
      %v1914 = vpop.f32.mrf.mxu0
      %v1915 = vadd.f32 0.0, %v1914
      %v1916 = vpop.f32.mrf.mxu0
      %v1917 = vadd.f32 0.0, %v1916
      %1918 = vdwg.mxu0
      %1920 = vrot.lane.b32.xlu0 %v1850, 120
      %v1921 = vpop.permute.xlu0 %1920
      %1922 = vrot.lane.b32.xlu0 %v1851, 120
      %v1923 = vpop.permute.xlu0 %1922
      %v1925 = vsel %vm1353, %v1921, 0
      %v1928 = vsel %vm1353, %v1923, 0
      %1930 = vmatpush.bf16.xpose.msra.mxu0 0
      %1931 = vmatpush.bf16.xpose.msra.mxu0 0
      %1932 = vmatpush.bf16.xpose.msra.mxu0 0
      %1933 = vmatpush.bf16.xpose.msra.mxu0 0
      %1934 = vmatpush.bf16.xpose.msra.mxu0 0
      %1935 = vmatpush.bf16.xpose.msra.mxu0 0
      %1936 = vmatpush.bf16.xpose.msra.mxu0 0
      %1937 = vmatpush.bf16.xpose.msra.mxu0 %v1928
      %1938 = vmatmul.bf16.gmra.mxu0 %v1925
      %v1939 = vpop.f32.mrf.mxu0
      %v1940 = vadd.f32 %v1773, %v1939
      %v1941 = vpop.f32.mrf.mxu0
      %v1942 = vadd.f32 %v1773, %v1941
      %1943 = vdwg.mxu0
      %v1944 = vsel %vm1353, %v1940, -inf
      %1945 = vmax.xlane.f32.xlu0 %v1944
      %v1946 = vpop.xlane.xlu0 %1945
      %v1947 = vsel %vm1875, %v1942, -inf
      %1948 = vmax.xlane.f32.xlu0 %v1947
      %v1949 = vpop.xlane.xlu0 %1948
      %v1950 = vsub.f32 %v1940, %v1946
      %v1951 = vsub.f32 %v1942, %v1949
      %v1952 = vmul.f32 %v1950, 1.442695
      %v1953 = vpow.pop %v1952
      %v1954 = vmul.f32 %v1951, 1.442695
      %v1955 = vpow.pop %v1954
      %v1956 = vsel %vm1353, %v1953, 0.0
      %1957 = vadd.xlane.f32.xlu0 %v1956
      %v1958 = vpop.xlane.xlu0 %1957
      %v1959 = vsel %vm1875, %v1955, 0.0
      %1960 = vadd.xlane.f32.xlu0 %v1959
      %v1961 = vpop.xlane.xlu0 %1960
      %v1962 = vrcp.pop %v1958
      %v1963 = vrcp.pop %v1961
      %v1964 = vmul.f32 %v1953, %v1962
      %v1965 = vmul.f32 %v1955, %v1963
      %v1966 = vpack.c.bf16 %v1965, %v1964
      %1967 = vrot.lane.b32.xlu0 %v1851, 88
      %v1968 = vpop.permute.xlu0 %1967
      %v1970 = vsel %vm1353, %v1966, 0
      %v1973 = vsel %vm1404, %v1968, 0
      %1975 = vmatpush.bf16.msra.mxu0 0
      %1976 = vmatpush.bf16.msra.mxu0 0
      %1977 = vmatpush.bf16.msra.mxu0 0
      %1978 = vmatpush.bf16.msra.mxu0 0
      %1979 = vmatpush.bf16.msra.mxu0 0
      %1980 = vmatpush.bf16.msra.mxu0 0
      %1981 = vmatpush.bf16.msra.mxu0 0
      %1982 = vmatpush.bf16.msra.mxu0 %v1973
      %1983 = vmatmul.bf16.gmra.mxu0 %v1970
      %v1984 = vpop.f32.mrf.mxu0
      %v1985 = vadd.f32 0.0, %v1984
      %v1986 = vpop.f32.mrf.mxu0
      %v1987 = vadd.f32 0.0, %v1986
      %1988 = vdwg.mxu0
      %1989 = vrot.lane.b32.xlu0 %v1850, 112
      %v1990 = vpop.permute.xlu0 %1989
      %1991 = vrot.lane.b32.xlu0 %v1851, 112
      %v1992 = vpop.permute.xlu0 %1991
      %v1994 = vsel %vm1353, %v1990, 0
      %v1997 = vsel %vm1353, %v1992, 0
      %1999 = vmatpush.bf16.xpose.msra.mxu0 0
      %2000 = vmatpush.bf16.xpose.msra.mxu0 0
      %2001 = vmatpush.bf16.xpose.msra.mxu0 0
      %2002 = vmatpush.bf16.xpose.msra.mxu0 0
      %2003 = vmatpush.bf16.xpose.msra.mxu0 0
      %2004 = vmatpush.bf16.xpose.msra.mxu0 0
      %2005 = vmatpush.bf16.xpose.msra.mxu0 0
      %2006 = vmatpush.bf16.xpose.msra.mxu0 %v1997
      %2007 = vmatmul.bf16.gmra.mxu0 %v1994
      %v2008 = vpop.f32.mrf.mxu0
      %v2009 = vadd.f32 %v1773, %v2008
      %v2010 = vpop.f32.mrf.mxu0
      %v2011 = vadd.f32 %v1773, %v2010
      %2012 = vdwg.mxu0
      %v2013 = vsel %vm1353, %v2009, -inf
      %2014 = vmax.xlane.f32.xlu0 %v2013
      %v2015 = vpop.xlane.xlu0 %2014
      %v2016 = vsel %vm1875, %v2011, -inf
      %2017 = vmax.xlane.f32.xlu0 %v2016
      %v2018 = vpop.xlane.xlu0 %2017
      %v2019 = vsub.f32 %v2009, %v2015
      %v2020 = vsub.f32 %v2011, %v2018
      %v2021 = vmul.f32 %v2019, 1.442695
      %v2022 = vpow.pop %v2021
      %v2023 = vmul.f32 %v2020, 1.442695
      %v2024 = vpow.pop %v2023
      %v2025 = vsel %vm1353, %v2022, 0.0
      %2026 = vadd.xlane.f32.xlu0 %v2025
      %v2027 = vpop.xlane.xlu0 %2026
      %v2028 = vsel %vm1875, %v2024, 0.0
      %2029 = vadd.xlane.f32.xlu0 %v2028
      %v2030 = vpop.xlane.xlu0 %2029
      %v2031 = vrcp.pop %v2027
      %v2032 = vrcp.pop %v2030
      %v2033 = vmul.f32 %v2022, %v2031
      %v2034 = vmul.f32 %v2024, %v2032
      %v2035 = vpack.c.bf16 %v2034, %v2033
      %2036 = vrot.lane.b32.xlu0 %v1851, 80
      %v2037 = vpop.permute.xlu0 %2036
      %v2039 = vsel %vm1353, %v2035, 0
      %v2042 = vsel %vm1404, %v2037, 0
      %2044 = vmatpush.bf16.msra.mxu0 0
      %2045 = vmatpush.bf16.msra.mxu0 0
      %2046 = vmatpush.bf16.msra.mxu0 0
      %2047 = vmatpush.bf16.msra.mxu0 0
      %2048 = vmatpush.bf16.msra.mxu0 0
      %2049 = vmatpush.bf16.msra.mxu0 0
      %2050 = vmatpush.bf16.msra.mxu0 0
      %2051 = vmatpush.bf16.msra.mxu0 %v2042
      %2052 = vmatmul.bf16.gmra.mxu0 %v2039
      %v2053 = vpop.f32.mrf.mxu0
      %v2054 = vadd.f32 0.0, %v2053
      %v2055 = vpop.f32.mrf.mxu0
      %v2056 = vadd.f32 0.0, %v2055
      %2057 = vdwg.mxu0
      %2058 = vrot.lane.b32.xlu0 %v1850, 104
      %v2059 = vpop.permute.xlu0 %2058
      %2060 = vrot.lane.b32.xlu0 %v1851, 104
      %v2061 = vpop.permute.xlu0 %2060
      %v2063 = vsel %vm1353, %v2059, 0
      %v2066 = vsel %vm1353, %v2061, 0
      %2068 = vmatpush.bf16.xpose.msra.mxu0 0
      %2069 = vmatpush.bf16.xpose.msra.mxu0 0
      %2070 = vmatpush.bf16.xpose.msra.mxu0 0
      %2071 = vmatpush.bf16.xpose.msra.mxu0 0
      %2072 = vmatpush.bf16.xpose.msra.mxu0 0
      %2073 = vmatpush.bf16.xpose.msra.mxu0 0
      %2074 = vmatpush.bf16.xpose.msra.mxu0 0
      %2075 = vmatpush.bf16.xpose.msra.mxu0 %v2066
      %2076 = vmatmul.bf16.gmra.mxu0 %v2063
      %v2077 = vpop.f32.mrf.mxu0
      %v2078 = vadd.f32 %v1773, %v2077
      %v2079 = vpop.f32.mrf.mxu0
      %v2080 = vadd.f32 %v1773, %v2079
      %2081 = vdwg.mxu0
      %v2082 = vsel %vm1353, %v2078, -inf
      %2083 = vmax.xlane.f32.xlu0 %v2082
      %v2084 = vpop.xlane.xlu0 %2083
      %v2085 = vsel %vm1875, %v2080, -inf
      %2086 = vmax.xlane.f32.xlu0 %v2085
      %v2087 = vpop.xlane.xlu0 %2086
      %v2088 = vsub.f32 %v2078, %v2084
      %v2089 = vsub.f32 %v2080, %v2087
      %v2090 = vmul.f32 %v2088, 1.442695
      %v2091 = vpow.pop %v2090
      %v2092 = vmul.f32 %v2089, 1.442695
      %v2093 = vpow.pop %v2092
      %v2094 = vsel %vm1353, %v2091, 0.0
      %2095 = vadd.xlane.f32.xlu0 %v2094
      %v2096 = vpop.xlane.xlu0 %2095
      %v2097 = vsel %vm1875, %v2093, 0.0
      %2098 = vadd.xlane.f32.xlu0 %v2097
      %v2099 = vpop.xlane.xlu0 %2098
      %v2100 = vrcp.pop %v2096
      %v2101 = vrcp.pop %v2099
      %v2102 = vmul.f32 %v2091, %v2100
      %v2103 = vmul.f32 %v2093, %v2101
      %v2104 = vpack.c.bf16 %v2103, %v2102
      %2105 = vrot.lane.b32.xlu0 %v1851, 72
      %v2106 = vpop.permute.xlu0 %2105
      %v2108 = vsel %vm1353, %v2104, 0
      %v2111 = vsel %vm1404, %v2106, 0
      %2113 = vmatpush.bf16.msra.mxu0 0
      %2114 = vmatpush.bf16.msra.mxu0 0
      %2115 = vmatpush.bf16.msra.mxu0 0
      %2116 = vmatpush.bf16.msra.mxu0 0
      %2117 = vmatpush.bf16.msra.mxu0 0
      %2118 = vmatpush.bf16.msra.mxu0 0
      %2119 = vmatpush.bf16.msra.mxu0 0
      %2120 = vmatpush.bf16.msra.mxu0 %v2111
      %2121 = vmatmul.bf16.gmra.mxu0 %v2108
      %v2122 = vpop.f32.mrf.mxu0
      %v2123 = vadd.f32 0.0, %v2122
      %v2124 = vpop.f32.mrf.mxu0
      %v2125 = vadd.f32 0.0, %v2124
      %2126 = vdwg.mxu0
      %2129 = vrot.lane.b32.xlu0 %v1985, 8
      %v2130 = vpop.permute.xlu0 %2129
      %2131 = vrot.lane.b32.xlu0 %v1987, 8
      %v2132 = vpop.permute.xlu0 %2131
      %2137 = vrot.lane.b32.xlu0 %v2054, 16
      %v2138 = vpop.permute.xlu0 %2137
      %2139 = vrot.lane.b32.xlu0 %v2056, 16
      %v2140 = vpop.permute.xlu0 %2139
      %2145 = vrot.lane.b32.xlu0 %v2123, 24
      %v2146 = vpop.permute.xlu0 %2145
      %2147 = vrot.lane.b32.xlu0 %v2125, 24
      %v2148 = vpop.permute.xlu0 %2147
      %v2151 = vsel %vm1353, %v1915, %v2130
      %v2152 = vsel %vm1353, %v1917, %v2132
      %v2153 = vsel %vm1658, %v2151, %v2138
      %v2154 = vsel %vm1658, %v2152, %v2140
      %v2155 = vsel %vm1661, %v2153, %v2146
      %v2156 = vsel %vm1661, %v2154, %v2148
      %v2157 = vpack.c.bf16 %v2156, %v2155
      %v2158 = vld [vmem:[%s1251] sm:$0xf]
      %v2159 = vld [vmem:[%s1251 + $0x4] sm:$0xf]
      %v2160 = vld [vmem:[%s1251 + $0x8] sm:$0xf]
      %v2161 = vld [vmem:[%s1251 + $0xc] sm:$0xf]
      %v2162 = vld [vmem:[%s1254] sm:$0x1]
      %v2164 = vperm.slane %v2162, 0
      %v2170 = vunpack.c.l.b16 %v2158
      %v2171 = vunpack.c.l.b16 %v2159
      %v2172 = vunpack.c.l.b16 %v2160
      %v2173 = vunpack.c.l.b16 %v2161
      %v2174 = vpack.c.b16 %v2171, %v2170
      %v2175 = vpack.c.b16 %v2173, %v2172
      %v2179 = vsel %vm1331, %v2157, 0
      %2181 = vmatpush.bf16.msra.mxu0 0
      %2182 = vmatpush.bf16.msra.mxu0 0
      %2183 = vmatpush.bf16.msra.mxu0 0
      %2184 = vmatpush.bf16.msra.mxu0 0
      %2185 = vmatpush.bf16.msra.mxu0 0
      %2186 = vmatpush.bf16.msra.mxu0 0
      %2187 = vmatpush.bf16.msra.mxu0 %v2175
      %2188 = vmatpush.bf16.msra.mxu0 %v2174
      %2189 = vmatmul.bf16.gmra.mxu0 %v2179
      %v2190 = vpop.f32.mrf.mxu0
      %v2191 = vadd.f32 %v2164, %v2190
      %v2192 = vpop.f32.mrf.mxu0
      %v2193 = vadd.f32 %v2164, %v2192
      %2194 = vdwg.mxu0
      %v2195 = vadd.f32 %v1766, %v2191
      %v2196 = vadd.f32 %v1767, %v2193
      %v2197 = vsel %vm1331, %v2195, 0.0
      %2198 = vadd.xlane.f32.xlu0 %v2197
      %v2199 = vpop.xlane.xlu0 %2198
      %v2200 = vsel %vm1707, %v2196, 0.0
      %2201 = vadd.xlane.f32.xlu0 %v2200
      %v2202 = vpop.xlane.xlu0 %2201
      %v2203 = vmul.f32 %v2199, %v1717
      %v2204 = vmul.f32 %v2202, %v1717
      %v2205 = vsub.f32 %v2195, %v2203
      %v2206 = vsub.f32 %v2196, %v2204
      %v2207 = vmul.f32 %v2205, %v2205
      %v2208 = vmul.f32 %v2206, %v2206
      %v2209 = vsel %vm1331, %v2207, 0.0
      %2210 = vadd.xlane.f32.xlu0 %v2209
      %v2211 = vpop.xlane.xlu0 %2210
      %v2212 = vsel %vm1707, %v2208, 0.0
      %2213 = vadd.xlane.f32.xlu0 %v2212
      %v2214 = vpop.xlane.xlu0 %2213
      %v2215 = vmul.f32 %v2211, %v1717
      %v2216 = vmul.f32 %v2214, %v1717
      %v2217 = vadd.f32 %v2215, 1e-05
      %v2218 = vadd.f32 %v2216, 1e-05
      %v2219 = vrsqrt.pop %v2217
      %v2220 = vmul.f32 %v2219, %v2217
      %v2221 = vmul.f32 %v2220, %v2219
      %v2222 = vmul.f32 0.5, %v2221
      %v2223 = vsub.f32 1.5, %v2222
      %v2224 = vmul.f32 %v2219, %v2223
      %vm2225 = vweird.f32 %v2217
      %vm2226 = vweird.f32 %v2219
      %vm2227 = vmor %vm2225, %vm2226
      %v2228 = vsel %vm2227, %v2219, %v2224
      %v2229 = vrsqrt.pop %v2218
      %v2230 = vmul.f32 %v2229, %v2218
      %v2231 = vmul.f32 %v2230, %v2229
      %v2232 = vmul.f32 0.5, %v2231
      %v2233 = vsub.f32 1.5, %v2232
      %v2234 = vmul.f32 %v2229, %v2233
      %vm2235 = vweird.f32 %v2218
      %vm2236 = vweird.f32 %v2229
      %vm2237 = vmor %vm2235, %vm2236
      %v2238 = vsel %vm2237, %v2229, %v2234
      %v2239 = vmul.f32 %v2205, %v2228
      %v2240 = vmul.f32 %v2206, %v2238
      %v2241 = vld [vmem:[%s1257] sm:$0x1]
      %v2243 = vperm.slane %v2241, 0
      %v2245 = vmul.f32 %v2239, %v2243
      %v2246 = vmul.f32 %v2240, %v2243
      %v2247 = vld [vmem:[%s1260] sm:$0x1]
      %v2249 = vperm.slane %v2247, 0
      %v2251 = vadd.f32 %v2245, %v2249
      %v2252 = vadd.f32 %v2246, %v2249
      %v2253 = vpack.c.bf16 %v2252, %v2251
      %v2254 = vld [vmem:[%s1265] sm:$0xf]
      %v2255 = vld [vmem:[%s1265 + $0x4] sm:$0xf]
      %v2256 = vld [vmem:[%s1265 + $0x8] sm:$0xf]
      %v2257 = vld [vmem:[%s1265 + $0xc] sm:$0xf]
      %v2258 = vld [vmem:[%s1268] sm:$0x1]
      %v2260 = vperm.slane %v2258, 0
      %v2266 = vunpack.c.l.b16 %v2254
      %v2267 = vunpack.c.l.b16 %v2255
      %v2268 = vunpack.c.l.b16 %v2256
      %v2269 = vunpack.c.l.b16 %v2257
      %v2270 = vpack.c.b16 %v2267, %v2266
      %v2271 = vpack.c.b16 %v2269, %v2268
      %v2275 = vsel %vm1331, %v2253, 0
      %2277 = vmatpush.bf16.msra.mxu0 0
      %2278 = vmatpush.bf16.msra.mxu0 0
      %2279 = vmatpush.bf16.msra.mxu0 0
      %2280 = vmatpush.bf16.msra.mxu0 0
      %2281 = vmatpush.bf16.msra.mxu0 0
      %2282 = vmatpush.bf16.msra.mxu0 0
      %2283 = vmatpush.bf16.msra.mxu0 %v2271
      %2284 = vmatpush.bf16.msra.mxu0 %v2270
      %2285 = vmatmul.bf16.gmra.mxu0 %v2275
      %v2286 = vpop.f32.mrf.mxu0
      %v2287 = vadd.f32 %v2260, %v2286
      %v2288 = vpop.f32.mrf.mxu0
      %v2289 = vadd.f32 %v2260, %v2288
      %2290 = vdwg.mxu0
      %v2291 = vmax.f32 %v2287, 0.0
      %v2292 = vmax.f32 %v2289, 0.0
      %v2293 = vpack.c.bf16 %v2292, %v2291
      %v2294 = vld [vmem:[%s1273] sm:$0xf]
      %v2295 = vld [vmem:[%s1273 + $0x4] sm:$0xf]
      %v2296 = vld [vmem:[%s1273 + $0x8] sm:$0xf]
      %v2297 = vld [vmem:[%s1273 + $0xc] sm:$0xf]
      %v2298 = vld [vmem:[%s1273 + $0x10] sm:$0xf]
      %v2299 = vld [vmem:[%s1273 + $0x14] sm:$0xf]
      %v2300 = vld [vmem:[%s1273 + $0x18] sm:$0xf]
      %v2301 = vld [vmem:[%s1273 + $0x1c] sm:$0xf]
      %v2302 = vld [vmem:[%s1276] sm:$0x1]
      %v2304 = vperm.slane %v2302, 0
      %v2314 = vunpack.c.l.b16 %v2294
      %v2315 = vunpack.c.l.b16 %v2295
      %v2316 = vunpack.c.l.b16 %v2296
      %v2317 = vunpack.c.l.b16 %v2297
      %v2318 = vunpack.c.l.b16 %v2298
      %v2319 = vunpack.c.l.b16 %v2299
      %v2320 = vunpack.c.l.b16 %v2300
      %v2321 = vunpack.c.l.b16 %v2301
      %v2322 = vpack.c.b16 %v2315, %v2314
      %v2323 = vpack.c.b16 %v2317, %v2316
      %v2324 = vpack.c.b16 %v2319, %v2318
      %v2325 = vpack.c.b16 %v2321, %v2320
      %vm2330 = vcmask 523264
      %v2332 = vsel %vm2330, %v2293, 0
      %2334 = vmatpush.bf16.msra.mxu0 0
      %2335 = vmatpush.bf16.msra.mxu0 0
      %2336 = vmatpush.bf16.msra.mxu0 0
      %2337 = vmatpush.bf16.msra.mxu0 0
      %2338 = vmatpush.bf16.msra.mxu0 %v2325
      %2339 = vmatpush.bf16.msra.mxu0 %v2324
      %2340 = vmatpush.bf16.msra.mxu0 %v2323
      %2341 = vmatpush.bf16.msra.mxu0 %v2322
      %2342 = vmatmul.bf16.gmra.mxu0 %v2332
      %v2343 = vpop.f32.mrf.mxu0
      %v2344 = vadd.f32 %v2304, %v2343
      %v2345 = vpop.f32.mrf.mxu0
      %v2346 = vadd.f32 %v2304, %v2345
      %2347 = vdwg.mxu0
      %v2348 = vadd.f32 %v2251, %v2344
      %v2349 = vadd.f32 %v2252, %v2346
      %v2350 = vsel %vm1331, %v2348, 0.0
      %2351 = vadd.xlane.f32.xlu0 %v2350
      %v2352 = vpop.xlane.xlu0 %2351
      %v2353 = vsel %vm1707, %v2349, 0.0
      %2354 = vadd.xlane.f32.xlu0 %v2353
      %v2355 = vpop.xlane.xlu0 %2354
      %v2356 = vmul.f32 %v2352, %v1717
      %v2357 = vmul.f32 %v2355, %v1717
      %v2358 = vsub.f32 %v2348, %v2356
      %v2359 = vsub.f32 %v2349, %v2357
      %v2360 = vmul.f32 %v2358, %v2358
      %v2361 = vmul.f32 %v2359, %v2359
      %v2362 = vsel %vm1331, %v2360, 0.0
      %2363 = vadd.xlane.f32.xlu0 %v2362
      %v2364 = vpop.xlane.xlu0 %2363
      %v2365 = vsel %vm1707, %v2361, 0.0
      %2366 = vadd.xlane.f32.xlu0 %v2365
      %v2367 = vpop.xlane.xlu0 %2366
      %v2368 = vmul.f32 %v2364, %v1717
      %v2369 = vmul.f32 %v2367, %v1717
      %v2370 = vadd.f32 %v2368, 1e-05
      %v2371 = vadd.f32 %v2369, 1e-05
      %v2372 = vrsqrt.pop %v2370
      %v2373 = vmul.f32 %v2372, %v2370
      %v2374 = vmul.f32 %v2373, %v2372
      %v2375 = vmul.f32 0.5, %v2374
      %v2376 = vsub.f32 1.5, %v2375
      %v2377 = vmul.f32 %v2372, %v2376
      %vm2378 = vweird.f32 %v2370
      %vm2379 = vweird.f32 %v2372
      %vm2380 = vmor %vm2378, %vm2379
      %v2381 = vsel %vm2380, %v2372, %v2377
      %v2382 = vrsqrt.pop %v2371
      %v2383 = vmul.f32 %v2382, %v2371
      %v2384 = vmul.f32 %v2383, %v2382
      %v2385 = vmul.f32 0.5, %v2384
      %v2386 = vsub.f32 1.5, %v2385
      %v2387 = vmul.f32 %v2382, %v2386
      %vm2388 = vweird.f32 %v2371
      %vm2389 = vweird.f32 %v2382
      %vm2390 = vmor %vm2388, %vm2389
      %v2391 = vsel %vm2390, %v2382, %v2387
      %v2392 = vmul.f32 %v2358, %v2381
      %v2393 = vmul.f32 %v2359, %v2391
      %v2394 = vld [vmem:[%s1279] sm:$0x1]
      %v2396 = vperm.slane %v2394, 0
      %v2398 = vmul.f32 %v2392, %v2396
      %v2399 = vmul.f32 %v2393, %v2396
      %v2400 = vld [vmem:[%s1282] sm:$0x1]
      %v2402 = vperm.slane %v2400, 0
      %v2404 = vadd.f32 %v2398, %v2402
      %v2405 = vadd.f32 %v2399, %v2402
      %2406 = vst.msk [vmem:[#allocation2] sm:$0xff] %vm1331, %v2404
      %2407 = vst.msk [vmem:[#allocation2 + $0x8] sm:$0x1] %vm1707, %v2405
      %p2408 = scmp.eq.s32.totalorder %s76, 1
      // Predicated region
      $region137: #{video_encoder_forward.1} parent=131 // pred_check
        %p2409 = pneg %p2408
      $region138: #{video_encoder_forward.1} parent=131 // pred_check_branch
        %2411 = sbr.rel (%p2409) target = $region140
      $region139: #{video_encoder_forward.1} parent=131 // pred_region
        %2412 = vst.msk [vmem:[%s1287] sm:$0xff] %vm1331, %v2404
        %2413 = vst.msk [vmem:[%s1287 + $0x8] sm:$0x1] %vm1707, %v2405
        %v2414 = vpack.c.bf16 %v2405, %v2405
        %v2415 = vld [vmem:[%s49] sm:$0xf]
        %v2416 = vld [vmem:[%s49 + $0x4] sm:$0xf]
        %v2417 = vld [vmem:[%s49 + $0x8] sm:$0xf]
        %v2418 = vld [vmem:[%s49 + $0xc] sm:$0xf]
        %v2419 = vld [vmem:[%s51] sm:$0x1]
        %v2424 = vunpack.c.l.b16 %v2415
        %v2425 = vunpack.c.l.b16 %v2416
        %v2426 = vunpack.c.l.b16 %v2417
        %v2427 = vunpack.c.l.b16 %v2418
        %v2428 = vpack.c.b16 %v2425, %v2424
        %v2429 = vpack.c.b16 %v2427, %v2426
        %v2433 = vsel %vm1331, %v2414, 0
        %2435 = vmatpush.bf16.msra.mxu0 0
        %2436 = vmatpush.bf16.msra.mxu0 0
        %2437 = vmatpush.bf16.msra.mxu0 0
        %2438 = vmatpush.bf16.msra.mxu0 0
        %2439 = vmatpush.bf16.msra.mxu0 0
        %2440 = vmatpush.bf16.msra.mxu0 0
        %2441 = vmatpush.bf16.msra.mxu0 %v2429
        %2442 = vmatpush.bf16.msra.mxu0 %v2428
        %2443 = vmatmul.bf16.gmra.mxu0 %v2433
        %v2444 = vpop.f32.mrf.mxu0
        %v2445 = vadd.f32 %v2419, %v2444
        %v2446 = vpop.f32.mrf.mxu0
        %2447 = vdwg.mxu0
        %v2448 = vpack.c.bf16 %v2445, %v2445
        %v2449 = vld [vmem:[%s53] sm:$0xf]
        %v2450 = vld [vmem:[%s53 + $0x4] sm:$0xf]
        %v2451 = vld [vmem:[%s53 + $0x8] sm:$0xf]
        %v2452 = vld [vmem:[%s53 + $0xc] sm:$0xf]
        %v2453 = vld [vmem:[%s55] sm:$0x1]
        %v2458 = vunpack.c.l.b16 %v2449
        %v2459 = vunpack.c.l.b16 %v2450
        %v2460 = vunpack.c.l.b16 %v2451
        %v2461 = vunpack.c.l.b16 %v2452
        %v2462 = vpack.c.b16 %v2459, %v2458
        %v2463 = vpack.c.b16 %v2461, %v2460
        %v2467 = vsel %vm1331, %v2448, 0
        %2469 = vmatpush.bf16.msra.mxu0 0
        %2470 = vmatpush.bf16.msra.mxu0 0
        %2471 = vmatpush.bf16.msra.mxu0 0
        %2472 = vmatpush.bf16.msra.mxu0 0
        %2473 = vmatpush.bf16.msra.mxu0 0
        %2474 = vmatpush.bf16.msra.mxu0 0
        %2475 = vmatpush.bf16.msra.mxu0 %v2463
        %2476 = vmatpush.bf16.msra.mxu0 %v2462
        %2477 = vmatmul.bf16.gmra.mxu0 %v2467
        %v2478 = vpop.f32.mrf.mxu0
        %v2479 = vadd.f32 %v2453, %v2478
        %v2480 = vpop.f32.mrf.mxu0
        %2481 = vdwg.mxu0
        %vm2482 = vcmask 778240
        %2483 = vst.msk [vmem:[%s1290] sm:$0x1] %vm2482, %v2479
      $region140: #{video_encoder_forward.1} parent=131 // pred_fallthru
        _
      %p2484 = scmp.lt.s32.totalorder %s75, 1
      %s2485 = scalar_select %p2484, %s75, 1
      %s2486 = smul.addr %s2485, 2
      %s2487 = smul.addr %s2486, 8
      %s2488 = scalar_lea.vmem %s57, %s2487
      %p2489 = scmp.lt.s32.totalorder %s75, 1
      %s2490 = scalar_select %p2489, %s75, 1
      %s2491 = scalar_lea.vmem %s59, %s2490
      // Predicated region
      $region141: #{video_encoder_forward.1} parent=131 // pred_check
        %p2492 = pneg %p809
      $region142: #{video_encoder_forward.1} parent=131 // pred_check_branch
        %2494 = sbr.rel (%p2492) target = $region144
      $region143: #{video_encoder_forward.1} parent=131 // pred_region
        _
      $region144: #{video_encoder_forward.1} parent=131 // pred_fallthru
        _
      // Predicated region
      $region145: #{video_encoder_forward.1} parent=131 // pred_check
        %p2495 = pneg %p835
      $region146: #{video_encoder_forward.1} parent=131 // pred_check_branch
        %2497 = sbr.rel (%p2495) target = $region148
      $region147: #{video_encoder_forward.1} parent=131 // pred_region
        _
      $region148: #{video_encoder_forward.1} parent=131 // pred_fallthru
        _
    $region132: #{video_encoder_forward.1} parent=5 // pred_fallthru
      _
    %p2498 = scmp.le.s32.totalorder 2, %s66
    // Predicated region
    $region149: #{video_encoder_forward.1} parent=5 // pred_check
      %p2499 = pneg %p2498
    $region150: #{video_encoder_forward.1} parent=5 // pred_check_branch
      %2501 = sbr.rel (%p2499) target = $region152
    $region151: #{video_encoder_forward.1} parent=5 // pred_region
      %s2502 = ssub.s32 %s66, 2
      // Predicated region
      $region153: #{video_encoder_forward.1} parent=151 // pred_check
        %p2503 = pneg %p815
      $region154: #{video_encoder_forward.1} parent=151 // pred_check_branch
        %2505 = sbr.rel (%p2503) target = $region156
      $region155: #{video_encoder_forward.1} parent=151 // pred_region
        %p2506 = scmp.lt.s32.totalorder %s77, 1
        %s2507 = scalar_select %p2506, %s77, 1
        %s2508 = smul.addr %s2507, 2
        %s2509 = smul.addr %s2508, 8
        %s2510 = scalar_lea.vmem %s57, %s2509
      $region156: #{video_encoder_forward.1} parent=151 // pred_fallthru
        _
      // Predicated region
      $region157: #{video_encoder_forward.1} parent=151 // pred_check
        %p2511 = pneg %p841
      $region158: #{video_encoder_forward.1} parent=151 // pred_check_branch
        %2513 = sbr.rel (%p2511) target = $region160
      $region159: #{video_encoder_forward.1} parent=151 // pred_region
        %p2514 = scmp.lt.s32.totalorder %s77, 1
        %s2515 = scalar_select %p2514, %s77, 1
        %s2516 = scalar_lea.vmem %s59, %s2515
      $region160: #{video_encoder_forward.1} parent=151 // pred_fallthru
        _
    $region152: #{video_encoder_forward.1} parent=5 // pred_fallthru
      _
  $region6: #{video_encoder_forward.1} parent=0 // loop_footer
    %s70 = sadd.s32 1, %s66
  $region7: #{video_encoder_forward.1} parent=0 // loop_footer_branch
    %65 = sbr.rel target = $region3
  $region8: #{video_encoder_forward.1} parent=0 // loop_exit
    _

</llo_original>
